<compile_context>
chip_gen: v6e
topology: v6e:2x2x1
jax: 0.10.0
libtpu: 0.0.40
codegen_flags: <defaults>
</compile_context>

<pallas_src>
import math
from functools import partial

import jax
import jax.numpy as jnp
from jax import lax
from jax.experimental import pallas as pl
from jax.experimental.pallas import tpu as pltpu

EPS = 1e-5  # module default
_F32_EPS = float(jnp.finfo(jnp.float32).eps)

# Abramowitz & Stegun style acos polynomial, |err| ~ 2e-8 on [0, 1].
_ACOS_COEFFS = (1.5707963050, -0.2145988016, 0.0889789874, -0.0501743046,
                0.0308918810, -0.0170881256, 0.0066700901, -0.0012624911)


def _acos(r):
    """arccos on [-1, 1] via sqrt + polynomial (no native acos lowering needed)."""
    x = jnp.abs(r)
    poly = _ACOS_COEFFS[-1]
    for c in _ACOS_COEFFS[-2::-1]:
        poly = poly * x + c
    a = jnp.sqrt(jnp.maximum(1.0 - x, 0.0)) * poly
    return jnp.where(r >= 0.0, a, math.pi - a)


def _cos_small(z):  # |z| <= pi/3
    z2 = z * z
    return 1.0 + z2 * (-0.5 + z2 * (1.0 / 24.0 + z2 * (-1.0 / 720.0 + z2 * (1.0 / 40320.0))))


def _sin_small(z):  # |z| <= pi/3
    z2 = z * z
    return z * (1.0 + z2 * (-1.0 / 6.0 + z2 * (1.0 / 120.0 +
                z2 * (-1.0 / 5040.0 + z2 * (1.0 / 362880.0)))))


def _fast_recip(x):
    """Reciprocal on the EUP + one Newton step (~f32 accuracy, frees the VALU)."""
    r = pl.reciprocal(x, approx=True)
    return r * (2.0 - x * r)


def _eqln_kernel(x_ref, w_ref, o_ref, *, eps, d_true):
    dp = w_ref.shape[-1]          # padded width, multiple of 128
    tn = x_ref.shape[0]           # node tile, multiple of 128
    inv_d = 1.0 / float(d_true)

    x0 = x_ref[:, 0 * dp:1 * dp].astype(jnp.float32)   # (tn, dp), lane-aligned
    x1 = x_ref[:, 1 * dp:2 * dp].astype(jnp.float32)
    x2 = x_ref[:, 2 * dp:3 * dp].astype(jnp.float32)

    def rmean(v):                                       # lane reduction -> (tn, 1)
        return jnp.sum(v, axis=-1, keepdims=True) * inv_d

    # 9 per-node scalars: raw second moments + means (padded lanes are zero).
    cols = [rmean(x0 * x0), rmean(x1 * x1), rmean(x2 * x2),
            rmean(x0 * x1), rmean(x0 * x2), rmean(x1 * x2),
            rmean(x0), rmean(x1), rmean(x2)]

    # ---- pack lane-dense: (tn,128) -> transpose (XLU) -> rows of (1, tn) ----
    lane = lax.broadcasted_iota(jnp.int32, (1, 128), 1)
    packed = jnp.zeros((tn, 128), jnp.float32)
    for i, c in enumerate(cols):
        packed = jnp.where(lane == i, c, packed)
    t = jnp.transpose(packed)                           # (128, tn)

    s00, s11, s22 = t[0:1, :], t[1:2, :], t[2:3, :]
    s01, s02, s12 = t[3:4, :], t[4:5, :], t[5:6, :]
    m0, m1, m2 = t[6:7, :], t[7:8, :], t[8:9, :]

    # ---- covariance (raw-moment form) + eps*diag(1,2,3), all (1, tn) ----
    a00 = s00 - m0 * m0 + eps
    a11 = s11 - m1 * m1 + 2.0 * eps
    a22 = s22 - m2 * m2 + 3.0 * eps
    a01 = s01 - m0 * m1
    a02 = s02 - m0 * m2
    a12 = s12 - m1 * m2

    # ---- analytic eigenvalues (Smith's trig method), lane-dense ----
    q = (a00 + a11 + a22) * (1.0 / 3.0)
    b00, b11, b22 = a00 - q, a11 - q, a22 - q
    p2 = b00 * b00 + b11 * b11 + b22 * b22 + 2.0 * (a01 * a01 + a02 * a02 + a12 * a12)
    p = jnp.sqrt(p2 * (1.0 / 6.0))
    pinv = _fast_recip(jnp.maximum(p, 1e-12))
    det_b = (b00 * (b11 * b22 - a12 * a12)
             - a01 * (a01 * b22 - a12 * a02)
             + a02 * (a01 * a12 - b11 * a02))
    r = 0.5 * det_b * pinv * pinv * pinv
    r = jnp.where(p2 > 1e-22, r, 1.0)      # near lambda*I: treat as triple eigenvalue
    r = jnp.clip(r, -1.0, 1.0)
    phi = _acos(r) * (1.0 / 3.0)           # in [0, pi/3]
    cph = _cos_small(phi)
    sph = _sin_small(phi)
    sqrt3 = 1.7320508075688772
    lam1 = q + 2.0 * p * cph               # lam1 >= lam2 >= lam3
    lam3 = q - p * (cph + sqrt3 * sph)
    lam2 = 3.0 * q - lam1 - lam3

    # ---- masked 1/sqrt(lam+eps): reference's rank mask (f32 eps), EUP rsqrt ----
    thr = lam1 * (3.0 * _F32_EPS)
    good1 = lam1 > 0.0
    good2 = lam2 > thr
    good3 = lam3 > thr
    l1 = jnp.maximum(lam1 + eps, 1e-30)
    l2 = jnp.maximum(lam2 + eps, 1e-30)
    l3 = jnp.maximum(lam3 + eps, 1e-30)
    r1, r2, r3 = lax.rsqrt(l1), lax.rsqrt(l2), lax.rsqrt(l3)
    s1, s2, s3 = l1 * r1, l2 * r2, l3 * r3
    g1 = jnp.where(good1, r1, 0.0)
    g2 = jnp.where(good2, r2, 0.0)
    g3 = jnp.where(good3, r3, 0.0)

    # Newton divided differences of f over (lam1, lam2, lam3); closed forms are
    # gap-free, fallbacks only apply to masked (rank-deficient) directions.
    d12 = jnp.where(good2, -_fast_recip(s1 * s2 * (s1 + s2)),
                    (g1 - g2) * _fast_recip(jnp.maximum(lam1 - lam2, 1e-10)))
    d23 = jnp.where(good3, -_fast_recip(s2 * s3 * (s2 + s3)),
                    jnp.where(good2,
                              (g2 - g3) * _fast_recip(jnp.maximum(lam2 - lam3, 1e-10)),
                              0.0))
    d123 = jnp.where(good3,
                     (s1 + s2 + s3) *
                     _fast_recip((s1 + s2) * (s2 + s3) * (s1 + s3) * s1 * s2 * s3),
                     (d12 - d23) * _fast_recip(jnp.maximum(lam1 - lam3, 1e-10)))

    # ---- covar^{-1/2} = g1*I + d12*(A-lam1 I) + d123*(A-lam1 I)(A-lam2 I) ----
    m00, m11, m22 = a00 - lam1, a11 - lam1, a22 - lam1
    n00, n11, n22 = a00 - lam2, a11 - lam2, a22 - lam2
    p00 = m00 * n00 + a01 * a01 + a02 * a02
    p01 = m00 * a01 + a01 * n11 + a02 * a12
    p02 = m00 * a02 + a01 * a12 + a02 * n22
    p11 = a01 * a01 + m11 * n11 + a12 * a12
    p12 = a01 * a02 + m11 * a12 + a12 * n22
    p22 = a02 * a02 + a12 * a12 + m22 * n22
    f00 = g1 + d12 * m00 + d123 * p00
    f01 = d12 * a01 + d123 * p01
    f02 = d12 * a02 + d123 * p02
    f11 = g1 + d12 * m11 + d123 * p11
    f12 = d12 * a12 + d123 * p12
    f22 = g1 + d12 * m22 + d123 * p22

    # mean-centering folded into the output: y_i = sum_j f_ij*x_j - b_i
    b0 = f00 * m0 + f01 * m1 + f02 * m2
    b1 = f01 * m0 + f11 * m1 + f12 * m2
    b2 = f02 * m0 + f12 * m1 + f22 * m2

    # ---- pack the 9 output scalars, transpose back to nodes-on-sublanes ----
    rows = [f00, f01, f02, f11, f12, f22, b0, b1, b2]
    ridx = lax.broadcasted_iota(jnp.int32, (128, 1), 0)
    cpk = jnp.zeros((128, tn), jnp.float32)
    for i, rr in enumerate(rows):
        cpk = jnp.where(ridx == i, rr, cpk)
    cb = jnp.transpose(cpk)                             # (tn, 128)

    def bc(k):                                          # explicit broadcast, reused
        return jnp.broadcast_to(cb[:, k:k + 1], (tn, dp))

    F00, F01, F02 = bc(0), bc(1), bc(2)
    F11, F12, F22 = bc(3), bc(4), bc(5)
    B0, B1, B2 = bc(6), bc(7), bc(8)

    # ---- wide FMAs + weight scale (f32 math, cast only at the store) ----
    w = w_ref[...].astype(jnp.float32)                  # (1, dp)
    od = o_ref.dtype
    y0 = (F00 * x0 + F01 * x1 + F02 * x2 - B0) * w
    y1 = (F01 * x0 + F11 * x1 + F12 * x2 - B1) * w
    y2 = (F02 * x0 + F12 * x1 + F22 * x2 - B2) * w
    o_ref[:, 0 * dp:1 * dp] = y0.astype(od)             # lane-aligned full stores
    o_ref[:, 1 * dp:2 * dp] = y1.astype(od)
    o_ref[:, 2 * dp:3 * dp] = y2.astype(od)


def _vmem_capacity():
    try:
        return int(pltpu.get_tpu_info().vmem_capacity_bytes)
    except Exception:
        return 64 << 20                                  # conservative (v7x per-TC)


def _pick_block_nodes(n, d_pad):
    vmem = _vmem_capacity()
    row_bytes = 3 * d_pad * 4
    # Keep ~8x the input tile (double-buffered I/O + f32 intermediates) well
    # inside VMEM (uses <= ~1/6 of physical capacity).
    tn = (vmem // 6) // (8 * row_bytes)
    tn = max(128, min(2048, (tn // 128) * 128))
    # Megacore / pipelining: aim for >= ~4 grid steps when N allows.
    quarter = max(128, (n // (4 * 128)) * 128)
    tn = min(tn, quarter)
    n_pad = ((n + 127) // 128) * 128
    return min(tn, n_pad)


def equivariant_layer_norm(x, weight, eps=EPS, block_nodes=None):
    """x: (N, 3, D); weight: (D,).  Returns (N, 3, D) in weight.dtype."""
    N, three, D = x.shape
    assert three == 3, "vector dimension must be 3 (reg matrix is diag([1,2,3]))"
    assert weight.shape == (D,)

    # Pad the hidden width to a multiple of 128 so component slices/stores are
    # lane-aligned.  Raw-moment math divides by the true D, so zero padding is
    # exact; padded weight lanes are zero and are sliced off at the end.
    dp = ((D + 127) // 128) * 128
    if dp != D:
        # TODO(synk): non-multiple-of-128 widths take a pad/slice HBM copy; the
        # fast path assumes D % 128 == 0.
        x_in = jnp.pad(x, ((0, 0), (0, 0), (0, dp - D)))
        w_in = jnp.pad(weight, (0, dp - D))
    else:
        x_in, w_in = x, weight

    xf = x_in.reshape(N, 3 * dp)                        # free reshape, lane-dense slab
    w2 = w_in.reshape(1, dp)

    if block_nodes is None:
        tn = _pick_block_nodes(N, dp)
    else:
        tn = max(128, (int(block_nodes) // 128) * 128)

    blk_bytes = tn * 3 * dp * 4
    vmem_phys = _vmem_capacity()
    vmem_limit = int(min(vmem_phys * 3 // 4, max(64 << 20, 16 * blk_bytes)))

    cost = pl.CostEstimate(
        flops=int(N * (40 * 3 * dp + 300)),
        transcendentals=int(N * 12),
        bytes_accessed=int(xf.size * xf.dtype.itemsize
                           + xf.size * jnp.dtype(weight.dtype).itemsize),
    )

    out = pl.pallas_call(
        partial(_eqln_kernel, eps=float(eps), d_true=D),
        out_shape=jax.ShapeDtypeStruct((N, 3 * dp), weight.dtype),
        grid=(pl.cdiv(N, tn),),
        in_specs=[pl.BlockSpec((tn, 3 * dp), lambda i: (i, 0)),
                  pl.BlockSpec((1, dp), lambda i: (0, 0))],
        out_specs=pl.BlockSpec((tn, 3 * dp), lambda i: (i, 0)),
        compiler_params=pltpu.CompilerParams(
            dimension_semantics=("parallel",),
            vmem_limit_bytes=vmem_limit),
        cost_estimate=cost,
    )(xf, w2)

    out = out.reshape(N, 3, dp)
    if dp != D:
        out = out[..., :D]
    return out


def _reference(x, weight, eps=EPS):
    """Pure-JAX (f32) analogue of the PyTorch module (which upcasts to f64)."""
    x = x.astype(jnp.float32)
    x = x - jnp.mean(x, axis=-1, keepdims=True)
    D = x.shape[-1]
    reg = jnp.diag(jnp.array([1.0, 2.0, 3.0], jnp.float32))[None]
    cov = x @ jnp.swapaxes(x, -1, -2) / D + eps * reg
    s, v = jnp.linalg.eigh(cov)
    good = s > jnp.max(s, -1, keepdims=True) * s.shape[-1] * jnp.finfo(s.dtype).eps
    inv = jnp.where(good, 1.0 / jnp.sqrt(s + eps), 0.0)
    sqi = jnp.einsum("nij,nj,nkj->nik", v, inv, v)
    return (sqi @ x).astype(weight.dtype) * weight.reshape(1, 1, D)


if __name__ == "__main__":
    key = jax.random.PRNGKey(0)
    k1, k2, k3, k4 = jax.random.split(key, 4)

    # Case 1: lane-aligned fast path, multi-step grid (N=300 -> tn=128, grid=(3,)).
    N1, D1 = 300, 128
    x1 = jax.random.normal(k1, (N1, 3, D1), dtype=jnp.float32)
    w1 = (1.0 + 0.05 * jax.random.normal(k2, (D1,))).astype(jnp.float32)
    out1 = jax.block_until_ready(equivariant_layer_norm(x1, w1))
    ref1 = _reference(x1, w1)
    assert out1.shape == (N1, 3, D1) and out1.dtype == w1.dtype
    assert jnp.allclose(out1, ref1, rtol=2e-3, atol=2e-3), \
        float(jnp.max(jnp.abs(out1 - ref1)))

    # Case 2: D not a multiple of 128 (padded path), small N.
    N2, D2 = 48, 64
    x2 = jax.random.normal(k3, (N2, 3, D2), dtype=jnp.float32)
    w2 = (1.0 + 0.05 * jax.random.normal(k4, (D2,))).astype(jnp.float32)
    out2 = jax.block_until_ready(equivariant_layer_norm(x2, w2))
    ref2 = _reference(x2, w2)
    assert out2.shape == (N2, 3, D2) and out2.dtype == w2.dtype
    assert jnp.allclose(out2, ref2, rtol=2e-3, atol=2e-3), \
        float(jnp.max(jnp.abs(out2 - ref2)))

    print("KERNEL_OK")
</pallas_src>

<mosaic_0001>
module attributes {stable_mosaic.version = 11 : i64} {
  func.func @_eqln_kernel(%arg0: i32, %arg1: memref<128x384xf32, #tpu.memory_space<vmem>>, %arg2: memref<1x128xf32, #tpu.memory_space<vmem>>, %arg3: memref<128x384xf32, #tpu.memory_space<vmem>>) attributes {dimension_semantics = [#tpu.dimension_semantics<parallel>], iteration_bounds = array<i64: 3>, scalar_prefetch = 0 : i64, scratch_operands = 0 : i64, tpu.core_type = #tpu.core_type<tc>, window_params = [{transform_indices = @transform_0, window_bounds = array<i64: 128, 384>}, {pipeline_mode = #tpu.pipeline_mode<synchronous>, transform_indices = @transform_1, window_bounds = array<i64: 1, 128>}, {transform_indices = @transform_2, window_bounds = array<i64: 128, 384>}]} {
    %c0 = arith.constant 0 : index
    %c0_0 = arith.constant 0 : index
    %0 = vector.load %arg1[%c0, %c0_0] : memref<128x384xf32, #tpu.memory_space<vmem>>, vector<128x128xf32>
    %c0_1 = arith.constant 0 : index
    %c128 = arith.constant 128 : index
    %1 = vector.load %arg1[%c0_1, %c128] : memref<128x384xf32, #tpu.memory_space<vmem>>, vector<128x128xf32>
    %c0_2 = arith.constant 0 : index
    %c256 = arith.constant 256 : index
    %2 = vector.load %arg1[%c0_2, %c256] : memref<128x384xf32, #tpu.memory_space<vmem>>, vector<128x128xf32>
    %3 = arith.mulf %0, %0 : vector<128x128xf32>
    %cst = arith.constant dense<0.000000e+00> : vector<128xf32>
    %4 = vector.multi_reduction <add>, %3, %cst [1] : vector<128x128xf32> to vector<128xf32>
    %5 = vector.shape_cast %4 : vector<128xf32> to vector<128x1xf32>
    %cst_3 = arith.constant 7.812500e-03 : f32
    %6 = vector.broadcast %cst_3 : f32 to vector<128x1xf32>
    %7 = arith.mulf %5, %6 : vector<128x1xf32>
    %8 = arith.mulf %1, %1 : vector<128x128xf32>
    %cst_4 = arith.constant dense<0.000000e+00> : vector<128xf32>
    %9 = vector.multi_reduction <add>, %8, %cst_4 [1] : vector<128x128xf32> to vector<128xf32>
    %10 = vector.shape_cast %9 : vector<128xf32> to vector<128x1xf32>
    %cst_5 = arith.constant 7.812500e-03 : f32
    %11 = vector.broadcast %cst_5 : f32 to vector<128x1xf32>
    %12 = arith.mulf %10, %11 : vector<128x1xf32>
    %13 = arith.mulf %2, %2 : vector<128x128xf32>
    %cst_6 = arith.constant dense<0.000000e+00> : vector<128xf32>
    %14 = vector.multi_reduction <add>, %13, %cst_6 [1] : vector<128x128xf32> to vector<128xf32>
    %15 = vector.shape_cast %14 : vector<128xf32> to vector<128x1xf32>
    %cst_7 = arith.constant 7.812500e-03 : f32
    %16 = vector.broadcast %cst_7 : f32 to vector<128x1xf32>
    %17 = arith.mulf %15, %16 : vector<128x1xf32>
    %18 = arith.mulf %0, %1 : vector<128x128xf32>
    %cst_8 = arith.constant dense<0.000000e+00> : vector<128xf32>
    %19 = vector.multi_reduction <add>, %18, %cst_8 [1] : vector<128x128xf32> to vector<128xf32>
    %20 = vector.shape_cast %19 : vector<128xf32> to vector<128x1xf32>
    %cst_9 = arith.constant 7.812500e-03 : f32
    %21 = vector.broadcast %cst_9 : f32 to vector<128x1xf32>
    %22 = arith.mulf %20, %21 : vector<128x1xf32>
    %23 = arith.mulf %0, %2 : vector<128x128xf32>
    %cst_10 = arith.constant dense<0.000000e+00> : vector<128xf32>
    %24 = vector.multi_reduction <add>, %23, %cst_10 [1] : vector<128x128xf32> to vector<128xf32>
    %25 = vector.shape_cast %24 : vector<128xf32> to vector<128x1xf32>
    %cst_11 = arith.constant 7.812500e-03 : f32
    %26 = vector.broadcast %cst_11 : f32 to vector<128x1xf32>
    %27 = arith.mulf %25, %26 : vector<128x1xf32>
    %28 = arith.mulf %1, %2 : vector<128x128xf32>
    %cst_12 = arith.constant dense<0.000000e+00> : vector<128xf32>
    %29 = vector.multi_reduction <add>, %28, %cst_12 [1] : vector<128x128xf32> to vector<128xf32>
    %30 = vector.shape_cast %29 : vector<128xf32> to vector<128x1xf32>
    %cst_13 = arith.constant 7.812500e-03 : f32
    %31 = vector.broadcast %cst_13 : f32 to vector<128x1xf32>
    %32 = arith.mulf %30, %31 : vector<128x1xf32>
    %cst_14 = arith.constant dense<0.000000e+00> : vector<128xf32>
    %33 = vector.multi_reduction <add>, %0, %cst_14 [1] : vector<128x128xf32> to vector<128xf32>
    %34 = vector.shape_cast %33 : vector<128xf32> to vector<128x1xf32>
    %cst_15 = arith.constant 7.812500e-03 : f32
    %35 = vector.broadcast %cst_15 : f32 to vector<128x1xf32>
    %36 = arith.mulf %34, %35 : vector<128x1xf32>
    %cst_16 = arith.constant dense<0.000000e+00> : vector<128xf32>
    %37 = vector.multi_reduction <add>, %1, %cst_16 [1] : vector<128x128xf32> to vector<128xf32>
    %38 = vector.shape_cast %37 : vector<128xf32> to vector<128x1xf32>
    %cst_17 = arith.constant 7.812500e-03 : f32
    %39 = vector.broadcast %cst_17 : f32 to vector<128x1xf32>
    %40 = arith.mulf %38, %39 : vector<128x1xf32>
    %cst_18 = arith.constant dense<0.000000e+00> : vector<128xf32>
    %41 = vector.multi_reduction <add>, %2, %cst_18 [1] : vector<128x128xf32> to vector<128xf32>
    %42 = vector.shape_cast %41 : vector<128xf32> to vector<128x1xf32>
    %cst_19 = arith.constant 7.812500e-03 : f32
    %43 = vector.broadcast %cst_19 : f32 to vector<128x1xf32>
    %44 = arith.mulf %42, %43 : vector<128x1xf32>
    %45 = tpu.iota {dimensions = array<i32: 1>} : vector<1x128xi32>
    %cst_20 = arith.constant 0.000000e+00 : f32
    %46 = vector.broadcast %cst_20 : f32 to vector<128x128xf32>
    %c0_i32 = arith.constant 0 : i32
    %47 = vector.broadcast %c0_i32 : i32 to vector<1x128xi32>
    %48 = arith.cmpi eq, %45, %47 : vector<1x128xi32>
    %49 = vector.shape_cast %48 : vector<1x128xi1> to vector<1x128xi1>
    %50 = vector.broadcast %49 : vector<1x128xi1> to vector<128x128xi1>
    %51 = vector.shape_cast %7 : vector<128x1xf32> to vector<128x1xf32>
    %52 = vector.broadcast %51 : vector<128x1xf32> to vector<128x128xf32>
    %53 = arith.select %50, %52, %46 : vector<128x128xi1>, vector<128x128xf32>
    %c1_i32 = arith.constant 1 : i32
    %54 = vector.broadcast %c1_i32 : i32 to vector<1x128xi32>
    %55 = arith.cmpi eq, %45, %54 : vector<1x128xi32>
    %56 = vector.shape_cast %55 : vector<1x128xi1> to vector<1x128xi1>
    %57 = vector.broadcast %56 : vector<1x128xi1> to vector<128x128xi1>
    %58 = vector.shape_cast %12 : vector<128x1xf32> to vector<128x1xf32>
    %59 = vector.broadcast %58 : vector<128x1xf32> to vector<128x128xf32>
    %60 = arith.select %57, %59, %53 : vector<128x128xi1>, vector<128x128xf32>
    %c2_i32 = arith.constant 2 : i32
    %61 = vector.broadcast %c2_i32 : i32 to vector<1x128xi32>
    %62 = arith.cmpi eq, %45, %61 : vector<1x128xi32>
    %63 = vector.shape_cast %62 : vector<1x128xi1> to vector<1x128xi1>
    %64 = vector.broadcast %63 : vector<1x128xi1> to vector<128x128xi1>
    %65 = vector.shape_cast %17 : vector<128x1xf32> to vector<128x1xf32>
    %66 = vector.broadcast %65 : vector<128x1xf32> to vector<128x128xf32>
    %67 = arith.select %64, %66, %60 : vector<128x128xi1>, vector<128x128xf32>
    %c3_i32 = arith.constant 3 : i32
    %68 = vector.broadcast %c3_i32 : i32 to vector<1x128xi32>
    %69 = arith.cmpi eq, %45, %68 : vector<1x128xi32>
    %70 = vector.shape_cast %69 : vector<1x128xi1> to vector<1x128xi1>
    %71 = vector.broadcast %70 : vector<1x128xi1> to vector<128x128xi1>
    %72 = vector.shape_cast %22 : vector<128x1xf32> to vector<128x1xf32>
    %73 = vector.broadcast %72 : vector<128x1xf32> to vector<128x128xf32>
    %74 = arith.select %71, %73, %67 : vector<128x128xi1>, vector<128x128xf32>
    %c4_i32 = arith.constant 4 : i32
    %75 = vector.broadcast %c4_i32 : i32 to vector<1x128xi32>
    %76 = arith.cmpi eq, %45, %75 : vector<1x128xi32>
    %77 = vector.shape_cast %76 : vector<1x128xi1> to vector<1x128xi1>
    %78 = vector.broadcast %77 : vector<1x128xi1> to vector<128x128xi1>
    %79 = vector.shape_cast %27 : vector<128x1xf32> to vector<128x1xf32>
    %80 = vector.broadcast %79 : vector<128x1xf32> to vector<128x128xf32>
    %81 = arith.select %78, %80, %74 : vector<128x128xi1>, vector<128x128xf32>
    %c5_i32 = arith.constant 5 : i32
    %82 = vector.broadcast %c5_i32 : i32 to vector<1x128xi32>
    %83 = arith.cmpi eq, %45, %82 : vector<1x128xi32>
    %84 = vector.shape_cast %83 : vector<1x128xi1> to vector<1x128xi1>
    %85 = vector.broadcast %84 : vector<1x128xi1> to vector<128x128xi1>
    %86 = vector.shape_cast %32 : vector<128x1xf32> to vector<128x1xf32>
    %87 = vector.broadcast %86 : vector<128x1xf32> to vector<128x128xf32>
    %88 = arith.select %85, %87, %81 : vector<128x128xi1>, vector<128x128xf32>
    %c6_i32 = arith.constant 6 : i32
    %89 = vector.broadcast %c6_i32 : i32 to vector<1x128xi32>
    %90 = arith.cmpi eq, %45, %89 : vector<1x128xi32>
    %91 = vector.shape_cast %90 : vector<1x128xi1> to vector<1x128xi1>
    %92 = vector.broadcast %91 : vector<1x128xi1> to vector<128x128xi1>
    %93 = vector.shape_cast %36 : vector<128x1xf32> to vector<128x1xf32>
    %94 = vector.broadcast %93 : vector<128x1xf32> to vector<128x128xf32>
    %95 = arith.select %92, %94, %88 : vector<128x128xi1>, vector<128x128xf32>
    %c7_i32 = arith.constant 7 : i32
    %96 = vector.broadcast %c7_i32 : i32 to vector<1x128xi32>
    %97 = arith.cmpi eq, %45, %96 : vector<1x128xi32>
    %98 = vector.shape_cast %97 : vector<1x128xi1> to vector<1x128xi1>
    %99 = vector.broadcast %98 : vector<1x128xi1> to vector<128x128xi1>
    %100 = vector.shape_cast %40 : vector<128x1xf32> to vector<128x1xf32>
    %101 = vector.broadcast %100 : vector<128x1xf32> to vector<128x128xf32>
    %102 = arith.select %99, %101, %95 : vector<128x128xi1>, vector<128x128xf32>
    %c8_i32 = arith.constant 8 : i32
    %103 = vector.broadcast %c8_i32 : i32 to vector<1x128xi32>
    %104 = arith.cmpi eq, %45, %103 : vector<1x128xi32>
    %105 = vector.shape_cast %104 : vector<1x128xi1> to vector<1x128xi1>
    %106 = vector.broadcast %105 : vector<1x128xi1> to vector<128x128xi1>
    %107 = vector.shape_cast %44 : vector<128x1xf32> to vector<128x1xf32>
    %108 = vector.broadcast %107 : vector<128x1xf32> to vector<128x128xf32>
    %109 = arith.select %106, %108, %102 : vector<128x128xi1>, vector<128x128xf32>
    %110 = tpu.transpose %109, [1, 0] : vector<128x128xf32> -> vector<128x128xf32>
    %111 = vector.extract_strided_slice %110 {offsets = [0, 0], sizes = [1, 128], strides = [1, 1]} : vector<128x128xf32> to vector<1x128xf32>
    %112 = vector.extract_strided_slice %110 {offsets = [1, 0], sizes = [1, 128], strides = [1, 1]} : vector<128x128xf32> to vector<1x128xf32>
    %113 = vector.extract_strided_slice %110 {offsets = [2, 0], sizes = [1, 128], strides = [1, 1]} : vector<128x128xf32> to vector<1x128xf32>
    %114 = vector.extract_strided_slice %110 {offsets = [3, 0], sizes = [1, 128], strides = [1, 1]} : vector<128x128xf32> to vector<1x128xf32>
    %115 = vector.extract_strided_slice %110 {offsets = [4, 0], sizes = [1, 128], strides = [1, 1]} : vector<128x128xf32> to vector<1x128xf32>
    %116 = vector.extract_strided_slice %110 {offsets = [5, 0], sizes = [1, 128], strides = [1, 1]} : vector<128x128xf32> to vector<1x128xf32>
    %117 = vector.extract_strided_slice %110 {offsets = [6, 0], sizes = [1, 128], strides = [1, 1]} : vector<128x128xf32> to vector<1x128xf32>
    %118 = vector.extract_strided_slice %110 {offsets = [7, 0], sizes = [1, 128], strides = [1, 1]} : vector<128x128xf32> to vector<1x128xf32>
    %119 = vector.extract_strided_slice %110 {offsets = [8, 0], sizes = [1, 128], strides = [1, 1]} : vector<128x128xf32> to vector<1x128xf32>
    %120 = arith.mulf %117, %117 : vector<1x128xf32>
    %121 = arith.subf %111, %120 : vector<1x128xf32>
    %cst_21 = arith.constant 9.99999974E-6 : f32
    %122 = vector.broadcast %cst_21 : f32 to vector<1x128xf32>
    %123 = arith.addf %121, %122 : vector<1x128xf32>
    %124 = arith.mulf %118, %118 : vector<1x128xf32>
    %125 = arith.subf %112, %124 : vector<1x128xf32>
    %cst_22 = arith.constant 2.000000e-05 : f32
    %126 = vector.broadcast %cst_22 : f32 to vector<1x128xf32>
    %127 = arith.addf %125, %126 : vector<1x128xf32>
    %128 = arith.mulf %119, %119 : vector<1x128xf32>
    %129 = arith.subf %113, %128 : vector<1x128xf32>
    %cst_23 = arith.constant 3.000000e-05 : f32
    %130 = vector.broadcast %cst_23 : f32 to vector<1x128xf32>
    %131 = arith.addf %129, %130 : vector<1x128xf32>
    %132 = arith.mulf %117, %118 : vector<1x128xf32>
    %133 = arith.subf %114, %132 : vector<1x128xf32>
    %134 = arith.mulf %117, %119 : vector<1x128xf32>
    %135 = arith.subf %115, %134 : vector<1x128xf32>
    %136 = arith.mulf %118, %119 : vector<1x128xf32>
    %137 = arith.subf %116, %136 : vector<1x128xf32>
    %138 = arith.addf %123, %127 : vector<1x128xf32>
    %139 = arith.addf %138, %131 : vector<1x128xf32>
    %cst_24 = arith.constant 0.333333343 : f32
    %140 = vector.broadcast %cst_24 : f32 to vector<1x128xf32>
    %141 = arith.mulf %139, %140 : vector<1x128xf32>
    %142 = arith.subf %123, %141 : vector<1x128xf32>
    %143 = arith.subf %127, %141 : vector<1x128xf32>
    %144 = arith.subf %131, %141 : vector<1x128xf32>
    %145 = arith.mulf %142, %142 : vector<1x128xf32>
    %146 = arith.mulf %143, %143 : vector<1x128xf32>
    %147 = arith.addf %145, %146 : vector<1x128xf32>
    %148 = arith.mulf %144, %144 : vector<1x128xf32>
    %149 = arith.addf %147, %148 : vector<1x128xf32>
    %150 = arith.mulf %133, %133 : vector<1x128xf32>
    %151 = arith.mulf %135, %135 : vector<1x128xf32>
    %152 = arith.addf %150, %151 : vector<1x128xf32>
    %153 = arith.mulf %137, %137 : vector<1x128xf32>
    %154 = arith.addf %152, %153 : vector<1x128xf32>
    %cst_25 = arith.constant 2.000000e+00 : f32
    %155 = vector.broadcast %cst_25 : f32 to vector<1x128xf32>
    %156 = arith.mulf %155, %154 : vector<1x128xf32>
    %157 = arith.addf %149, %156 : vector<1x128xf32>
    %cst_26 = arith.constant 0.166666672 : f32
    %158 = vector.broadcast %cst_26 : f32 to vector<1x128xf32>
    %159 = arith.mulf %157, %158 : vector<1x128xf32>
    %160 = math.sqrt %159 : vector<1x128xf32>
    %cst_27 = arith.constant 9.99999996E-13 : f32
    %161 = vector.broadcast %cst_27 : f32 to vector<1x128xf32>
    %162 = arith.maximumf %160, %161 : vector<1x128xf32>
    %163 = tpu.reciprocal %162 {approx = true} : vector<1x128xf32> -> vector<1x128xf32>
    %164 = arith.mulf %162, %163 : vector<1x128xf32>
    %cst_28 = arith.constant 2.000000e+00 : f32
    %165 = vector.broadcast %cst_28 : f32 to vector<1x128xf32>
    %166 = arith.subf %165, %164 : vector<1x128xf32>
    %167 = arith.mulf %163, %166 : vector<1x128xf32>
    %168 = arith.mulf %143, %144 : vector<1x128xf32>
    %169 = arith.mulf %137, %137 : vector<1x128xf32>
    %170 = arith.subf %168, %169 : vector<1x128xf32>
    %171 = arith.mulf %142, %170 : vector<1x128xf32>
    %172 = arith.mulf %133, %144 : vector<1x128xf32>
    %173 = arith.mulf %137, %135 : vector<1x128xf32>
    %174 = arith.subf %172, %173 : vector<1x128xf32>
    %175 = arith.mulf %133, %174 : vector<1x128xf32>
    %176 = arith.subf %171, %175 : vector<1x128xf32>
    %177 = arith.mulf %133, %137 : vector<1x128xf32>
    %178 = arith.mulf %143, %135 : vector<1x128xf32>
    %179 = arith.subf %177, %178 : vector<1x128xf32>
    %180 = arith.mulf %135, %179 : vector<1x128xf32>
    %181 = arith.addf %176, %180 : vector<1x128xf32>
    %cst_29 = arith.constant 5.000000e-01 : f32
    %182 = vector.broadcast %cst_29 : f32 to vector<1x128xf32>
    %183 = arith.mulf %182, %181 : vector<1x128xf32>
    %184 = arith.mulf %183, %167 : vector<1x128xf32>
    %185 = arith.mulf %184, %167 : vector<1x128xf32>
    %186 = arith.mulf %185, %167 : vector<1x128xf32>
    %cst_30 = arith.constant 1.000000e-22 : f32
    %187 = vector.broadcast %cst_30 : f32 to vector<1x128xf32>
    %188 = arith.cmpf ogt, %157, %187 : vector<1x128xf32>
    %cst_31 = arith.constant 1.000000e+00 : f32
    %189 = vector.broadcast %cst_31 : f32 to vector<1x128xf32>
    %190 = arith.select %188, %186, %189 : vector<1x128xi1>, vector<1x128xf32>
    %cst_32 = arith.constant -1.000000e+00 : f32
    %cst_33 = arith.constant 1.000000e+00 : f32
    %191 = vector.broadcast %cst_32 : f32 to vector<1x128xf32>
    %192 = arith.maximumf %191, %190 : vector<1x128xf32>
    %193 = vector.broadcast %cst_33 : f32 to vector<1x128xf32>
    %194 = arith.minimumf %193, %192 : vector<1x128xf32>
    %195 = math.absf %194 : vector<1x128xf32>
    %cst_34 = arith.constant -0.0012624911 : f32
    %196 = vector.broadcast %cst_34 : f32 to vector<1x128xf32>
    %197 = arith.mulf %196, %195 : vector<1x128xf32>
    %cst_35 = arith.constant 6.670090e-03 : f32
    %198 = vector.broadcast %cst_35 : f32 to vector<1x128xf32>
    %199 = arith.addf %197, %198 : vector<1x128xf32>
    %200 = arith.mulf %199, %195 : vector<1x128xf32>
    %cst_36 = arith.constant -0.0170881264 : f32
    %201 = vector.broadcast %cst_36 : f32 to vector<1x128xf32>
    %202 = arith.addf %200, %201 : vector<1x128xf32>
    %203 = arith.mulf %202, %195 : vector<1x128xf32>
    %cst_37 = arith.constant 0.0308918804 : f32
    %204 = vector.broadcast %cst_37 : f32 to vector<1x128xf32>
    %205 = arith.addf %203, %204 : vector<1x128xf32>
    %206 = arith.mulf %205, %195 : vector<1x128xf32>
    %cst_38 = arith.constant -0.0501743034 : f32
    %207 = vector.broadcast %cst_38 : f32 to vector<1x128xf32>
    %208 = arith.addf %206, %207 : vector<1x128xf32>
    %209 = arith.mulf %208, %195 : vector<1x128xf32>
    %cst_39 = arith.constant 0.0889789909 : f32
    %210 = vector.broadcast %cst_39 : f32 to vector<1x128xf32>
    %211 = arith.addf %209, %210 : vector<1x128xf32>
    %212 = arith.mulf %211, %195 : vector<1x128xf32>
    %cst_40 = arith.constant -0.214598805 : f32
    %213 = vector.broadcast %cst_40 : f32 to vector<1x128xf32>
    %214 = arith.addf %212, %213 : vector<1x128xf32>
    %215 = arith.mulf %214, %195 : vector<1x128xf32>
    %cst_41 = arith.constant 1.57079625 : f32
    %216 = vector.broadcast %cst_41 : f32 to vector<1x128xf32>
    %217 = arith.addf %215, %216 : vector<1x128xf32>
    %cst_42 = arith.constant 1.000000e+00 : f32
    %218 = vector.broadcast %cst_42 : f32 to vector<1x128xf32>
    %219 = arith.subf %218, %195 : vector<1x128xf32>
    %cst_43 = arith.constant 0.000000e+00 : f32
    %220 = vector.broadcast %cst_43 : f32 to vector<1x128xf32>
    %221 = arith.maximumf %219, %220 : vector<1x128xf32>
    %222 = math.sqrt %221 : vector<1x128xf32>
    %223 = arith.mulf %222, %217 : vector<1x128xf32>
    %cst_44 = arith.constant 0.000000e+00 : f32
    %224 = vector.broadcast %cst_44 : f32 to vector<1x128xf32>
    %225 = arith.cmpf oge, %194, %224 : vector<1x128xf32>
    %cst_45 = arith.constant 3.14159274 : f32
    %226 = vector.broadcast %cst_45 : f32 to vector<1x128xf32>
    %227 = arith.subf %226, %223 : vector<1x128xf32>
    %228 = arith.select %225, %223, %227 : vector<1x128xi1>, vector<1x128xf32>
    %cst_46 = arith.constant 0.333333343 : f32
    %229 = vector.broadcast %cst_46 : f32 to vector<1x128xf32>
    %230 = arith.mulf %228, %229 : vector<1x128xf32>
    %231 = arith.mulf %230, %230 : vector<1x128xf32>
    %cst_47 = arith.constant 2.48015876E-5 : f32
    %232 = vector.broadcast %cst_47 : f32 to vector<1x128xf32>
    %233 = arith.mulf %231, %232 : vector<1x128xf32>
    %cst_48 = arith.constant -0.00138888892 : f32
    %234 = vector.broadcast %cst_48 : f32 to vector<1x128xf32>
    %235 = arith.addf %234, %233 : vector<1x128xf32>
    %236 = arith.mulf %231, %235 : vector<1x128xf32>
    %cst_49 = arith.constant 0.0416666679 : f32
    %237 = vector.broadcast %cst_49 : f32 to vector<1x128xf32>
    %238 = arith.addf %237, %236 : vector<1x128xf32>
    %239 = arith.mulf %231, %238 : vector<1x128xf32>
    %cst_50 = arith.constant -5.000000e-01 : f32
    %240 = vector.broadcast %cst_50 : f32 to vector<1x128xf32>
    %241 = arith.addf %240, %239 : vector<1x128xf32>
    %242 = arith.mulf %231, %241 : vector<1x128xf32>
    %cst_51 = arith.constant 1.000000e+00 : f32
    %243 = vector.broadcast %cst_51 : f32 to vector<1x128xf32>
    %244 = arith.addf %243, %242 : vector<1x128xf32>
    %245 = arith.mulf %230, %230 : vector<1x128xf32>
    %cst_52 = arith.constant 2.75573188E-6 : f32
    %246 = vector.broadcast %cst_52 : f32 to vector<1x128xf32>
    %247 = arith.mulf %245, %246 : vector<1x128xf32>
    %cst_53 = arith.constant -1.98412701E-4 : f32
    %248 = vector.broadcast %cst_53 : f32 to vector<1x128xf32>
    %249 = arith.addf %248, %247 : vector<1x128xf32>
    %250 = arith.mulf %245, %249 : vector<1x128xf32>
    %cst_54 = arith.constant 0.00833333377 : f32
    %251 = vector.broadcast %cst_54 : f32 to vector<1x128xf32>
    %252 = arith.addf %251, %250 : vector<1x128xf32>
    %253 = arith.mulf %245, %252 : vector<1x128xf32>
    %cst_55 = arith.constant -0.166666672 : f32
    %254 = vector.broadcast %cst_55 : f32 to vector<1x128xf32>
    %255 = arith.addf %254, %253 : vector<1x128xf32>
    %256 = arith.mulf %245, %255 : vector<1x128xf32>
    %cst_56 = arith.constant 1.000000e+00 : f32
    %257 = vector.broadcast %cst_56 : f32 to vector<1x128xf32>
    %258 = arith.addf %257, %256 : vector<1x128xf32>
    %259 = arith.mulf %230, %258 : vector<1x128xf32>
    %cst_57 = arith.constant 2.000000e+00 : f32
    %260 = vector.broadcast %cst_57 : f32 to vector<1x128xf32>
    %261 = arith.mulf %260, %160 : vector<1x128xf32>
    %262 = arith.mulf %261, %244 : vector<1x128xf32>
    %263 = arith.addf %141, %262 : vector<1x128xf32>
    %cst_58 = arith.constant 1.73205078 : f32
    %264 = vector.broadcast %cst_58 : f32 to vector<1x128xf32>
    %265 = arith.mulf %264, %259 : vector<1x128xf32>
    %266 = arith.addf %244, %265 : vector<1x128xf32>
    %267 = arith.mulf %160, %266 : vector<1x128xf32>
    %268 = arith.subf %141, %267 : vector<1x128xf32>
    %cst_59 = arith.constant 3.000000e+00 : f32
    %269 = vector.broadcast %cst_59 : f32 to vector<1x128xf32>
    %270 = arith.mulf %269, %141 : vector<1x128xf32>
    %271 = arith.subf %270, %263 : vector<1x128xf32>
    %272 = arith.subf %271, %268 : vector<1x128xf32>
    %cst_60 = arith.constant 3.57627869E-7 : f32
    %273 = vector.broadcast %cst_60 : f32 to vector<1x128xf32>
    %274 = arith.mulf %263, %273 : vector<1x128xf32>
    %cst_61 = arith.constant 0.000000e+00 : f32
    %275 = vector.broadcast %cst_61 : f32 to vector<1x128xf32>
    %276 = arith.cmpf ogt, %263, %275 : vector<1x128xf32>
    %277 = arith.cmpf ogt, %272, %274 : vector<1x128xf32>
    %278 = arith.cmpf ogt, %268, %274 : vector<1x128xf32>
    %cst_62 = arith.constant 9.99999974E-6 : f32
    %279 = vector.broadcast %cst_62 : f32 to vector<1x128xf32>
    %280 = arith.addf %263, %279 : vector<1x128xf32>
    %cst_63 = arith.constant 1.000000e-30 : f32
    %281 = vector.broadcast %cst_63 : f32 to vector<1x128xf32>
    %282 = arith.maximumf %280, %281 : vector<1x128xf32>
    %cst_64 = arith.constant 9.99999974E-6 : f32
    %283 = vector.broadcast %cst_64 : f32 to vector<1x128xf32>
    %284 = arith.addf %272, %283 : vector<1x128xf32>
    %cst_65 = arith.constant 1.000000e-30 : f32
    %285 = vector.broadcast %cst_65 : f32 to vector<1x128xf32>
    %286 = arith.maximumf %284, %285 : vector<1x128xf32>
    %cst_66 = arith.constant 9.99999974E-6 : f32
    %287 = vector.broadcast %cst_66 : f32 to vector<1x128xf32>
    %288 = arith.addf %268, %287 : vector<1x128xf32>
    %cst_67 = arith.constant 1.000000e-30 : f32
    %289 = vector.broadcast %cst_67 : f32 to vector<1x128xf32>
    %290 = arith.maximumf %288, %289 : vector<1x128xf32>
    %291 = math.rsqrt %282 : vector<1x128xf32>
    %292 = math.rsqrt %286 : vector<1x128xf32>
    %293 = math.rsqrt %290 : vector<1x128xf32>
    %294 = arith.mulf %282, %291 : vector<1x128xf32>
    %295 = arith.mulf %286, %292 : vector<1x128xf32>
    %296 = arith.mulf %290, %293 : vector<1x128xf32>
    %cst_68 = arith.constant 0.000000e+00 : f32
    %297 = vector.broadcast %cst_68 : f32 to vector<1x128xf32>
    %298 = arith.select %276, %291, %297 : vector<1x128xi1>, vector<1x128xf32>
    %cst_69 = arith.constant 0.000000e+00 : f32
    %299 = vector.broadcast %cst_69 : f32 to vector<1x128xf32>
    %300 = arith.select %277, %292, %299 : vector<1x128xi1>, vector<1x128xf32>
    %cst_70 = arith.constant 0.000000e+00 : f32
    %301 = vector.broadcast %cst_70 : f32 to vector<1x128xf32>
    %302 = arith.select %278, %293, %301 : vector<1x128xi1>, vector<1x128xf32>
    %303 = arith.mulf %294, %295 : vector<1x128xf32>
    %304 = arith.addf %294, %295 : vector<1x128xf32>
    %305 = arith.mulf %303, %304 : vector<1x128xf32>
    %306 = tpu.reciprocal %305 {approx = true} : vector<1x128xf32> -> vector<1x128xf32>
    %307 = arith.mulf %305, %306 : vector<1x128xf32>
    %cst_71 = arith.constant 2.000000e+00 : f32
    %308 = vector.broadcast %cst_71 : f32 to vector<1x128xf32>
    %309 = arith.subf %308, %307 : vector<1x128xf32>
    %310 = arith.mulf %306, %309 : vector<1x128xf32>
    %cst_72 = arith.constant 0.000000e+00 : f32
    %311 = vector.broadcast %cst_72 : f32 to vector<1x128xf32>
    %312 = arith.subf %311, %310 : vector<1x128xf32>
    %313 = arith.subf %298, %300 : vector<1x128xf32>
    %314 = arith.subf %263, %272 : vector<1x128xf32>
    %cst_73 = arith.constant 1.000000e-10 : f32
    %315 = vector.broadcast %cst_73 : f32 to vector<1x128xf32>
    %316 = arith.maximumf %314, %315 : vector<1x128xf32>
    %317 = tpu.reciprocal %316 {approx = true} : vector<1x128xf32> -> vector<1x128xf32>
    %318 = arith.mulf %316, %317 : vector<1x128xf32>
    %cst_74 = arith.constant 2.000000e+00 : f32
    %319 = vector.broadcast %cst_74 : f32 to vector<1x128xf32>
    %320 = arith.subf %319, %318 : vector<1x128xf32>
    %321 = arith.mulf %317, %320 : vector<1x128xf32>
    %322 = arith.mulf %313, %321 : vector<1x128xf32>
    %323 = arith.select %277, %312, %322 : vector<1x128xi1>, vector<1x128xf32>
    %324 = arith.mulf %295, %296 : vector<1x128xf32>
    %325 = arith.addf %295, %296 : vector<1x128xf32>
    %326 = arith.mulf %324, %325 : vector<1x128xf32>
    %327 = tpu.reciprocal %326 {approx = true} : vector<1x128xf32> -> vector<1x128xf32>
    %328 = arith.mulf %326, %327 : vector<1x128xf32>
    %cst_75 = arith.constant 2.000000e+00 : f32
    %329 = vector.broadcast %cst_75 : f32 to vector<1x128xf32>
    %330 = arith.subf %329, %328 : vector<1x128xf32>
    %331 = arith.mulf %327, %330 : vector<1x128xf32>
    %cst_76 = arith.constant 0.000000e+00 : f32
    %332 = vector.broadcast %cst_76 : f32 to vector<1x128xf32>
    %333 = arith.subf %332, %331 : vector<1x128xf32>
    %334 = arith.subf %300, %302 : vector<1x128xf32>
    %335 = arith.subf %272, %268 : vector<1x128xf32>
    %cst_77 = arith.constant 1.000000e-10 : f32
    %336 = vector.broadcast %cst_77 : f32 to vector<1x128xf32>
    %337 = arith.maximumf %335, %336 : vector<1x128xf32>
    %338 = tpu.reciprocal %337 {approx = true} : vector<1x128xf32> -> vector<1x128xf32>
    %339 = arith.mulf %337, %338 : vector<1x128xf32>
    %cst_78 = arith.constant 2.000000e+00 : f32
    %340 = vector.broadcast %cst_78 : f32 to vector<1x128xf32>
    %341 = arith.subf %340, %339 : vector<1x128xf32>
    %342 = arith.mulf %338, %341 : vector<1x128xf32>
    %343 = arith.mulf %334, %342 : vector<1x128xf32>
    %cst_79 = arith.constant 0.000000e+00 : f32
    %344 = vector.broadcast %cst_79 : f32 to vector<1x128xf32>
    %345 = arith.select %277, %343, %344 : vector<1x128xi1>, vector<1x128xf32>
    %346 = arith.select %278, %333, %345 : vector<1x128xi1>, vector<1x128xf32>
    %347 = arith.addf %294, %295 : vector<1x128xf32>
    %348 = arith.addf %347, %296 : vector<1x128xf32>
    %349 = arith.addf %294, %295 : vector<1x128xf32>
    %350 = arith.addf %295, %296 : vector<1x128xf32>
    %351 = arith.mulf %349, %350 : vector<1x128xf32>
    %352 = arith.addf %294, %296 : vector<1x128xf32>
    %353 = arith.mulf %351, %352 : vector<1x128xf32>
    %354 = arith.mulf %353, %294 : vector<1x128xf32>
    %355 = arith.mulf %354, %295 : vector<1x128xf32>
    %356 = arith.mulf %355, %296 : vector<1x128xf32>
    %357 = tpu.reciprocal %356 {approx = true} : vector<1x128xf32> -> vector<1x128xf32>
    %358 = arith.mulf %356, %357 : vector<1x128xf32>
    %cst_80 = arith.constant 2.000000e+00 : f32
    %359 = vector.broadcast %cst_80 : f32 to vector<1x128xf32>
    %360 = arith.subf %359, %358 : vector<1x128xf32>
    %361 = arith.mulf %357, %360 : vector<1x128xf32>
    %362 = arith.mulf %348, %361 : vector<1x128xf32>
    %363 = arith.subf %323, %346 : vector<1x128xf32>
    %364 = arith.subf %263, %268 : vector<1x128xf32>
    %cst_81 = arith.constant 1.000000e-10 : f32
    %365 = vector.broadcast %cst_81 : f32 to vector<1x128xf32>
    %366 = arith.maximumf %364, %365 : vector<1x128xf32>
    %367 = tpu.reciprocal %366 {approx = true} : vector<1x128xf32> -> vector<1x128xf32>
    %368 = arith.mulf %366, %367 : vector<1x128xf32>
    %cst_82 = arith.constant 2.000000e+00 : f32
    %369 = vector.broadcast %cst_82 : f32 to vector<1x128xf32>
    %370 = arith.subf %369, %368 : vector<1x128xf32>
    %371 = arith.mulf %367, %370 : vector<1x128xf32>
    %372 = arith.mulf %363, %371 : vector<1x128xf32>
    %373 = arith.select %278, %362, %372 : vector<1x128xi1>, vector<1x128xf32>
    %374 = arith.subf %123, %263 : vector<1x128xf32>
    %375 = arith.subf %127, %263 : vector<1x128xf32>
    %376 = arith.subf %131, %263 : vector<1x128xf32>
    %377 = arith.subf %123, %272 : vector<1x128xf32>
    %378 = arith.subf %127, %272 : vector<1x128xf32>
    %379 = arith.subf %131, %272 : vector<1x128xf32>
    %380 = arith.mulf %374, %377 : vector<1x128xf32>
    %381 = arith.mulf %133, %133 : vector<1x128xf32>
    %382 = arith.addf %380, %381 : vector<1x128xf32>
    %383 = arith.mulf %135, %135 : vector<1x128xf32>
    %384 = arith.addf %382, %383 : vector<1x128xf32>
    %385 = arith.mulf %374, %133 : vector<1x128xf32>
    %386 = arith.mulf %133, %378 : vector<1x128xf32>
    %387 = arith.addf %385, %386 : vector<1x128xf32>
    %388 = arith.mulf %135, %137 : vector<1x128xf32>
    %389 = arith.addf %387, %388 : vector<1x128xf32>
    %390 = arith.mulf %374, %135 : vector<1x128xf32>
    %391 = arith.mulf %133, %137 : vector<1x128xf32>
    %392 = arith.addf %390, %391 : vector<1x128xf32>
    %393 = arith.mulf %135, %379 : vector<1x128xf32>
    %394 = arith.addf %392, %393 : vector<1x128xf32>
    %395 = arith.mulf %133, %133 : vector<1x128xf32>
    %396 = arith.mulf %375, %378 : vector<1x128xf32>
    %397 = arith.addf %395, %396 : vector<1x128xf32>
    %398 = arith.mulf %137, %137 : vector<1x128xf32>
    %399 = arith.addf %397, %398 : vector<1x128xf32>
    %400 = arith.mulf %133, %135 : vector<1x128xf32>
    %401 = arith.mulf %375, %137 : vector<1x128xf32>
    %402 = arith.addf %400, %401 : vector<1x128xf32>
    %403 = arith.mulf %137, %379 : vector<1x128xf32>
    %404 = arith.addf %402, %403 : vector<1x128xf32>
    %405 = arith.mulf %135, %135 : vector<1x128xf32>
    %406 = arith.mulf %137, %137 : vector<1x128xf32>
    %407 = arith.addf %405, %406 : vector<1x128xf32>
    %408 = arith.mulf %376, %379 : vector<1x128xf32>
    %409 = arith.addf %407, %408 : vector<1x128xf32>
    %410 = arith.mulf %323, %374 : vector<1x128xf32>
    %411 = arith.addf %298, %410 : vector<1x128xf32>
    %412 = arith.mulf %373, %384 : vector<1x128xf32>
    %413 = arith.addf %411, %412 : vector<1x128xf32>
    %414 = arith.mulf %323, %133 : vector<1x128xf32>
    %415 = arith.mulf %373, %389 : vector<1x128xf32>
    %416 = arith.addf %414, %415 : vector<1x128xf32>
    %417 = arith.mulf %323, %135 : vector<1x128xf32>
    %418 = arith.mulf %373, %394 : vector<1x128xf32>
    %419 = arith.addf %417, %418 : vector<1x128xf32>
    %420 = arith.mulf %323, %375 : vector<1x128xf32>
    %421 = arith.addf %298, %420 : vector<1x128xf32>
    %422 = arith.mulf %373, %399 : vector<1x128xf32>
    %423 = arith.addf %421, %422 : vector<1x128xf32>
    %424 = arith.mulf %323, %137 : vector<1x128xf32>
    %425 = arith.mulf %373, %404 : vector<1x128xf32>
    %426 = arith.addf %424, %425 : vector<1x128xf32>
    %427 = arith.mulf %323, %376 : vector<1x128xf32>
    %428 = arith.addf %298, %427 : vector<1x128xf32>
    %429 = arith.mulf %373, %409 : vector<1x128xf32>
    %430 = arith.addf %428, %429 : vector<1x128xf32>
    %431 = arith.mulf %413, %117 : vector<1x128xf32>
    %432 = arith.mulf %416, %118 : vector<1x128xf32>
    %433 = arith.addf %431, %432 : vector<1x128xf32>
    %434 = arith.mulf %419, %119 : vector<1x128xf32>
    %435 = arith.addf %433, %434 : vector<1x128xf32>
    %436 = arith.mulf %416, %117 : vector<1x128xf32>
    %437 = arith.mulf %423, %118 : vector<1x128xf32>
    %438 = arith.addf %436, %437 : vector<1x128xf32>
    %439 = arith.mulf %426, %119 : vector<1x128xf32>
    %440 = arith.addf %438, %439 : vector<1x128xf32>
    %441 = arith.mulf %419, %117 : vector<1x128xf32>
    %442 = arith.mulf %426, %118 : vector<1x128xf32>
    %443 = arith.addf %441, %442 : vector<1x128xf32>
    %444 = arith.mulf %430, %119 : vector<1x128xf32>
    %445 = arith.addf %443, %444 : vector<1x128xf32>
    %446 = tpu.iota {dimensions = array<i32: 0>} : vector<128x1xi32>
    %cst_83 = arith.constant 0.000000e+00 : f32
    %447 = vector.broadcast %cst_83 : f32 to vector<128x128xf32>
    %c0_i32_84 = arith.constant 0 : i32
    %448 = vector.broadcast %c0_i32_84 : i32 to vector<128x1xi32>
    %449 = arith.cmpi eq, %446, %448 : vector<128x1xi32>
    %450 = vector.shape_cast %449 : vector<128x1xi1> to vector<128x1xi1>
    %451 = vector.broadcast %450 : vector<128x1xi1> to vector<128x128xi1>
    %452 = vector.shape_cast %413 : vector<1x128xf32> to vector<1x128xf32>
    %453 = vector.broadcast %452 : vector<1x128xf32> to vector<128x128xf32>
    %454 = arith.select %451, %453, %447 : vector<128x128xi1>, vector<128x128xf32>
    %c1_i32_85 = arith.constant 1 : i32
    %455 = vector.broadcast %c1_i32_85 : i32 to vector<128x1xi32>
    %456 = arith.cmpi eq, %446, %455 : vector<128x1xi32>
    %457 = vector.shape_cast %456 : vector<128x1xi1> to vector<128x1xi1>
    %458 = vector.broadcast %457 : vector<128x1xi1> to vector<128x128xi1>
    %459 = vector.shape_cast %416 : vector<1x128xf32> to vector<1x128xf32>
    %460 = vector.broadcast %459 : vector<1x128xf32> to vector<128x128xf32>
    %461 = arith.select %458, %460, %454 : vector<128x128xi1>, vector<128x128xf32>
    %c2_i32_86 = arith.constant 2 : i32
    %462 = vector.broadcast %c2_i32_86 : i32 to vector<128x1xi32>
    %463 = arith.cmpi eq, %446, %462 : vector<128x1xi32>
    %464 = vector.shape_cast %463 : vector<128x1xi1> to vector<128x1xi1>
    %465 = vector.broadcast %464 : vector<128x1xi1> to vector<128x128xi1>
    %466 = vector.shape_cast %419 : vector<1x128xf32> to vector<1x128xf32>
    %467 = vector.broadcast %466 : vector<1x128xf32> to vector<128x128xf32>
    %468 = arith.select %465, %467, %461 : vector<128x128xi1>, vector<128x128xf32>
    %c3_i32_87 = arith.constant 3 : i32
    %469 = vector.broadcast %c3_i32_87 : i32 to vector<128x1xi32>
    %470 = arith.cmpi eq, %446, %469 : vector<128x1xi32>
    %471 = vector.shape_cast %470 : vector<128x1xi1> to vector<128x1xi1>
    %472 = vector.broadcast %471 : vector<128x1xi1> to vector<128x128xi1>
    %473 = vector.shape_cast %423 : vector<1x128xf32> to vector<1x128xf32>
    %474 = vector.broadcast %473 : vector<1x128xf32> to vector<128x128xf32>
    %475 = arith.select %472, %474, %468 : vector<128x128xi1>, vector<128x128xf32>
    %c4_i32_88 = arith.constant 4 : i32
    %476 = vector.broadcast %c4_i32_88 : i32 to vector<128x1xi32>
    %477 = arith.cmpi eq, %446, %476 : vector<128x1xi32>
    %478 = vector.shape_cast %477 : vector<128x1xi1> to vector<128x1xi1>
    %479 = vector.broadcast %478 : vector<128x1xi1> to vector<128x128xi1>
    %480 = vector.shape_cast %426 : vector<1x128xf32> to vector<1x128xf32>
    %481 = vector.broadcast %480 : vector<1x128xf32> to vector<128x128xf32>
    %482 = arith.select %479, %481, %475 : vector<128x128xi1>, vector<128x128xf32>
    %c5_i32_89 = arith.constant 5 : i32
    %483 = vector.broadcast %c5_i32_89 : i32 to vector<128x1xi32>
    %484 = arith.cmpi eq, %446, %483 : vector<128x1xi32>
    %485 = vector.shape_cast %484 : vector<128x1xi1> to vector<128x1xi1>
    %486 = vector.broadcast %485 : vector<128x1xi1> to vector<128x128xi1>
    %487 = vector.shape_cast %430 : vector<1x128xf32> to vector<1x128xf32>
    %488 = vector.broadcast %487 : vector<1x128xf32> to vector<128x128xf32>
    %489 = arith.select %486, %488, %482 : vector<128x128xi1>, vector<128x128xf32>
    %c6_i32_90 = arith.constant 6 : i32
    %490 = vector.broadcast %c6_i32_90 : i32 to vector<128x1xi32>
    %491 = arith.cmpi eq, %446, %490 : vector<128x1xi32>
    %492 = vector.shape_cast %491 : vector<128x1xi1> to vector<128x1xi1>
    %493 = vector.broadcast %492 : vector<128x1xi1> to vector<128x128xi1>
    %494 = vector.shape_cast %435 : vector<1x128xf32> to vector<1x128xf32>
    %495 = vector.broadcast %494 : vector<1x128xf32> to vector<128x128xf32>
    %496 = arith.select %493, %495, %489 : vector<128x128xi1>, vector<128x128xf32>
    %c7_i32_91 = arith.constant 7 : i32
    %497 = vector.broadcast %c7_i32_91 : i32 to vector<128x1xi32>
    %498 = arith.cmpi eq, %446, %497 : vector<128x1xi32>
    %499 = vector.shape_cast %498 : vector<128x1xi1> to vector<128x1xi1>
    %500 = vector.broadcast %499 : vector<128x1xi1> to vector<128x128xi1>
    %501 = vector.shape_cast %440 : vector<1x128xf32> to vector<1x128xf32>
    %502 = vector.broadcast %501 : vector<1x128xf32> to vector<128x128xf32>
    %503 = arith.select %500, %502, %496 : vector<128x128xi1>, vector<128x128xf32>
    %c8_i32_92 = arith.constant 8 : i32
    %504 = vector.broadcast %c8_i32_92 : i32 to vector<128x1xi32>
    %505 = arith.cmpi eq, %446, %504 : vector<128x1xi32>
    %506 = vector.shape_cast %505 : vector<128x1xi1> to vector<128x1xi1>
    %507 = vector.broadcast %506 : vector<128x1xi1> to vector<128x128xi1>
    %508 = vector.shape_cast %445 : vector<1x128xf32> to vector<1x128xf32>
    %509 = vector.broadcast %508 : vector<1x128xf32> to vector<128x128xf32>
    %510 = arith.select %507, %509, %503 : vector<128x128xi1>, vector<128x128xf32>
    %511 = tpu.transpose %510, [1, 0] : vector<128x128xf32> -> vector<128x128xf32>
    %512 = vector.extract_strided_slice %511 {offsets = [0, 0], sizes = [128, 1], strides = [1, 1]} : vector<128x128xf32> to vector<128x1xf32>
    %513 = vector.shape_cast %512 : vector<128x1xf32> to vector<128x1xf32>
    %514 = vector.broadcast %513 : vector<128x1xf32> to vector<128x128xf32>
    %515 = vector.extract_strided_slice %511 {offsets = [0, 1], sizes = [128, 1], strides = [1, 1]} : vector<128x128xf32> to vector<128x1xf32>
    %516 = vector.shape_cast %515 : vector<128x1xf32> to vector<128x1xf32>
    %517 = vector.broadcast %516 : vector<128x1xf32> to vector<128x128xf32>
    %518 = vector.extract_strided_slice %511 {offsets = [0, 2], sizes = [128, 1], strides = [1, 1]} : vector<128x128xf32> to vector<128x1xf32>
    %519 = vector.shape_cast %518 : vector<128x1xf32> to vector<128x1xf32>
    %520 = vector.broadcast %519 : vector<128x1xf32> to vector<128x128xf32>
    %521 = vector.extract_strided_slice %511 {offsets = [0, 3], sizes = [128, 1], strides = [1, 1]} : vector<128x128xf32> to vector<128x1xf32>
    %522 = vector.shape_cast %521 : vector<128x1xf32> to vector<128x1xf32>
    %523 = vector.broadcast %522 : vector<128x1xf32> to vector<128x128xf32>
    %524 = vector.extract_strided_slice %511 {offsets = [0, 4], sizes = [128, 1], strides = [1, 1]} : vector<128x128xf32> to vector<128x1xf32>
    %525 = vector.shape_cast %524 : vector<128x1xf32> to vector<128x1xf32>
    %526 = vector.broadcast %525 : vector<128x1xf32> to vector<128x128xf32>
    %527 = vector.extract_strided_slice %511 {offsets = [0, 5], sizes = [128, 1], strides = [1, 1]} : vector<128x128xf32> to vector<128x1xf32>
    %528 = vector.shape_cast %527 : vector<128x1xf32> to vector<128x1xf32>
    %529 = vector.broadcast %528 : vector<128x1xf32> to vector<128x128xf32>
    %530 = vector.extract_strided_slice %511 {offsets = [0, 6], sizes = [128, 1], strides = [1, 1]} : vector<128x128xf32> to vector<128x1xf32>
    %531 = vector.shape_cast %530 : vector<128x1xf32> to vector<128x1xf32>
    %532 = vector.broadcast %531 : vector<128x1xf32> to vector<128x128xf32>
    %533 = vector.extract_strided_slice %511 {offsets = [0, 7], sizes = [128, 1], strides = [1, 1]} : vector<128x128xf32> to vector<128x1xf32>
    %534 = vector.shape_cast %533 : vector<128x1xf32> to vector<128x1xf32>
    %535 = vector.broadcast %534 : vector<128x1xf32> to vector<128x128xf32>
    %536 = vector.extract_strided_slice %511 {offsets = [0, 8], sizes = [128, 1], strides = [1, 1]} : vector<128x128xf32> to vector<128x1xf32>
    %537 = vector.shape_cast %536 : vector<128x1xf32> to vector<128x1xf32>
    %538 = vector.broadcast %537 : vector<128x1xf32> to vector<128x128xf32>
    %c0_93 = arith.constant 0 : index
    %c0_94 = arith.constant 0 : index
    %539 = vector.load %arg2[%c0_93, %c0_94] : memref<1x128xf32, #tpu.memory_space<vmem>>, vector<1x128xf32>
    %540 = arith.mulf %514, %0 : vector<128x128xf32>
    %541 = arith.mulf %517, %1 : vector<128x128xf32>
    %542 = arith.addf %540, %541 : vector<128x128xf32>
    %543 = arith.mulf %520, %2 : vector<128x128xf32>
    %544 = arith.addf %542, %543 : vector<128x128xf32>
    %545 = arith.subf %544, %532 : vector<128x128xf32>
    %546 = vector.broadcast %539 : vector<1x128xf32> to vector<128x128xf32>
    %547 = arith.mulf %545, %546 : vector<128x128xf32>
    %548 = arith.mulf %517, %0 : vector<128x128xf32>
    %549 = arith.mulf %523, %1 : vector<128x128xf32>
    %550 = arith.addf %548, %549 : vector<128x128xf32>
    %551 = arith.mulf %526, %2 : vector<128x128xf32>
    %552 = arith.addf %550, %551 : vector<128x128xf32>
    %553 = arith.subf %552, %535 : vector<128x128xf32>
    %554 = vector.broadcast %539 : vector<1x128xf32> to vector<128x128xf32>
    %555 = arith.mulf %553, %554 : vector<128x128xf32>
    %556 = arith.mulf %520, %0 : vector<128x128xf32>
    %557 = arith.mulf %526, %1 : vector<128x128xf32>
    %558 = arith.addf %556, %557 : vector<128x128xf32>
    %559 = arith.mulf %529, %2 : vector<128x128xf32>
    %560 = arith.addf %558, %559 : vector<128x128xf32>
    %561 = arith.subf %560, %538 : vector<128x128xf32>
    %562 = vector.broadcast %539 : vector<1x128xf32> to vector<128x128xf32>
    %563 = arith.mulf %561, %562 : vector<128x128xf32>
    %c0_95 = arith.constant 0 : index
    %c0_96 = arith.constant 0 : index
    %564 = vector.load %arg3[%c0_95, %c0_96] : memref<128x384xf32, #tpu.memory_space<vmem>>, vector<128x128xf32>
    tpu.vector_store %arg3[%c0_95, %c0_96], %547 {strides = array<i32>} : memref<128x384xf32, #tpu.memory_space<vmem>>, vector<128x128xf32>,
    %c0_97 = arith.constant 0 : index
    %c128_98 = arith.constant 128 : index
    %565 = vector.load %arg3[%c0_97, %c128_98] : memref<128x384xf32, #tpu.memory_space<vmem>>, vector<128x128xf32>
    tpu.vector_store %arg3[%c0_97, %c128_98], %555 {strides = array<i32>} : memref<128x384xf32, #tpu.memory_space<vmem>>, vector<128x128xf32>,
    %c0_99 = arith.constant 0 : index
    %c256_100 = arith.constant 256 : index
    %566 = vector.load %arg3[%c0_99, %c256_100] : memref<128x384xf32, #tpu.memory_space<vmem>>, vector<128x128xf32>
    tpu.vector_store %arg3[%c0_99, %c256_100], %563 {strides = array<i32>} : memref<128x384xf32, #tpu.memory_space<vmem>>, vector<128x128xf32>,
    return
  }
  func.func @transform_0(%arg0: i32) -> (i32, i32) {
    %c0_i32 = arith.constant 0 : i32
    %c0_i32_0 = arith.constant 0 : i32
    return %arg0, %c0_i32 : i32, i32
  }
  func.func @transform_1(%arg0: i32) -> (i32, i32) {
    %c0_i32 = arith.constant 0 : i32
    %c0_i32_0 = arith.constant 0 : i32
    %c0_i32_1 = arith.constant 0 : i32
    return %c0_i32, %c0_i32_0 : i32, i32
  }
  func.func @transform_2(%arg0: i32) -> (i32, i32) {
    %c0_i32 = arith.constant 0 : i32
    %c0_i32_0 = arith.constant 0 : i32
    return %arg0, %c0_i32 : i32, i32
  }
}

</mosaic_0001>

<llo_original>
// kernel: tpu_custom_call.1
$region0: #{tpu_custom_call.1}
  #allocation0 [shape = 'u32[]', space=smem, size = 0x4, offset = 0x4, fixed_abs, tag = 'smem constant byte address 0x4 - core index']
  #allocation1 [shape = 'u32[144,128]{1,0:T(1,128)}', space=vmem, size = 0x12000, scoped, tag = 'internal scratch']
  %s0 = inlined_call_operand.hbm [shape: f32[300,384], index: 0, kind: input, shape index: {}]
  %s1 = inlined_call_operand.vmem [shape: f32[1,128], index: 1, kind: input, shape index: {}]
  %s2 = inlined_call_operand.hbm [shape: f32[300,384], index: 2, kind: output, shape index: {}]
  %s3 = sld [smem:[#allocation0]]
  $region45: #{tpu_custom_call.1} parent=0
    _
  %s5 = ssub.s32 1, %s3
  %s6 = scalar_select 0, %s5, %s3
  $region1: #{tpu_custom_call.1} parent=0
    #allocation2 [shape = 'u8[393216]{0}', space=vmem, size = 0x60000, scoped, tag = 'input window, operand 0']
    #allocation3 [shape = 's32[2]{0}', space=sflag, size = 0x8, scoped, tag = 'scoped memory for tpu_custom_call.1']
    #allocation4 [shape = 's32[2]{0}', space=sflag, size = 0x8, scoped, tag = 'scoped memory for tpu_custom_call.1']
    #allocation5 [shape = 'u8[393216]{0}', space=vmem, size = 0x60000, scoped, tag = 'output window, operand 0']
    %7 = vsyncpa [#allocation3], 0
    %s8 = scalar_lea.sflag [#allocation3], 1
    %9 = vsyncpa %s8, 0
    %10 = vsyncpa [#allocation4], 0
    %s11 = scalar_lea.sflag [#allocation4], 1
    %12 = vsyncpa %s11, 0
    loop: start=0, step=1, limit=5
    $region2: #{tpu_custom_call.1} parent=1 // loop_pre_header
      _
    $region3: #{tpu_custom_call.1} parent=1 // loop_header
      %s14 = sphi 0, %s18
      %p15 = scmp.ge.s32.totalorder %s14, 5
      %s24 = sphi 0, %s26
      %s27 = sphi 0, %s24
      %s28 = sphi 0, %s27
      %s44 = sphi 0, %s28
      %s48 = sphi 0, %s48
      %s50 = sphi 0, %s48
      %s51 = sphi 0, %s50
      %s65 = sphi 0, %s51
      %s71 = sphi 0, %s73
      %s74 = sphi 0, %s71
      %s75 = sphi 0, %s74
      %s91 = sphi 0, %s75
    $region4: #{tpu_custom_call.1} parent=1 // loop_header_branch
      %17 = sbr.rel (%p15) target = $region8
    $region5: #{tpu_custom_call.1} parent=1 // loop_body
      %s19 = ssub.s32 %s14, 1
      %s20 = ssub.s32 %s14, 2
      %s21 = sadd.s32 %s14, 1
      %s22 = ssub.s32 %s14, %s21
      %p23 = scmp.eq.s32.totalorder %s22, 0
      %s25 = sadd.s32 %s24, 1
      %s26 = scalar_select %p23, %s24, %s25
      %p29 = pneg %p23
      %p30 = scmp.eq.s32.totalorder %s14, 2
      %p31 = por %p29, %p30
      %p32 = scmp.ne.s32.totalorder %s24, %s27
      %p33 = scmp.eq.s32.totalorder %s14, 0
      %p34 = por %p32, %p33
      %p35 = scmp.ne.s32.totalorder %s24, %s27
      %p36 = scmp.eq.s32.totalorder %s19, 2
      %p37 = por %p35, %p36
      %p38 = scmp.ne.s32.totalorder %s27, %s28
      %p39 = scmp.eq.s32.totalorder %s19, 0
      %p40 = por %p38, %p39
      %p41 = scmp.ne.s32.totalorder %s27, %s28
      %p42 = scmp.eq.s32.totalorder %s20, 2
      %p43 = por %p41, %p42
      %p45 = scmp.ne.s32.totalorder %s28, %s44
      %p46 = scmp.eq.s32.totalorder %s20, 0
      %p47 = por %p45, %p46
      %s49 = sadd.s32 %s48, 1
      %p52 = scmp.eq.s32.totalorder %s14, 2
      %p53 = scmp.ne.s32.totalorder %s48, %s50
      %p54 = scmp.eq.s32.totalorder %s14, 0
      %p55 = por %p53, %p54
      %p56 = scmp.ne.s32.totalorder %s48, %s50
      %p57 = scmp.eq.s32.totalorder %s19, 2
      %p58 = por %p56, %p57
      %p59 = scmp.ne.s32.totalorder %s50, %s51
      %p60 = scmp.eq.s32.totalorder %s19, 0
      %p61 = por %p59, %p60
      %p62 = scmp.ne.s32.totalorder %s50, %s51
      %p63 = scmp.eq.s32.totalorder %s20, 2
      %p64 = por %p62, %p63
      %p66 = scmp.ne.s32.totalorder %s51, %s65
      %p67 = scmp.eq.s32.totalorder %s20, 0
      %p68 = por %p66, %p67
      %s69 = ssub.s32 %s14, %s21
      %p70 = scmp.eq.s32.totalorder %s69, 0
      %s72 = sadd.s32 %s71, 1
      %s73 = scalar_select %p70, %s71, %s72
      %p76 = pneg %p70
      %p77 = scmp.eq.s32.totalorder %s14, 2
      %p78 = por %p76, %p77
      %p79 = scmp.ne.s32.totalorder %s71, %s74
      %p80 = scmp.eq.s32.totalorder %s14, 0
      %p81 = por %p79, %p80
      %p82 = scmp.ne.s32.totalorder %s71, %s74
      %p83 = scmp.eq.s32.totalorder %s19, 2
      %p84 = por %p82, %p83
      %p85 = scmp.ne.s32.totalorder %s74, %s75
      %p86 = scmp.eq.s32.totalorder %s19, 0
      %p87 = por %p85, %p86
      %p88 = scmp.ne.s32.totalorder %s74, %s75
      %p89 = scmp.eq.s32.totalorder %s20, 2
      %p90 = por %p88, %p89
      %p92 = scmp.ne.s32.totalorder %s75, %s91
      %p93 = scmp.eq.s32.totalorder %s20, 0
      %p94 = por %p92, %p93
      %p95 = scmp.le.s32.totalorder 1, %s14
      %p96 = scmp.lt.s32.totalorder %s14, 4
      %p97 = pnand %p95, %p96
      %p98 = pneg %p97
      // Predicated region
      $region9: #{tpu_custom_call.1} parent=5 // pred_check
        _
      $region10: #{tpu_custom_call.1} parent=5 // pred_check_branch
        %100 = sbr.rel (%p97) target = $region12
      $region11: #{tpu_custom_call.1} parent=5 // pred_region
        %s101 = ssub.s32 %s14, 1
        // Predicated region
        $region13: #{tpu_custom_call.1} parent=11 // pred_check
          %p102 = pneg %p61
        $region14: #{tpu_custom_call.1} parent=11 // pred_check_branch
          %104 = sbr.rel (%p102) target = $region16
        $region15: #{tpu_custom_call.1} parent=11 // pred_region
          _
        $region16: #{tpu_custom_call.1} parent=11 // pred_fallthru
          _
      $region12: #{tpu_custom_call.1} parent=5 // pred_fallthru
        _
      %p105 = scmp.lt.s32.totalorder %s14, 3
      // Predicated region
      $region17: #{tpu_custom_call.1} parent=5 // pred_check
        %p106 = pneg %p105
      $region18: #{tpu_custom_call.1} parent=5 // pred_check_branch
        %108 = sbr.rel (%p106) target = $region20
      $region19: #{tpu_custom_call.1} parent=5 // pred_region
        // Predicated region
        $region21: #{tpu_custom_call.1} parent=19 // pred_check
          %p109 = pneg %p34
        $region22: #{tpu_custom_call.1} parent=19 // pred_check_branch
          %111 = sbr.rel (%p109) target = $region24
        $region23: #{tpu_custom_call.1} parent=19 // pred_region
          %s112 = sand.u32 %s24, 1
          %s113 = scalar_lea.sflag [#allocation3], %s112
          %s114 = sand.u32 %s24, 1
          %s115 = smul.addr %s114, 384
          %s116 = scalar_lea.vmem [#allocation2], %s115
          %s117 = smul.u32 16, %s14
          %s118 = ssub.s32 38, %s117
          %p119 = scmp.lt.s32.totalorder %s118, 16
          %s120 = scalar_select %p119, %s118, 16
          %s121 = smul.u32 128, %s120
          %s122 = smul.u32 %s121, 3
          %s124 = ssub.s32 6144, %s122
          %125 = vsyncadd %s113, %s124
          %p126 = scmp.ne.s32.totalorder 0, %s122
          %s127 = smul.addr %s117, 3
          %s128 = smul.addr %s127, 128
          %s129 = scalar_lea.hbm %s0, %s128
          %s130 = smul.u32 24, %s120
          %s131 = sshll.u32 %s116, 4
          %s132 = int_to_ptr.vmem [resolvable:$true] %s131
          %s133 = sshll.u32 %s130, 4
          %137 = dma.hbm_to_vmem [thread:$0]  (%p126), %s129, %s133, %s132, %s113, 384, 384, 24
        $region24: #{tpu_custom_call.1} parent=19 // pred_fallthru
          _
      $region20: #{tpu_custom_call.1} parent=5 // pred_fallthru
        _
      %p138 = scmp.le.s32.totalorder 1, %s14
      %p139 = scmp.lt.s32.totalorder %s14, 4
      %p140 = pnand %p138, %p139
      %p141 = pneg %p140
      // Predicated region
      $region25: #{tpu_custom_call.1} parent=5 // pred_check
        _
      $region26: #{tpu_custom_call.1} parent=5 // pred_check_branch
        %143 = sbr.rel (%p140) target = $region28
      $region27: #{tpu_custom_call.1} parent=5 // pred_region
        %s144 = ssub.s32 %s14, 1
        %s145 = sand.u32 %s27, 1
        %s146 = scalar_lea.sflag [#allocation3], %s145
        %s147 = sand.u32 %s27, 1
        %s148 = smul.addr %s147, 384
        %s149 = scalar_lea.vmem [#allocation2], %s148
        // Predicated region
        $region29: #{tpu_custom_call.1} parent=27 // pred_check
          %p150 = pneg %p40
        $region30: #{tpu_custom_call.1} parent=27 // pred_check_branch
          %152 = sbr.rel (%p150) target = $region32
        $region31: #{tpu_custom_call.1} parent=27 // pred_region
          %153 = dma.done %s146, 6144
        $region32: #{tpu_custom_call.1} parent=27 // pred_fallthru
          _
        %s154 = sand.u32 %s27, 1
        %s155 = scalar_lea.sflag [#allocation3], %s154
        %s156 = sand.u32 %s27, 1
        %s157 = smul.addr %s156, 384
        %s158 = scalar_lea.vmem [#allocation2], %s157
        %p159 = pneg %p40
        %p160 = pneg %p37
        %p161 = pneg %p61
        %p162 = pneg %p58
        %p163 = pneg %p87
        %p164 = pneg %p84
        %s165 = sand.u32 %s74, 1
        %s166 = scalar_lea.sflag [#allocation4], %s165
        %s167 = sand.u32 %s74, 1
        %s168 = smul.addr %s167, 384
        %s169 = scalar_lea.vmem [#allocation5], %s168
        %s170 = smul.u32 16, %s19
        %s171 = ssub.s32 38, %s170
        %p172 = scmp.lt.s32.totalorder %s171, 16
        %s173 = scalar_select %p172, %s171, 16
        %s174 = smul.u32 128, %s173
        %s175 = smul.u32 %s174, 3
        %s176 = smul.u32 16, %s19
        %s177 = ssub.s32 38, %s176
        %p178 = scmp.lt.s32.totalorder %s177, 16
        %s179 = scalar_select %p178, %s177, 16
        %s180 = smul.u32 128, %s179
        %s181 = smul.u32 %s180, 3
        %v182 = vld [vmem:[%s149] sm:$0xff]
        %v183 = vld [vmem:[%s149 + $0x18] sm:$0xff]
        %v184 = vld [vmem:[%s149 + $0x30] sm:$0xff]
        %v185 = vld [vmem:[%s149 + $0x48] sm:$0xff]
        %v186 = vld [vmem:[%s149 + $0x60] sm:$0xff]
        %v187 = vld [vmem:[%s149 + $0x78] sm:$0xff]
        %v188 = vld [vmem:[%s149 + $0x90] sm:$0xff]
        %v189 = vld [vmem:[%s149 + $0xa8] sm:$0xff]
        %v190 = vld [vmem:[%s149 + $0xc0] sm:$0xff]
        %v191 = vld [vmem:[%s149 + $0xd8] sm:$0xff]
        %v192 = vld [vmem:[%s149 + $0xf0] sm:$0xff]
        %v193 = vld [vmem:[%s149 + $0x108] sm:$0xff]
        %v194 = vld [vmem:[%s149 + $0x120] sm:$0xff]
        %v195 = vld [vmem:[%s149 + $0x138] sm:$0xff]
        %v196 = vld [vmem:[%s149 + $0x150] sm:$0xff]
        %v197 = vld [vmem:[%s149 + $0x168] sm:$0xff]
        %v198 = vld [vmem:[%s149 + $0x8] sm:$0xff]
        %v199 = vld [vmem:[%s149 + $0x20] sm:$0xff]
        %v200 = vld [vmem:[%s149 + $0x38] sm:$0xff]
        %v201 = vld [vmem:[%s149 + $0x50] sm:$0xff]
        %v202 = vld [vmem:[%s149 + $0x68] sm:$0xff]
        %v203 = vld [vmem:[%s149 + $0x80] sm:$0xff]
        %v204 = vld [vmem:[%s149 + $0x98] sm:$0xff]
        %v205 = vld [vmem:[%s149 + $0xb0] sm:$0xff]
        %v206 = vld [vmem:[%s149 + $0xc8] sm:$0xff]
        %v207 = vld [vmem:[%s149 + $0xe0] sm:$0xff]
        %v208 = vld [vmem:[%s149 + $0xf8] sm:$0xff]
        %v209 = vld [vmem:[%s149 + $0x110] sm:$0xff]
        %v210 = vld [vmem:[%s149 + $0x128] sm:$0xff]
        %v211 = vld [vmem:[%s149 + $0x140] sm:$0xff]
        %v212 = vld [vmem:[%s149 + $0x158] sm:$0xff]
        %v213 = vld [vmem:[%s149 + $0x170] sm:$0xff]
        %v214 = vld [vmem:[%s149 + $0x10] sm:$0xff]
        %v215 = vld [vmem:[%s149 + $0x28] sm:$0xff]
        %v216 = vld [vmem:[%s149 + $0x40] sm:$0xff]
        %v217 = vld [vmem:[%s149 + $0x58] sm:$0xff]
        %v218 = vld [vmem:[%s149 + $0x70] sm:$0xff]
        %v219 = vld [vmem:[%s149 + $0x88] sm:$0xff]
        %v220 = vld [vmem:[%s149 + $0xa0] sm:$0xff]
        %v221 = vld [vmem:[%s149 + $0xb8] sm:$0xff]
        %v222 = vld [vmem:[%s149 + $0xd0] sm:$0xff]
        %v223 = vld [vmem:[%s149 + $0xe8] sm:$0xff]
        %v224 = vld [vmem:[%s149 + $0x100] sm:$0xff]
        %v225 = vld [vmem:[%s149 + $0x118] sm:$0xff]
        %v226 = vld [vmem:[%s149 + $0x130] sm:$0xff]
        %v227 = vld [vmem:[%s149 + $0x148] sm:$0xff]
        %v228 = vld [vmem:[%s149 + $0x160] sm:$0xff]
        %v229 = vld [vmem:[%s149 + $0x178] sm:$0xff]
        %v230 = vmul.f32 %v182, %v182
        %v231 = vmul.f32 %v183, %v183
        %v232 = vmul.f32 %v184, %v184
        %v233 = vmul.f32 %v185, %v185
        %v234 = vmul.f32 %v186, %v186
        %v235 = vmul.f32 %v187, %v187
        %v236 = vmul.f32 %v188, %v188
        %v237 = vmul.f32 %v189, %v189
        %v238 = vmul.f32 %v190, %v190
        %v239 = vmul.f32 %v191, %v191
        %v240 = vmul.f32 %v192, %v192
        %v241 = vmul.f32 %v193, %v193
        %v242 = vmul.f32 %v194, %v194
        %v243 = vmul.f32 %v195, %v195
        %v244 = vmul.f32 %v196, %v196
        %v245 = vmul.f32 %v197, %v197
        %246 = vadd.xlane.f32.xlu0 %v230
        %v247 = vpop.xlane.xlu0 %246
        %248 = vadd.xlane.f32.xlu0 %v231
        %v249 = vpop.xlane.xlu0 %248
        %250 = vadd.xlane.f32.xlu0 %v232
        %v251 = vpop.xlane.xlu0 %250
        %252 = vadd.xlane.f32.xlu0 %v233
        %v253 = vpop.xlane.xlu0 %252
        %254 = vadd.xlane.f32.xlu0 %v234
        %v255 = vpop.xlane.xlu0 %254
        %256 = vadd.xlane.f32.xlu0 %v235
        %v257 = vpop.xlane.xlu0 %256
        %258 = vadd.xlane.f32.xlu0 %v236
        %v259 = vpop.xlane.xlu0 %258
        %260 = vadd.xlane.f32.xlu0 %v237
        %v261 = vpop.xlane.xlu0 %260
        %262 = vadd.xlane.f32.xlu0 %v238
        %v263 = vpop.xlane.xlu0 %262
        %264 = vadd.xlane.f32.xlu0 %v239
        %v265 = vpop.xlane.xlu0 %264
        %266 = vadd.xlane.f32.xlu0 %v240
        %v267 = vpop.xlane.xlu0 %266
        %268 = vadd.xlane.f32.xlu0 %v241
        %v269 = vpop.xlane.xlu0 %268
        %270 = vadd.xlane.f32.xlu0 %v242
        %v271 = vpop.xlane.xlu0 %270
        %272 = vadd.xlane.f32.xlu0 %v243
        %v273 = vpop.xlane.xlu0 %272
        %274 = vadd.xlane.f32.xlu0 %v244
        %v275 = vpop.xlane.xlu0 %274
        %276 = vadd.xlane.f32.xlu0 %v245
        %v277 = vpop.xlane.xlu0 %276
        %v278 = vmul.f32 %v247, 0.0078125
        %v279 = vmul.f32 %v249, 0.0078125
        %v280 = vmul.f32 %v251, 0.0078125
        %v281 = vmul.f32 %v253, 0.0078125
        %v282 = vmul.f32 %v255, 0.0078125
        %v283 = vmul.f32 %v257, 0.0078125
        %v284 = vmul.f32 %v259, 0.0078125
        %v285 = vmul.f32 %v261, 0.0078125
        %v286 = vmul.f32 %v263, 0.0078125
        %v287 = vmul.f32 %v265, 0.0078125
        %v288 = vmul.f32 %v267, 0.0078125
        %v289 = vmul.f32 %v269, 0.0078125
        %v290 = vmul.f32 %v271, 0.0078125
        %v291 = vmul.f32 %v273, 0.0078125
        %v292 = vmul.f32 %v275, 0.0078125
        %v293 = vmul.f32 %v277, 0.0078125
        %v294 = vmul.f32 %v198, %v198
        %v295 = vmul.f32 %v199, %v199
        %v296 = vmul.f32 %v200, %v200
        %v297 = vmul.f32 %v201, %v201
        %v298 = vmul.f32 %v202, %v202
        %v299 = vmul.f32 %v203, %v203
        %v300 = vmul.f32 %v204, %v204
        %v301 = vmul.f32 %v205, %v205
        %v302 = vmul.f32 %v206, %v206
        %v303 = vmul.f32 %v207, %v207
        %v304 = vmul.f32 %v208, %v208
        %v305 = vmul.f32 %v209, %v209
        %v306 = vmul.f32 %v210, %v210
        %v307 = vmul.f32 %v211, %v211
        %v308 = vmul.f32 %v212, %v212
        %v309 = vmul.f32 %v213, %v213
        %310 = vadd.xlane.f32.xlu0 %v294
        %v311 = vpop.xlane.xlu0 %310
        %312 = vadd.xlane.f32.xlu0 %v295
        %v313 = vpop.xlane.xlu0 %312
        %314 = vadd.xlane.f32.xlu0 %v296
        %v315 = vpop.xlane.xlu0 %314
        %316 = vadd.xlane.f32.xlu0 %v297
        %v317 = vpop.xlane.xlu0 %316
        %318 = vadd.xlane.f32.xlu0 %v298
        %v319 = vpop.xlane.xlu0 %318
        %320 = vadd.xlane.f32.xlu0 %v299
        %v321 = vpop.xlane.xlu0 %320
        %322 = vadd.xlane.f32.xlu0 %v300
        %v323 = vpop.xlane.xlu0 %322
        %324 = vadd.xlane.f32.xlu0 %v301
        %v325 = vpop.xlane.xlu0 %324
        %326 = vadd.xlane.f32.xlu0 %v302
        %v327 = vpop.xlane.xlu0 %326
        %328 = vadd.xlane.f32.xlu0 %v303
        %v329 = vpop.xlane.xlu0 %328
        %330 = vadd.xlane.f32.xlu0 %v304
        %v331 = vpop.xlane.xlu0 %330
        %332 = vadd.xlane.f32.xlu0 %v305
        %v333 = vpop.xlane.xlu0 %332
        %334 = vadd.xlane.f32.xlu0 %v306
        %v335 = vpop.xlane.xlu0 %334
        %336 = vadd.xlane.f32.xlu0 %v307
        %v337 = vpop.xlane.xlu0 %336
        %338 = vadd.xlane.f32.xlu0 %v308
        %v339 = vpop.xlane.xlu0 %338
        %340 = vadd.xlane.f32.xlu0 %v309
        %v341 = vpop.xlane.xlu0 %340
        %v342 = vmul.f32 %v311, 0.0078125
        %v343 = vmul.f32 %v313, 0.0078125
        %v344 = vmul.f32 %v315, 0.0078125
        %v345 = vmul.f32 %v317, 0.0078125
        %v346 = vmul.f32 %v319, 0.0078125
        %v347 = vmul.f32 %v321, 0.0078125
        %v348 = vmul.f32 %v323, 0.0078125
        %v349 = vmul.f32 %v325, 0.0078125
        %v350 = vmul.f32 %v327, 0.0078125
        %v351 = vmul.f32 %v329, 0.0078125
        %v352 = vmul.f32 %v331, 0.0078125
        %v353 = vmul.f32 %v333, 0.0078125
        %v354 = vmul.f32 %v335, 0.0078125
        %v355 = vmul.f32 %v337, 0.0078125
        %v356 = vmul.f32 %v339, 0.0078125
        %v357 = vmul.f32 %v341, 0.0078125
        %v358 = vmul.f32 %v214, %v214
        %v359 = vmul.f32 %v215, %v215
        %v360 = vmul.f32 %v216, %v216
        %v361 = vmul.f32 %v217, %v217
        %v362 = vmul.f32 %v218, %v218
        %v363 = vmul.f32 %v219, %v219
        %v364 = vmul.f32 %v220, %v220
        %v365 = vmul.f32 %v221, %v221
        %v366 = vmul.f32 %v222, %v222
        %v367 = vmul.f32 %v223, %v223
        %v368 = vmul.f32 %v224, %v224
        %v369 = vmul.f32 %v225, %v225
        %v370 = vmul.f32 %v226, %v226
        %v371 = vmul.f32 %v227, %v227
        %v372 = vmul.f32 %v228, %v228
        %v373 = vmul.f32 %v229, %v229
        %374 = vadd.xlane.f32.xlu0 %v358
        %v375 = vpop.xlane.xlu0 %374
        %376 = vadd.xlane.f32.xlu0 %v359
        %v377 = vpop.xlane.xlu0 %376
        %378 = vadd.xlane.f32.xlu0 %v360
        %v379 = vpop.xlane.xlu0 %378
        %380 = vadd.xlane.f32.xlu0 %v361
        %v381 = vpop.xlane.xlu0 %380
        %382 = vadd.xlane.f32.xlu0 %v362
        %v383 = vpop.xlane.xlu0 %382
        %384 = vadd.xlane.f32.xlu0 %v363
        %v385 = vpop.xlane.xlu0 %384
        %386 = vadd.xlane.f32.xlu0 %v364
        %v387 = vpop.xlane.xlu0 %386
        %388 = vadd.xlane.f32.xlu0 %v365
        %v389 = vpop.xlane.xlu0 %388
        %390 = vadd.xlane.f32.xlu0 %v366
        %v391 = vpop.xlane.xlu0 %390
        %392 = vadd.xlane.f32.xlu0 %v367
        %v393 = vpop.xlane.xlu0 %392
        %394 = vadd.xlane.f32.xlu0 %v368
        %v395 = vpop.xlane.xlu0 %394
        %396 = vadd.xlane.f32.xlu0 %v369
        %v397 = vpop.xlane.xlu0 %396
        %398 = vadd.xlane.f32.xlu0 %v370
        %v399 = vpop.xlane.xlu0 %398
        %400 = vadd.xlane.f32.xlu0 %v371
        %v401 = vpop.xlane.xlu0 %400
        %402 = vadd.xlane.f32.xlu0 %v372
        %v403 = vpop.xlane.xlu0 %402
        %404 = vadd.xlane.f32.xlu0 %v373
        %v405 = vpop.xlane.xlu0 %404
        %v406 = vmul.f32 %v375, 0.0078125
        %v407 = vmul.f32 %v377, 0.0078125
        %v408 = vmul.f32 %v379, 0.0078125
        %v409 = vmul.f32 %v381, 0.0078125
        %v410 = vmul.f32 %v383, 0.0078125
        %v411 = vmul.f32 %v385, 0.0078125
        %v412 = vmul.f32 %v387, 0.0078125
        %v413 = vmul.f32 %v389, 0.0078125
        %v414 = vmul.f32 %v391, 0.0078125
        %v415 = vmul.f32 %v393, 0.0078125
        %v416 = vmul.f32 %v395, 0.0078125
        %v417 = vmul.f32 %v397, 0.0078125
        %v418 = vmul.f32 %v399, 0.0078125
        %v419 = vmul.f32 %v401, 0.0078125
        %v420 = vmul.f32 %v403, 0.0078125
        %v421 = vmul.f32 %v405, 0.0078125
        %v422 = vmul.f32 %v182, %v198
        %v423 = vmul.f32 %v183, %v199
        %v424 = vmul.f32 %v184, %v200
        %v425 = vmul.f32 %v185, %v201
        %v426 = vmul.f32 %v186, %v202
        %v427 = vmul.f32 %v187, %v203
        %v428 = vmul.f32 %v188, %v204
        %v429 = vmul.f32 %v189, %v205
        %v430 = vmul.f32 %v190, %v206
        %v431 = vmul.f32 %v191, %v207
        %v432 = vmul.f32 %v192, %v208
        %v433 = vmul.f32 %v193, %v209
        %v434 = vmul.f32 %v194, %v210
        %v435 = vmul.f32 %v195, %v211
        %v436 = vmul.f32 %v196, %v212
        %v437 = vmul.f32 %v197, %v213
        %438 = vadd.xlane.f32.xlu0 %v422
        %v439 = vpop.xlane.xlu0 %438
        %440 = vadd.xlane.f32.xlu0 %v423
        %v441 = vpop.xlane.xlu0 %440
        %442 = vadd.xlane.f32.xlu0 %v424
        %v443 = vpop.xlane.xlu0 %442
        %444 = vadd.xlane.f32.xlu0 %v425
        %v445 = vpop.xlane.xlu0 %444
        %446 = vadd.xlane.f32.xlu0 %v426
        %v447 = vpop.xlane.xlu0 %446
        %448 = vadd.xlane.f32.xlu0 %v427
        %v449 = vpop.xlane.xlu0 %448
        %450 = vadd.xlane.f32.xlu0 %v428
        %v451 = vpop.xlane.xlu0 %450
        %452 = vadd.xlane.f32.xlu0 %v429
        %v453 = vpop.xlane.xlu0 %452
        %454 = vadd.xlane.f32.xlu0 %v430
        %v455 = vpop.xlane.xlu0 %454
        %456 = vadd.xlane.f32.xlu0 %v431
        %v457 = vpop.xlane.xlu0 %456
        %458 = vadd.xlane.f32.xlu0 %v432
        %v459 = vpop.xlane.xlu0 %458
        %460 = vadd.xlane.f32.xlu0 %v433
        %v461 = vpop.xlane.xlu0 %460
        %462 = vadd.xlane.f32.xlu0 %v434
        %v463 = vpop.xlane.xlu0 %462
        %464 = vadd.xlane.f32.xlu0 %v435
        %v465 = vpop.xlane.xlu0 %464
        %466 = vadd.xlane.f32.xlu0 %v436
        %v467 = vpop.xlane.xlu0 %466
        %468 = vadd.xlane.f32.xlu0 %v437
        %v469 = vpop.xlane.xlu0 %468
        %v470 = vmul.f32 %v439, 0.0078125
        %v471 = vmul.f32 %v441, 0.0078125
        %v472 = vmul.f32 %v443, 0.0078125
        %v473 = vmul.f32 %v445, 0.0078125
        %v474 = vmul.f32 %v447, 0.0078125
        %v475 = vmul.f32 %v449, 0.0078125
        %v476 = vmul.f32 %v451, 0.0078125
        %v477 = vmul.f32 %v453, 0.0078125
        %v478 = vmul.f32 %v455, 0.0078125
        %v479 = vmul.f32 %v457, 0.0078125
        %v480 = vmul.f32 %v459, 0.0078125
        %v481 = vmul.f32 %v461, 0.0078125
        %v482 = vmul.f32 %v463, 0.0078125
        %v483 = vmul.f32 %v465, 0.0078125
        %v484 = vmul.f32 %v467, 0.0078125
        %v485 = vmul.f32 %v469, 0.0078125
        %v486 = vmul.f32 %v182, %v214
        %v487 = vmul.f32 %v183, %v215
        %v488 = vmul.f32 %v184, %v216
        %v489 = vmul.f32 %v185, %v217
        %v490 = vmul.f32 %v186, %v218
        %v491 = vmul.f32 %v187, %v219
        %v492 = vmul.f32 %v188, %v220
        %v493 = vmul.f32 %v189, %v221
        %v494 = vmul.f32 %v190, %v222
        %v495 = vmul.f32 %v191, %v223
        %v496 = vmul.f32 %v192, %v224
        %v497 = vmul.f32 %v193, %v225
        %v498 = vmul.f32 %v194, %v226
        %v499 = vmul.f32 %v195, %v227
        %v500 = vmul.f32 %v196, %v228
        %v501 = vmul.f32 %v197, %v229
        %502 = vadd.xlane.f32.xlu0 %v486
        %v503 = vpop.xlane.xlu0 %502
        %504 = vadd.xlane.f32.xlu0 %v487
        %v505 = vpop.xlane.xlu0 %504
        %506 = vadd.xlane.f32.xlu0 %v488
        %v507 = vpop.xlane.xlu0 %506
        %508 = vadd.xlane.f32.xlu0 %v489
        %v509 = vpop.xlane.xlu0 %508
        %510 = vadd.xlane.f32.xlu0 %v490
        %v511 = vpop.xlane.xlu0 %510
        %512 = vadd.xlane.f32.xlu0 %v491
        %v513 = vpop.xlane.xlu0 %512
        %514 = vadd.xlane.f32.xlu0 %v492
        %v515 = vpop.xlane.xlu0 %514
        %516 = vadd.xlane.f32.xlu0 %v493
        %v517 = vpop.xlane.xlu0 %516
        %518 = vadd.xlane.f32.xlu0 %v494
        %v519 = vpop.xlane.xlu0 %518
        %520 = vadd.xlane.f32.xlu0 %v495
        %v521 = vpop.xlane.xlu0 %520
        %522 = vadd.xlane.f32.xlu0 %v496
        %v523 = vpop.xlane.xlu0 %522
        %524 = vadd.xlane.f32.xlu0 %v497
        %v525 = vpop.xlane.xlu0 %524
        %526 = vadd.xlane.f32.xlu0 %v498
        %v527 = vpop.xlane.xlu0 %526
        %528 = vadd.xlane.f32.xlu0 %v499
        %v529 = vpop.xlane.xlu0 %528
        %530 = vadd.xlane.f32.xlu0 %v500
        %v531 = vpop.xlane.xlu0 %530
        %532 = vadd.xlane.f32.xlu0 %v501
        %v533 = vpop.xlane.xlu0 %532
        %v534 = vmul.f32 %v503, 0.0078125
        %v535 = vmul.f32 %v505, 0.0078125
        %v536 = vmul.f32 %v507, 0.0078125
        %v537 = vmul.f32 %v509, 0.0078125
        %v538 = vmul.f32 %v511, 0.0078125
        %v539 = vmul.f32 %v513, 0.0078125
        %v540 = vmul.f32 %v515, 0.0078125
        %v541 = vmul.f32 %v517, 0.0078125
        %v542 = vmul.f32 %v519, 0.0078125
        %v543 = vmul.f32 %v521, 0.0078125
        %v544 = vmul.f32 %v523, 0.0078125
        %v545 = vmul.f32 %v525, 0.0078125
        %v546 = vmul.f32 %v527, 0.0078125
        %v547 = vmul.f32 %v529, 0.0078125
        %v548 = vmul.f32 %v531, 0.0078125
        %v549 = vmul.f32 %v533, 0.0078125
        %v550 = vmul.f32 %v198, %v214
        %v551 = vmul.f32 %v199, %v215
        %v552 = vmul.f32 %v200, %v216
        %v553 = vmul.f32 %v201, %v217
        %v554 = vmul.f32 %v202, %v218
        %v555 = vmul.f32 %v203, %v219
        %v556 = vmul.f32 %v204, %v220
        %v557 = vmul.f32 %v205, %v221
        %v558 = vmul.f32 %v206, %v222
        %v559 = vmul.f32 %v207, %v223
        %v560 = vmul.f32 %v208, %v224
        %v561 = vmul.f32 %v209, %v225
        %v562 = vmul.f32 %v210, %v226
        %v563 = vmul.f32 %v211, %v227
        %v564 = vmul.f32 %v212, %v228
        %v565 = vmul.f32 %v213, %v229
        %566 = vadd.xlane.f32.xlu0 %v550
        %v567 = vpop.xlane.xlu0 %566
        %568 = vadd.xlane.f32.xlu0 %v551
        %v569 = vpop.xlane.xlu0 %568
        %570 = vadd.xlane.f32.xlu0 %v552
        %v571 = vpop.xlane.xlu0 %570
        %572 = vadd.xlane.f32.xlu0 %v553
        %v573 = vpop.xlane.xlu0 %572
        %574 = vadd.xlane.f32.xlu0 %v554
        %v575 = vpop.xlane.xlu0 %574
        %576 = vadd.xlane.f32.xlu0 %v555
        %v577 = vpop.xlane.xlu0 %576
        %578 = vadd.xlane.f32.xlu0 %v556
        %v579 = vpop.xlane.xlu0 %578
        %580 = vadd.xlane.f32.xlu0 %v557
        %v581 = vpop.xlane.xlu0 %580
        %582 = vadd.xlane.f32.xlu0 %v558
        %v583 = vpop.xlane.xlu0 %582
        %584 = vadd.xlane.f32.xlu0 %v559
        %v585 = vpop.xlane.xlu0 %584
        %586 = vadd.xlane.f32.xlu0 %v560
        %v587 = vpop.xlane.xlu0 %586
        %588 = vadd.xlane.f32.xlu0 %v561
        %v589 = vpop.xlane.xlu0 %588
        %590 = vadd.xlane.f32.xlu0 %v562
        %v591 = vpop.xlane.xlu0 %590
        %592 = vadd.xlane.f32.xlu0 %v563
        %v593 = vpop.xlane.xlu0 %592
        %594 = vadd.xlane.f32.xlu0 %v564
        %v595 = vpop.xlane.xlu0 %594
        %596 = vadd.xlane.f32.xlu0 %v565
        %v597 = vpop.xlane.xlu0 %596
        %v598 = vmul.f32 %v567, 0.0078125
        %v599 = vmul.f32 %v569, 0.0078125
        %v600 = vmul.f32 %v571, 0.0078125
        %v601 = vmul.f32 %v573, 0.0078125
        %v602 = vmul.f32 %v575, 0.0078125
        %v603 = vmul.f32 %v577, 0.0078125
        %v604 = vmul.f32 %v579, 0.0078125
        %v605 = vmul.f32 %v581, 0.0078125
        %v606 = vmul.f32 %v583, 0.0078125
        %v607 = vmul.f32 %v585, 0.0078125
        %v608 = vmul.f32 %v587, 0.0078125
        %v609 = vmul.f32 %v589, 0.0078125
        %v610 = vmul.f32 %v591, 0.0078125
        %v611 = vmul.f32 %v593, 0.0078125
        %v612 = vmul.f32 %v595, 0.0078125
        %v613 = vmul.f32 %v597, 0.0078125
        %614 = vadd.xlane.f32.xlu0 %v182
        %v615 = vpop.xlane.xlu0 %614
        %616 = vadd.xlane.f32.xlu0 %v183
        %v617 = vpop.xlane.xlu0 %616
        %618 = vadd.xlane.f32.xlu0 %v184
        %v619 = vpop.xlane.xlu0 %618
        %620 = vadd.xlane.f32.xlu0 %v185
        %v621 = vpop.xlane.xlu0 %620
        %622 = vadd.xlane.f32.xlu0 %v186
        %v623 = vpop.xlane.xlu0 %622
        %624 = vadd.xlane.f32.xlu0 %v187
        %v625 = vpop.xlane.xlu0 %624
        %626 = vadd.xlane.f32.xlu0 %v188
        %v627 = vpop.xlane.xlu0 %626
        %628 = vadd.xlane.f32.xlu0 %v189
        %v629 = vpop.xlane.xlu0 %628
        %630 = vadd.xlane.f32.xlu0 %v190
        %v631 = vpop.xlane.xlu0 %630
        %632 = vadd.xlane.f32.xlu0 %v191
        %v633 = vpop.xlane.xlu0 %632
        %634 = vadd.xlane.f32.xlu0 %v192
        %v635 = vpop.xlane.xlu0 %634
        %636 = vadd.xlane.f32.xlu0 %v193
        %v637 = vpop.xlane.xlu0 %636
        %638 = vadd.xlane.f32.xlu0 %v194
        %v639 = vpop.xlane.xlu0 %638
        %640 = vadd.xlane.f32.xlu0 %v195
        %v641 = vpop.xlane.xlu0 %640
        %642 = vadd.xlane.f32.xlu0 %v196
        %v643 = vpop.xlane.xlu0 %642
        %644 = vadd.xlane.f32.xlu0 %v197
        %v645 = vpop.xlane.xlu0 %644
        %v646 = vmul.f32 %v615, 0.0078125
        %v647 = vmul.f32 %v617, 0.0078125
        %v648 = vmul.f32 %v619, 0.0078125
        %v649 = vmul.f32 %v621, 0.0078125
        %v650 = vmul.f32 %v623, 0.0078125
        %v651 = vmul.f32 %v625, 0.0078125
        %v652 = vmul.f32 %v627, 0.0078125
        %v653 = vmul.f32 %v629, 0.0078125
        %v654 = vmul.f32 %v631, 0.0078125
        %v655 = vmul.f32 %v633, 0.0078125
        %v656 = vmul.f32 %v635, 0.0078125
        %v657 = vmul.f32 %v637, 0.0078125
        %v658 = vmul.f32 %v639, 0.0078125
        %v659 = vmul.f32 %v641, 0.0078125
        %v660 = vmul.f32 %v643, 0.0078125
        %v661 = vmul.f32 %v645, 0.0078125
        %662 = vadd.xlane.f32.xlu0 %v198
        %v663 = vpop.xlane.xlu0 %662
        %664 = vadd.xlane.f32.xlu0 %v199
        %v665 = vpop.xlane.xlu0 %664
        %666 = vadd.xlane.f32.xlu0 %v200
        %v667 = vpop.xlane.xlu0 %666
        %668 = vadd.xlane.f32.xlu0 %v201
        %v669 = vpop.xlane.xlu0 %668
        %670 = vadd.xlane.f32.xlu0 %v202
        %v671 = vpop.xlane.xlu0 %670
        %672 = vadd.xlane.f32.xlu0 %v203
        %v673 = vpop.xlane.xlu0 %672
        %674 = vadd.xlane.f32.xlu0 %v204
        %v675 = vpop.xlane.xlu0 %674
        %676 = vadd.xlane.f32.xlu0 %v205
        %v677 = vpop.xlane.xlu0 %676
        %678 = vadd.xlane.f32.xlu0 %v206
        %v679 = vpop.xlane.xlu0 %678
        %680 = vadd.xlane.f32.xlu0 %v207
        %v681 = vpop.xlane.xlu0 %680
        %682 = vadd.xlane.f32.xlu0 %v208
        %v683 = vpop.xlane.xlu0 %682
        %684 = vadd.xlane.f32.xlu0 %v209
        %v685 = vpop.xlane.xlu0 %684
        %686 = vadd.xlane.f32.xlu0 %v210
        %v687 = vpop.xlane.xlu0 %686
        %688 = vadd.xlane.f32.xlu0 %v211
        %v689 = vpop.xlane.xlu0 %688
        %690 = vadd.xlane.f32.xlu0 %v212
        %v691 = vpop.xlane.xlu0 %690
        %692 = vadd.xlane.f32.xlu0 %v213
        %v693 = vpop.xlane.xlu0 %692
        %v694 = vmul.f32 %v663, 0.0078125
        %v695 = vmul.f32 %v665, 0.0078125
        %v696 = vmul.f32 %v667, 0.0078125
        %v697 = vmul.f32 %v669, 0.0078125
        %v698 = vmul.f32 %v671, 0.0078125
        %v699 = vmul.f32 %v673, 0.0078125
        %v700 = vmul.f32 %v675, 0.0078125
        %v701 = vmul.f32 %v677, 0.0078125
        %v702 = vmul.f32 %v679, 0.0078125
        %v703 = vmul.f32 %v681, 0.0078125
        %v704 = vmul.f32 %v683, 0.0078125
        %v705 = vmul.f32 %v685, 0.0078125
        %v706 = vmul.f32 %v687, 0.0078125
        %v707 = vmul.f32 %v689, 0.0078125
        %v708 = vmul.f32 %v691, 0.0078125
        %v709 = vmul.f32 %v693, 0.0078125
        %710 = vadd.xlane.f32.xlu0 %v214
        %v711 = vpop.xlane.xlu0 %710
        %712 = vadd.xlane.f32.xlu0 %v215
        %v713 = vpop.xlane.xlu0 %712
        %714 = vadd.xlane.f32.xlu0 %v216
        %v715 = vpop.xlane.xlu0 %714
        %716 = vadd.xlane.f32.xlu0 %v217
        %v717 = vpop.xlane.xlu0 %716
        %718 = vadd.xlane.f32.xlu0 %v218
        %v719 = vpop.xlane.xlu0 %718
        %720 = vadd.xlane.f32.xlu0 %v219
        %v721 = vpop.xlane.xlu0 %720
        %722 = vadd.xlane.f32.xlu0 %v220
        %v723 = vpop.xlane.xlu0 %722
        %724 = vadd.xlane.f32.xlu0 %v221
        %v725 = vpop.xlane.xlu0 %724
        %726 = vadd.xlane.f32.xlu0 %v222
        %v727 = vpop.xlane.xlu0 %726
        %728 = vadd.xlane.f32.xlu0 %v223
        %v729 = vpop.xlane.xlu0 %728
        %730 = vadd.xlane.f32.xlu0 %v224
        %v731 = vpop.xlane.xlu0 %730
        %732 = vadd.xlane.f32.xlu0 %v225
        %v733 = vpop.xlane.xlu0 %732
        %734 = vadd.xlane.f32.xlu0 %v226
        %v735 = vpop.xlane.xlu0 %734
        %736 = vadd.xlane.f32.xlu0 %v227
        %v737 = vpop.xlane.xlu0 %736
        %738 = vadd.xlane.f32.xlu0 %v228
        %v739 = vpop.xlane.xlu0 %738
        %740 = vadd.xlane.f32.xlu0 %v229
        %v741 = vpop.xlane.xlu0 %740
        %v742 = vmul.f32 %v711, 0.0078125
        %v743 = vmul.f32 %v713, 0.0078125
        %v744 = vmul.f32 %v715, 0.0078125
        %v745 = vmul.f32 %v717, 0.0078125
        %v746 = vmul.f32 %v719, 0.0078125
        %v747 = vmul.f32 %v721, 0.0078125
        %v748 = vmul.f32 %v723, 0.0078125
        %v749 = vmul.f32 %v725, 0.0078125
        %v750 = vmul.f32 %v727, 0.0078125
        %v751 = vmul.f32 %v729, 0.0078125
        %v752 = vmul.f32 %v731, 0.0078125
        %v753 = vmul.f32 %v733, 0.0078125
        %v754 = vmul.f32 %v735, 0.0078125
        %v755 = vmul.f32 %v737, 0.0078125
        %v756 = vmul.f32 %v739, 0.0078125
        %v757 = vmul.f32 %v741, 0.0078125
        %v758 = vlaneseq
        %v759 = vand.u32 %v758, 127
        %vm760 = vcmp.eq.s32.totalorder %v759, 0
        %v761 = vsel %vm760, 1, 0
        %vm762 = vcmp.eq.s32.totalorder %v761, 1
        %v763 = vsel %vm762, %v278, 0.0
        %v764 = vsel %vm762, %v279, 0.0
        %v765 = vsel %vm762, %v280, 0.0
        %v766 = vsel %vm762, %v281, 0.0
        %v767 = vsel %vm762, %v282, 0.0
        %v768 = vsel %vm762, %v283, 0.0
        %v769 = vsel %vm762, %v284, 0.0
        %v770 = vsel %vm762, %v285, 0.0
        %v771 = vsel %vm762, %v286, 0.0
        %v772 = vsel %vm762, %v287, 0.0
        %v773 = vsel %vm762, %v288, 0.0
        %v774 = vsel %vm762, %v289, 0.0
        %v775 = vsel %vm762, %v290, 0.0
        %v776 = vsel %vm762, %v291, 0.0
        %v777 = vsel %vm762, %v292, 0.0
        %v778 = vsel %vm762, %v293, 0.0
        %vm779 = vcmp.eq.s32.totalorder %v759, 1
        %v780 = vsel %vm779, 1, 0
        %vm781 = vcmp.eq.s32.totalorder %v780, 1
        %v782 = vsel %vm781, %v342, %v763
        %v783 = vsel %vm781, %v343, %v764
        %v784 = vsel %vm781, %v344, %v765
        %v785 = vsel %vm781, %v345, %v766
        %v786 = vsel %vm781, %v346, %v767
        %v787 = vsel %vm781, %v347, %v768
        %v788 = vsel %vm781, %v348, %v769
        %v789 = vsel %vm781, %v349, %v770
        %v790 = vsel %vm781, %v350, %v771
        %v791 = vsel %vm781, %v351, %v772
        %v792 = vsel %vm781, %v352, %v773
        %v793 = vsel %vm781, %v353, %v774
        %v794 = vsel %vm781, %v354, %v775
        %v795 = vsel %vm781, %v355, %v776
        %v796 = vsel %vm781, %v356, %v777
        %v797 = vsel %vm781, %v357, %v778
        %vm798 = vcmp.eq.s32.totalorder %v759, 2
        %v799 = vsel %vm798, 1, 0
        %vm800 = vcmp.eq.s32.totalorder %v799, 1
        %v801 = vsel %vm800, %v406, %v782
        %v802 = vsel %vm800, %v407, %v783
        %v803 = vsel %vm800, %v408, %v784
        %v804 = vsel %vm800, %v409, %v785
        %v805 = vsel %vm800, %v410, %v786
        %v806 = vsel %vm800, %v411, %v787
        %v807 = vsel %vm800, %v412, %v788
        %v808 = vsel %vm800, %v413, %v789
        %v809 = vsel %vm800, %v414, %v790
        %v810 = vsel %vm800, %v415, %v791
        %v811 = vsel %vm800, %v416, %v792
        %v812 = vsel %vm800, %v417, %v793
        %v813 = vsel %vm800, %v418, %v794
        %v814 = vsel %vm800, %v419, %v795
        %v815 = vsel %vm800, %v420, %v796
        %v816 = vsel %vm800, %v421, %v797
        %vm817 = vcmp.eq.s32.totalorder %v759, 3
        %v818 = vsel %vm817, 1, 0
        %vm819 = vcmp.eq.s32.totalorder %v818, 1
        %v820 = vsel %vm819, %v470, %v801
        %v821 = vsel %vm819, %v471, %v802
        %v822 = vsel %vm819, %v472, %v803
        %v823 = vsel %vm819, %v473, %v804
        %v824 = vsel %vm819, %v474, %v805
        %v825 = vsel %vm819, %v475, %v806
        %v826 = vsel %vm819, %v476, %v807
        %v827 = vsel %vm819, %v477, %v808
        %v828 = vsel %vm819, %v478, %v809
        %v829 = vsel %vm819, %v479, %v810
        %v830 = vsel %vm819, %v480, %v811
        %v831 = vsel %vm819, %v481, %v812
        %v832 = vsel %vm819, %v482, %v813
        %v833 = vsel %vm819, %v483, %v814
        %v834 = vsel %vm819, %v484, %v815
        %v835 = vsel %vm819, %v485, %v816
        %vm836 = vcmp.eq.s32.totalorder %v759, 4
        %v837 = vsel %vm836, 1, 0
        %vm838 = vcmp.eq.s32.totalorder %v837, 1
        %v839 = vsel %vm838, %v534, %v820
        %v840 = vsel %vm838, %v535, %v821
        %v841 = vsel %vm838, %v536, %v822
        %v842 = vsel %vm838, %v537, %v823
        %v843 = vsel %vm838, %v538, %v824
        %v844 = vsel %vm838, %v539, %v825
        %v845 = vsel %vm838, %v540, %v826
        %v846 = vsel %vm838, %v541, %v827
        %v847 = vsel %vm838, %v542, %v828
        %v848 = vsel %vm838, %v543, %v829
        %v849 = vsel %vm838, %v544, %v830
        %v850 = vsel %vm838, %v545, %v831
        %v851 = vsel %vm838, %v546, %v832
        %v852 = vsel %vm838, %v547, %v833
        %v853 = vsel %vm838, %v548, %v834
        %v854 = vsel %vm838, %v549, %v835
        %vm855 = vcmp.eq.s32.totalorder %v759, 5
        %v856 = vsel %vm855, 1, 0
        %vm857 = vcmp.eq.s32.totalorder %v856, 1
        %v858 = vsel %vm857, %v598, %v839
        %v859 = vsel %vm857, %v599, %v840
        %v860 = vsel %vm857, %v600, %v841
        %v861 = vsel %vm857, %v601, %v842
        %v862 = vsel %vm857, %v602, %v843
        %v863 = vsel %vm857, %v603, %v844
        %v864 = vsel %vm857, %v604, %v845
        %v865 = vsel %vm857, %v605, %v846
        %v866 = vsel %vm857, %v606, %v847
        %v867 = vsel %vm857, %v607, %v848
        %v868 = vsel %vm857, %v608, %v849
        %v869 = vsel %vm857, %v609, %v850
        %v870 = vsel %vm857, %v610, %v851
        %v871 = vsel %vm857, %v611, %v852
        %v872 = vsel %vm857, %v612, %v853
        %v873 = vsel %vm857, %v613, %v854
        %vm874 = vcmp.eq.s32.totalorder %v759, 6
        %v875 = vsel %vm874, 1, 0
        %vm876 = vcmp.eq.s32.totalorder %v875, 1
        %v877 = vsel %vm876, %v646, %v858
        %v878 = vsel %vm876, %v647, %v859
        %v879 = vsel %vm876, %v648, %v860
        %v880 = vsel %vm876, %v649, %v861
        %v881 = vsel %vm876, %v650, %v862
        %v882 = vsel %vm876, %v651, %v863
        %v883 = vsel %vm876, %v652, %v864
        %v884 = vsel %vm876, %v653, %v865
        %v885 = vsel %vm876, %v654, %v866
        %v886 = vsel %vm876, %v655, %v867
        %v887 = vsel %vm876, %v656, %v868
        %v888 = vsel %vm876, %v657, %v869
        %v889 = vsel %vm876, %v658, %v870
        %v890 = vsel %vm876, %v659, %v871
        %v891 = vsel %vm876, %v660, %v872
        %v892 = vsel %vm876, %v661, %v873
        %vm893 = vcmp.eq.s32.totalorder %v759, 7
        %v894 = vsel %vm893, 1, 0
        %vm895 = vcmp.eq.s32.totalorder %v894, 1
        %v896 = vsel %vm895, %v694, %v877
        %v897 = vsel %vm895, %v695, %v878
        %v898 = vsel %vm895, %v696, %v879
        %v899 = vsel %vm895, %v697, %v880
        %v900 = vsel %vm895, %v698, %v881
        %v901 = vsel %vm895, %v699, %v882
        %v902 = vsel %vm895, %v700, %v883
        %v903 = vsel %vm895, %v701, %v884
        %v904 = vsel %vm895, %v702, %v885
        %v905 = vsel %vm895, %v703, %v886
        %v906 = vsel %vm895, %v704, %v887
        %v907 = vsel %vm895, %v705, %v888
        %v908 = vsel %vm895, %v706, %v889
        %v909 = vsel %vm895, %v707, %v890
        %v910 = vsel %vm895, %v708, %v891
        %v911 = vsel %vm895, %v709, %v892
        %vm912 = vcmp.eq.s32.totalorder %v759, 8
        %v913 = vsel %vm912, 1, 0
        %vm914 = vcmp.eq.s32.totalorder %v913, 1
        %v915 = vsel %vm914, %v742, %v896
        %v916 = vsel %vm914, %v743, %v897
        %v917 = vsel %vm914, %v744, %v898
        %v918 = vsel %vm914, %v745, %v899
        %v919 = vsel %vm914, %v746, %v900
        %v920 = vsel %vm914, %v747, %v901
        %v921 = vsel %vm914, %v748, %v902
        %v922 = vsel %vm914, %v749, %v903
        %v923 = vsel %vm914, %v750, %v904
        %v924 = vsel %vm914, %v751, %v905
        %v925 = vsel %vm914, %v752, %v906
        %v926 = vsel %vm914, %v753, %v907
        %v927 = vsel %vm914, %v754, %v908
        %v928 = vsel %vm914, %v755, %v909
        %v929 = vsel %vm914, %v756, %v910
        %v930 = vsel %vm914, %v757, %v911
        %931 = vxpose.xlu0.b32.start [1/16] %v915, 128
        %932 = vxpose.xlu0.b32.cont [2/16] %v916, 128
        %933 = vxpose.xlu0.b32.cont [3/16] %v917, 128
        %934 = vxpose.xlu0.b32.cont [4/16] %v918, 128
        %935 = vxpose.xlu0.b32.cont [5/16] %v919, 128
        %936 = vxpose.xlu0.b32.cont [6/16] %v920, 128
        %937 = vxpose.xlu0.b32.cont [7/16] %v921, 128
        %938 = vxpose.xlu0.b32.cont [8/16] %v922, 128
        %939 = vxpose.xlu0.b32.cont [9/16] %v923, 128
        %940 = vxpose.xlu0.b32.cont [10/16] %v924, 128
        %941 = vxpose.xlu0.b32.cont [11/16] %v925, 128
        %942 = vxpose.xlu0.b32.cont [12/16] %v926, 128
        %943 = vxpose.xlu0.b32.cont [13/16] %v927, 128
        %944 = vxpose.xlu0.b32.cont [14/16] %v928, 128
        %945 = vxpose.xlu0.b32.cont [15/16] %v929, 128
        %946 = vxpose.xlu0.b32.end [16/16] %v930, 128
        %v947 = vpop.trf.xlu0
        %v948 = vpop.trf.xlu0
        %v949 = vpop.trf.xlu0
        %v950 = vpop.trf.xlu0
        %v951 = vpop.trf.xlu0
        %v952 = vpop.trf.xlu0
        %v953 = vpop.trf.xlu0
        %v954 = vpop.trf.xlu0
        %v955 = vpop.trf.xlu0
        %v956 = vpop.trf.xlu0
        %v957 = vpop.trf.xlu0
        %v958 = vpop.trf.xlu0
        %v959 = vpop.trf.xlu0
        %v960 = vpop.trf.xlu0
        %v961 = vpop.trf.xlu0
        %v962 = vpop.trf.xlu0
        %v963 = vmul.f32 %v947, %v947
        %v965 = vrot.slane %v963, 6
        %v967 = vsub.f32 %v947, %v965
        %v968 = vadd.f32 %v967, 1e-05
        %v969 = vadd.f32 %v967, 2e-05
        %v970 = vmul.f32 %v948, %v948
        %v972 = vrot.slane %v970, 6
        %v974 = vsub.f32 %v947, %v972
        %v975 = vadd.f32 %v974, 3e-05
        %v977 = vrot.slane %v947, 1
        %v979 = vmul.f32 %v947, %v977
        %v981 = vrot.slane %v979, 3
        %v983 = vsub.f32 %v947, %v981
        %v985 = vrot.slane %v948, 2
        %v987 = vmul.f32 %v947, %v985
        %v989 = vrot.slane %v987, 2
        %v991 = vsub.f32 %v947, %v989
        %v992 = vrot.slane %v948, 1
        %v994 = vmul.f32 %v947, %v992
        %v996 = vrot.slane %v994, 2
        %v998 = vsub.f32 %v947, %v996
        %v1000 = vrot.slane %v969, 1
        %v1002 = vadd.f32 %v968, %v1000
        %v1004 = vrot.slane %v975, 2
        %v1006 = vadd.f32 %v1002, %v1004
        %v1007 = vmul.f32 %v1006, 0.33333334
        %v1008 = vsub.f32 %v968, %v1007
        %v1010 = vrot.slane %v1007, 7
        %v1012 = vsub.f32 %v969, %v1010
        %v1013 = vrot.slane %v1007, 6
        %v1015 = vsub.f32 %v975, %v1013
        %v1016 = vmul.f32 %v1008, %v1008
        %v1017 = vmul.f32 %v1012, %v1012
        %v1019 = vrot.slane %v1017, 1
        %v1021 = vadd.f32 %v1016, %v1019
        %v1022 = vmul.f32 %v1015, %v1015
        %v1024 = vrot.slane %v1022, 2
        %v1026 = vadd.f32 %v1021, %v1024
        %v1027 = vmul.f32 %v983, %v983
        %v1028 = vmul.f32 %v991, %v991
        %v1030 = vrot.slane %v1028, 1
        %v1032 = vadd.f32 %v1027, %v1030
        %v1033 = vmul.f32 %v998, %v998
        %v1035 = vrot.slane %v1033, 2
        %v1037 = vadd.f32 %v1032, %v1035
        %v1038 = vmul.f32 %v1037, 2.0
        %v1040 = vrot.slane %v1038, 3
        %v1042 = vadd.f32 %v1026, %v1040
        %v1043 = vmul.f32 %v1042, 0.16666667
        %v1044 = vrsqrt.pop %v1043
        %v1045 = vmul.f32 %v1043, %v1044
        %vm1046 = vcmp.eq.f32.partialorder %v1043, inf
        %v1047 = vsel %vm1046, %v1043, %v1045
        %vm1048 = vcmp.eq.f32.partialorder %v1043, 0.0
        %v1049 = vand.u32 %v1043, 2147483648
        %v1050 = vsel %vm1048, %v1049, %v1047
        %v1051 = vmax.f32 %v1050, 1e-12
        %v1052 = vrcp.pop %v1051
        %v1053 = vmul.f32 %v1051, %v1052
        %v1054 = vsub.f32 2.0, %v1053
        %v1055 = vmul.f32 %v1052, %v1054
        %v1057 = vrot.slane %v1015, 1
        %v1059 = vmul.f32 %v1012, %v1057
        %v1060 = vrot.slane %v1033, 4
        %v1062 = vsub.f32 %v1059, %v1060
        %v1064 = vrot.slane %v1062, 1
        %v1066 = vmul.f32 %v1008, %v1064
        %v1067 = vrot.slane %v1015, 7
        %v1069 = vmul.f32 %v983, %v1067
        %v1071 = vrot.slane %v991, 7
        %v1073 = vmul.f32 %v998, %v1071
        %v1075 = vrot.slane %v1073, 2
        %v1077 = vsub.f32 %v1069, %v1075
        %v1078 = vmul.f32 %v983, %v1077
        %v1080 = vrot.slane %v1078, 3
        %v1082 = vsub.f32 %v1066, %v1080
        %v1084 = vrot.slane %v998, 2
        %v1086 = vmul.f32 %v983, %v1084
        %v1087 = vrot.slane %v991, 3
        %v1089 = vmul.f32 %v1012, %v1087
        %v1091 = vrot.slane %v1089, 6
        %v1093 = vsub.f32 %v1086, %v1091
        %v1095 = vrot.slane %v1093, 7
        %v1097 = vmul.f32 %v991, %v1095
        %v1099 = vrot.slane %v1097, 4
        %v1101 = vadd.f32 %v1082, %v1099
        %v1102 = vmul.f32 %v1101, 0.5
        %v1103 = vmul.f32 %v1102, %v1055
        %v1104 = vmul.f32 %v1103, %v1055
        %v1105 = vmul.f32 %v1104, %v1055
        %vm1106 = vcmp.gt.f32.partialorder %v1042, 1e-22
        %v1107 = vsel %vm1106, %v1105, 1.0
        %v1108 = vmax.f32 %v1107, -1.0
        %v1109 = vmin.f32 %v1108, 1.0
        %v1110 = vand.u32 2147483647, %v1109
        %v1111 = vmul.f32 %v1110, -0.0012624911
        %v1112 = vadd.f32 %v1111, 0.00667009
        %v1113 = vmul.f32 %v1112, %v1110
        %v1114 = vadd.f32 %v1113, -0.017088126
        %v1115 = vmul.f32 %v1114, %v1110
        %v1116 = vadd.f32 %v1115, 0.03089188
        %v1117 = vmul.f32 %v1116, %v1110
        %v1118 = vadd.f32 %v1117, -0.050174303
        %v1119 = vmul.f32 %v1118, %v1110
        %v1120 = vadd.f32 %v1119, 0.08897899
        %v1121 = vmul.f32 %v1120, %v1110
        %v1122 = vadd.f32 %v1121, -0.2145988
        %v1123 = vmul.f32 %v1122, %v1110
        %v1124 = vadd.f32 %v1123, 1.5707963
        %v1125 = vsub.f32 1.0, %v1110
        %v1126 = vmax.f32 %v1125, 0.0
        %v1127 = vrsqrt.pop %v1126
        %v1128 = vmul.f32 %v1126, %v1127
        %vm1129 = vcmp.eq.f32.partialorder %v1126, inf
        %v1130 = vsel %vm1129, %v1126, %v1128
        %vm1131 = vcmp.eq.f32.partialorder %v1126, 0.0
        %v1132 = vand.u32 %v1126, 2147483648
        %v1133 = vsel %vm1131, %v1132, %v1130
        %v1134 = vmul.f32 %v1133, %v1124
        %vm1135 = vcmp.ge.f32.partialorder %v1109, 0.0
        %v1136 = vsub.f32 3.1415927, %v1134
        %v1137 = vsel %vm1135, %v1134, %v1136
        %v1138 = vmul.f32 %v1137, 0.33333334
        %v1139 = vmul.f32 %v1138, %v1138
        %v1140 = vmul.f32 %v1139, 2.4801588e-05
        %v1141 = vadd.f32 %v1140, -0.0013888889
        %v1142 = vmul.f32 %v1139, %v1141
        %v1143 = vadd.f32 %v1142, 0.041666668
        %v1144 = vmul.f32 %v1139, %v1143
        %v1145 = vadd.f32 %v1144, -0.5
        %v1146 = vmul.f32 %v1139, %v1145
        %v1147 = vadd.f32 %v1146, 1.0
        %v1148 = vmul.f32 %v1139, 2.7557319e-06
        %v1149 = vadd.f32 %v1148, -0.0001984127
        %v1150 = vmul.f32 %v1139, %v1149
        %v1151 = vadd.f32 %v1150, 0.008333334
        %v1152 = vmul.f32 %v1139, %v1151
        %v1153 = vadd.f32 %v1152, -0.16666667
        %v1154 = vmul.f32 %v1139, %v1153
        %v1155 = vadd.f32 %v1154, 1.0
        %v1156 = vmul.f32 %v1138, %v1155
        %v1157 = vmul.f32 %v1050, 2.0
        %v1158 = vmul.f32 %v1157, %v1147
        %v1159 = vadd.f32 %v1007, %v1158
        %v1160 = vmul.f32 %v1156, 1.7320508
        %v1161 = vadd.f32 %v1147, %v1160
        %v1162 = vmul.f32 %v1050, %v1161
        %v1163 = vsub.f32 %v1007, %v1162
        %v1164 = vmul.f32 %v1007, 3.0
        %v1165 = vsub.f32 %v1164, %v1159
        %v1166 = vsub.f32 %v1165, %v1163
        %v1167 = vmul.f32 %v1159, 3.5762787e-07
        %vm1168 = vcmp.gt.f32.partialorder %v1159, 0.0
        %vm1169 = vcmp.gt.f32.partialorder %v1166, %v1167
        %vm1170 = vcmp.gt.f32.partialorder %v1163, %v1167
        %v1171 = vadd.f32 %v1159, 1e-05
        %v1172 = vmax.f32 %v1171, 1e-30
        %v1173 = vadd.f32 %v1166, 1e-05
        %v1174 = vmax.f32 %v1173, 1e-30
        %v1175 = vadd.f32 %v1163, 1e-05
        %v1176 = vmax.f32 %v1175, 1e-30
        %v1177 = vrsqrt.pop %v1172
        %v1178 = vrsqrt.pop %v1174
        %v1179 = vrsqrt.pop %v1176
        %v1180 = vmul.f32 %v1172, %v1177
        %v1181 = vmul.f32 %v1174, %v1178
        %v1182 = vmul.f32 %v1176, %v1179
        %v1183 = vsel %vm1168, %v1177, 0.0
        %v1184 = vsel %vm1169, %v1178, 0.0
        %v1185 = vsel %vm1170, %v1179, 0.0
        %v1186 = vmul.f32 %v1180, %v1181
        %v1187 = vadd.f32 %v1180, %v1181
        %v1188 = vmul.f32 %v1186, %v1187
        %v1189 = vrcp.pop %v1188
        %v1190 = vmul.f32 %v1188, %v1189
        %v1191 = vsub.f32 2.0, %v1190
        %v1192 = vmul.f32 %v1189, %v1191
        %v1193 = vsub.f32 0.0, %v1192
        %v1194 = vsub.f32 %v1183, %v1184
        %v1195 = vsub.f32 %v1159, %v1166
        %v1196 = vmax.f32 %v1195, 1e-10
        %v1197 = vrcp.pop %v1196
        %v1198 = vmul.f32 %v1196, %v1197
        %v1199 = vsub.f32 2.0, %v1198
        %v1200 = vmul.f32 %v1197, %v1199
        %v1201 = vmul.f32 %v1194, %v1200
        %v1202 = vsel %vm1169, %v1193, %v1201
        %v1203 = vmul.f32 %v1181, %v1182
        %v1204 = vadd.f32 %v1181, %v1182
        %v1205 = vmul.f32 %v1203, %v1204
        %v1206 = vrcp.pop %v1205
        %v1207 = vmul.f32 %v1205, %v1206
        %v1208 = vsub.f32 2.0, %v1207
        %v1209 = vmul.f32 %v1206, %v1208
        %v1210 = vsub.f32 0.0, %v1209
        %v1211 = vsub.f32 %v1184, %v1185
        %v1212 = vsub.f32 %v1166, %v1163
        %v1213 = vmax.f32 %v1212, 1e-10
        %v1214 = vrcp.pop %v1213
        %v1215 = vmul.f32 %v1213, %v1214
        %v1216 = vsub.f32 2.0, %v1215
        %v1217 = vmul.f32 %v1214, %v1216
        %v1218 = vmul.f32 %v1211, %v1217
        %v1219 = vsel %vm1169, %v1218, 0.0
        %v1220 = vsel %vm1170, %v1210, %v1219
        %v1221 = vadd.f32 %v1187, %v1182
        %v1222 = vmul.f32 %v1187, %v1204
        %v1223 = vadd.f32 %v1180, %v1182
        %v1224 = vmul.f32 %v1222, %v1223
        %v1225 = vmul.f32 %v1224, %v1180
        %v1226 = vmul.f32 %v1225, %v1181
        %v1227 = vmul.f32 %v1226, %v1182
        %v1228 = vrcp.pop %v1227
        %v1229 = vmul.f32 %v1227, %v1228
        %v1230 = vsub.f32 2.0, %v1229
        %v1231 = vmul.f32 %v1228, %v1230
        %v1232 = vmul.f32 %v1221, %v1231
        %v1233 = vsub.f32 %v1202, %v1220
        %v1234 = vsub.f32 %v1159, %v1163
        %v1235 = vmax.f32 %v1234, 1e-10
        %v1236 = vrcp.pop %v1235
        %v1237 = vmul.f32 %v1235, %v1236
        %v1238 = vsub.f32 2.0, %v1237
        %v1239 = vmul.f32 %v1236, %v1238
        %v1240 = vmul.f32 %v1233, %v1239
        %v1241 = vsel %vm1170, %v1232, %v1240
        %v1242 = vsub.f32 %v968, %v1159
        %v1244 = vrot.slane %v1159, 7
        %v1246 = vsub.f32 %v969, %v1244
        %v1247 = vrot.slane %v1159, 6
        %v1249 = vsub.f32 %v975, %v1247
        %v1250 = vsub.f32 %v968, %v1166
        %v1252 = vrot.slane %v1166, 7
        %v1254 = vsub.f32 %v969, %v1252
        %v1255 = vrot.slane %v1166, 6
        %v1257 = vsub.f32 %v975, %v1255
        %v1258 = vmul.f32 %v1242, %v1250
        %v1260 = vrot.slane %v1027, 3
        %v1262 = vadd.f32 %v1258, %v1260
        %v1263 = vrot.slane %v1028, 4
        %v1265 = vadd.f32 %v1262, %v1263
        %v1267 = vrot.slane %v983, 3
        %v1269 = vmul.f32 %v1242, %v1267
        %v1271 = vrot.slane %v1254, 6
        %v1273 = vmul.f32 %v983, %v1271
        %v1275 = vrot.slane %v1273, 3
        %v1277 = vadd.f32 %v1269, %v1275
        %v1278 = vrot.slane %v1073, 5
        %v1280 = vadd.f32 %v1277, %v1278
        %v1281 = vrot.slane %v991, 4
        %v1283 = vmul.f32 %v1242, %v1281
        %v1285 = vrot.slane %v1086, 3
        %v1287 = vadd.f32 %v1283, %v1285
        %v1289 = vrot.slane %v1257, 6
        %v1291 = vmul.f32 %v991, %v1289
        %v1293 = vrot.slane %v1291, 4
        %v1295 = vadd.f32 %v1287, %v1293
        %v1296 = vmul.f32 %v1246, %v1254
        %v1298 = vrot.slane %v1296, 6
        %v1300 = vadd.f32 %v1027, %v1298
        %v1301 = vadd.f32 %v1300, %v1035
        %v1302 = vrot.slane %v991, 1
        %v1304 = vmul.f32 %v983, %v1302
        %v1305 = vrot.slane %v998, 4
        %v1307 = vmul.f32 %v1246, %v1305
        %v1309 = vrot.slane %v1307, 6
        %v1311 = vadd.f32 %v1304, %v1309
        %v1312 = vrot.slane %v1257, 5
        %v1314 = vmul.f32 %v998, %v1312
        %v1316 = vrot.slane %v1314, 2
        %v1318 = vadd.f32 %v1311, %v1316
        %v1319 = vrot.slane %v1033, 1
        %v1321 = vadd.f32 %v1028, %v1319
        %v1322 = vmul.f32 %v1249, %v1257
        %v1324 = vrot.slane %v1322, 6
        %v1326 = vadd.f32 %v1321, %v1324
        %v1327 = vmul.f32 %v1202, %v1242
        %v1328 = vadd.f32 %v1183, %v1327
        %v1329 = vmul.f32 %v1241, %v1265
        %v1330 = vadd.f32 %v1328, %v1329
        %v1331 = vmul.f32 %v1202, %v1267
        %v1332 = vmul.f32 %v1241, %v1280
        %v1333 = vadd.f32 %v1331, %v1332
        %v1334 = vmul.f32 %v1202, %v1281
        %v1335 = vmul.f32 %v1241, %v1295
        %v1336 = vadd.f32 %v1334, %v1335
        %v1338 = vrot.slane %v1246, 1
        %v1340 = vmul.f32 %v1202, %v1338
        %v1341 = vadd.f32 %v1183, %v1340
        %v1343 = vrot.slane %v1301, 3
        %v1345 = vmul.f32 %v1241, %v1343
        %v1346 = vadd.f32 %v1341, %v1345
        %v1347 = vrot.slane %v998, 5
        %v1349 = vmul.f32 %v1202, %v1347
        %v1351 = vrot.slane %v1318, 3
        %v1353 = vmul.f32 %v1241, %v1351
        %v1354 = vadd.f32 %v1349, %v1353
        %v1356 = vrot.slane %v1249, 2
        %v1358 = vmul.f32 %v1202, %v1356
        %v1359 = vadd.f32 %v1183, %v1358
        %v1361 = vrot.slane %v1326, 4
        %v1363 = vmul.f32 %v1241, %v1361
        %v1364 = vadd.f32 %v1359, %v1363
        %v1365 = vrot.slane %v947, 6
        %v1367 = vmul.f32 %v1330, %v1365
        %v1368 = vrot.slane %v947, 7
        %v1370 = vmul.f32 %v1333, %v1368
        %v1371 = vadd.f32 %v1367, %v1370
        %v1372 = vmul.f32 %v1336, %v948
        %v1373 = vadd.f32 %v1371, %v1372
        %v1374 = vmul.f32 %v1333, %v1365
        %v1375 = vmul.f32 %v1346, %v1368
        %v1376 = vadd.f32 %v1374, %v1375
        %v1377 = vmul.f32 %v1354, %v948
        %v1378 = vadd.f32 %v1376, %v1377
        %v1379 = vmul.f32 %v1336, %v1365
        %v1380 = vmul.f32 %v1354, %v1368
        %v1381 = vadd.f32 %v1379, %v1380
        %v1382 = vmul.f32 %v1364, %v948
        %v1383 = vadd.f32 %v1381, %v1382
        %v1384 = vlaneseq
        %v1385 = vshrl.u32 %v1384, 7
        %v1386 = vadd.s32 %v1385, 8
        %v1387 = vadd.s32 %v1385, 16
        %v1388 = vadd.s32 %v1385, 24
        %v1389 = vadd.s32 %v1385, 32
        %v1390 = vadd.s32 %v1385, 40
        %v1391 = vadd.s32 %v1385, 48
        %v1392 = vadd.s32 %v1385, 56
        %v1393 = vadd.s32 %v1385, 64
        %v1394 = vadd.s32 %v1385, 72
        %v1395 = vadd.s32 %v1385, 80
        %v1396 = vadd.s32 %v1385, 88
        %v1397 = vadd.s32 %v1385, 96
        %v1398 = vadd.s32 %v1385, 104
        %v1399 = vadd.s32 %v1385, 112
        %v1400 = vadd.s32 %v1385, 120
        %vm1401 = vcmp.eq.s32.totalorder %v1385, 0
        %vm1402 = vcmp.eq.s32.totalorder %v1386, 0
        %vm1403 = vcmp.eq.s32.totalorder %v1387, 0
        %vm1404 = vcmp.eq.s32.totalorder %v1388, 0
        %vm1405 = vcmp.eq.s32.totalorder %v1389, 0
        %vm1406 = vcmp.eq.s32.totalorder %v1390, 0
        %vm1407 = vcmp.eq.s32.totalorder %v1391, 0
        %vm1408 = vcmp.eq.s32.totalorder %v1392, 0
        %vm1409 = vcmp.eq.s32.totalorder %v1393, 0
        %vm1410 = vcmp.eq.s32.totalorder %v1394, 0
        %vm1411 = vcmp.eq.s32.totalorder %v1395, 0
        %vm1412 = vcmp.eq.s32.totalorder %v1396, 0
        %vm1413 = vcmp.eq.s32.totalorder %v1397, 0
        %vm1414 = vcmp.eq.s32.totalorder %v1398, 0
        %vm1415 = vcmp.eq.s32.totalorder %v1399, 0
        %vm1416 = vcmp.eq.s32.totalorder %v1400, 0
        %v1417 = vsel %vm1401, 1, 0
        %v1418 = vsel %vm1402, 1, 0
        %v1419 = vsel %vm1403, 1, 0
        %v1420 = vsel %vm1404, 1, 0
        %v1421 = vsel %vm1405, 1, 0
        %v1422 = vsel %vm1406, 1, 0
        %v1423 = vsel %vm1407, 1, 0
        %v1424 = vsel %vm1408, 1, 0
        %v1425 = vsel %vm1409, 1, 0
        %v1426 = vsel %vm1410, 1, 0
        %v1427 = vsel %vm1411, 1, 0
        %v1428 = vsel %vm1412, 1, 0
        %v1429 = vsel %vm1413, 1, 0
        %v1430 = vsel %vm1414, 1, 0
        %v1431 = vsel %vm1415, 1, 0
        %v1432 = vsel %vm1416, 1, 0
        %vm1433 = vcmp.eq.s32.totalorder %v1417, 1
        %vm1434 = vcmp.eq.s32.totalorder %v1418, 1
        %vm1435 = vcmp.eq.s32.totalorder %v1419, 1
        %vm1436 = vcmp.eq.s32.totalorder %v1420, 1
        %vm1437 = vcmp.eq.s32.totalorder %v1421, 1
        %vm1438 = vcmp.eq.s32.totalorder %v1422, 1
        %vm1439 = vcmp.eq.s32.totalorder %v1423, 1
        %vm1440 = vcmp.eq.s32.totalorder %v1424, 1
        %vm1441 = vcmp.eq.s32.totalorder %v1425, 1
        %vm1442 = vcmp.eq.s32.totalorder %v1426, 1
        %vm1443 = vcmp.eq.s32.totalorder %v1427, 1
        %vm1444 = vcmp.eq.s32.totalorder %v1428, 1
        %vm1445 = vcmp.eq.s32.totalorder %v1429, 1
        %vm1446 = vcmp.eq.s32.totalorder %v1430, 1
        %vm1447 = vcmp.eq.s32.totalorder %v1431, 1
        %vm1448 = vcmp.eq.s32.totalorder %v1432, 1
        %v1449 = vlaneseq
        %v1450 = vshrl.u32 %v1449, 7
        %v1451 = vsub.s32 0, %v1450
        %v1452 = vrot.slane %v1330, %v1451
        %v1453 = vsel %vm1433, %v1452, 0.0
        %v1454 = vsel %vm1434, %v1452, 0.0
        %v1455 = vsel %vm1435, %v1452, 0.0
        %v1456 = vsel %vm1436, %v1452, 0.0
        %v1457 = vsel %vm1437, %v1452, 0.0
        %v1458 = vsel %vm1438, %v1452, 0.0
        %v1459 = vsel %vm1439, %v1452, 0.0
        %v1460 = vsel %vm1440, %v1452, 0.0
        %v1461 = vsel %vm1441, %v1452, 0.0
        %v1462 = vsel %vm1442, %v1452, 0.0
        %v1463 = vsel %vm1443, %v1452, 0.0
        %v1464 = vsel %vm1444, %v1452, 0.0
        %v1465 = vsel %vm1445, %v1452, 0.0
        %v1466 = vsel %vm1446, %v1452, 0.0
        %v1467 = vsel %vm1447, %v1452, 0.0
        %v1468 = vsel %vm1448, %v1452, 0.0
        %vm1469 = vcmp.eq.s32.totalorder %v1385, 1
        %vm1470 = vcmp.eq.s32.totalorder %v1386, 1
        %vm1471 = vcmp.eq.s32.totalorder %v1387, 1
        %vm1472 = vcmp.eq.s32.totalorder %v1388, 1
        %vm1473 = vcmp.eq.s32.totalorder %v1389, 1
        %vm1474 = vcmp.eq.s32.totalorder %v1390, 1
        %vm1475 = vcmp.eq.s32.totalorder %v1391, 1
        %vm1476 = vcmp.eq.s32.totalorder %v1392, 1
        %vm1477 = vcmp.eq.s32.totalorder %v1393, 1
        %vm1478 = vcmp.eq.s32.totalorder %v1394, 1
        %vm1479 = vcmp.eq.s32.totalorder %v1395, 1
        %vm1480 = vcmp.eq.s32.totalorder %v1396, 1
        %vm1481 = vcmp.eq.s32.totalorder %v1397, 1
        %vm1482 = vcmp.eq.s32.totalorder %v1398, 1
        %vm1483 = vcmp.eq.s32.totalorder %v1399, 1
        %vm1484 = vcmp.eq.s32.totalorder %v1400, 1
        %v1485 = vsel %vm1469, 1, 0
        %v1486 = vsel %vm1470, 1, 0
        %v1487 = vsel %vm1471, 1, 0
        %v1488 = vsel %vm1472, 1, 0
        %v1489 = vsel %vm1473, 1, 0
        %v1490 = vsel %vm1474, 1, 0
        %v1491 = vsel %vm1475, 1, 0
        %v1492 = vsel %vm1476, 1, 0
        %v1493 = vsel %vm1477, 1, 0
        %v1494 = vsel %vm1478, 1, 0
        %v1495 = vsel %vm1479, 1, 0
        %v1496 = vsel %vm1480, 1, 0
        %v1497 = vsel %vm1481, 1, 0
        %v1498 = vsel %vm1482, 1, 0
        %v1499 = vsel %vm1483, 1, 0
        %v1500 = vsel %vm1484, 1, 0
        %vm1501 = vcmp.eq.s32.totalorder %v1485, 1
        %vm1502 = vcmp.eq.s32.totalorder %v1486, 1
        %vm1503 = vcmp.eq.s32.totalorder %v1487, 1
        %vm1504 = vcmp.eq.s32.totalorder %v1488, 1
        %vm1505 = vcmp.eq.s32.totalorder %v1489, 1
        %vm1506 = vcmp.eq.s32.totalorder %v1490, 1
        %vm1507 = vcmp.eq.s32.totalorder %v1491, 1
        %vm1508 = vcmp.eq.s32.totalorder %v1492, 1
        %vm1509 = vcmp.eq.s32.totalorder %v1493, 1
        %vm1510 = vcmp.eq.s32.totalorder %v1494, 1
        %vm1511 = vcmp.eq.s32.totalorder %v1495, 1
        %vm1512 = vcmp.eq.s32.totalorder %v1496, 1
        %vm1513 = vcmp.eq.s32.totalorder %v1497, 1
        %vm1514 = vcmp.eq.s32.totalorder %v1498, 1
        %vm1515 = vcmp.eq.s32.totalorder %v1499, 1
        %vm1516 = vcmp.eq.s32.totalorder %v1500, 1
        %v1517 = vlaneseq
        %v1518 = vshrl.u32 %v1517, 7
        %v1519 = vsub.s32 0, %v1518
        %v1520 = vrot.slane %v1333, %v1519
        %v1521 = vsel %vm1501, %v1520, %v1453
        %v1522 = vsel %vm1502, %v1520, %v1454
        %v1523 = vsel %vm1503, %v1520, %v1455
        %v1524 = vsel %vm1504, %v1520, %v1456
        %v1525 = vsel %vm1505, %v1520, %v1457
        %v1526 = vsel %vm1506, %v1520, %v1458
        %v1527 = vsel %vm1507, %v1520, %v1459
        %v1528 = vsel %vm1508, %v1520, %v1460
        %v1529 = vsel %vm1509, %v1520, %v1461
        %v1530 = vsel %vm1510, %v1520, %v1462
        %v1531 = vsel %vm1511, %v1520, %v1463
        %v1532 = vsel %vm1512, %v1520, %v1464
        %v1533 = vsel %vm1513, %v1520, %v1465
        %v1534 = vsel %vm1514, %v1520, %v1466
        %v1535 = vsel %vm1515, %v1520, %v1467
        %v1536 = vsel %vm1516, %v1520, %v1468
        %vm1537 = vcmp.eq.s32.totalorder %v1385, 2
        %vm1538 = vcmp.eq.s32.totalorder %v1386, 2
        %vm1539 = vcmp.eq.s32.totalorder %v1387, 2
        %vm1540 = vcmp.eq.s32.totalorder %v1388, 2
        %vm1541 = vcmp.eq.s32.totalorder %v1389, 2
        %vm1542 = vcmp.eq.s32.totalorder %v1390, 2
        %vm1543 = vcmp.eq.s32.totalorder %v1391, 2
        %vm1544 = vcmp.eq.s32.totalorder %v1392, 2
        %vm1545 = vcmp.eq.s32.totalorder %v1393, 2
        %vm1546 = vcmp.eq.s32.totalorder %v1394, 2
        %vm1547 = vcmp.eq.s32.totalorder %v1395, 2
        %vm1548 = vcmp.eq.s32.totalorder %v1396, 2
        %vm1549 = vcmp.eq.s32.totalorder %v1397, 2
        %vm1550 = vcmp.eq.s32.totalorder %v1398, 2
        %vm1551 = vcmp.eq.s32.totalorder %v1399, 2
        %vm1552 = vcmp.eq.s32.totalorder %v1400, 2
        %v1553 = vsel %vm1537, 1, 0
        %v1554 = vsel %vm1538, 1, 0
        %v1555 = vsel %vm1539, 1, 0
        %v1556 = vsel %vm1540, 1, 0
        %v1557 = vsel %vm1541, 1, 0
        %v1558 = vsel %vm1542, 1, 0
        %v1559 = vsel %vm1543, 1, 0
        %v1560 = vsel %vm1544, 1, 0
        %v1561 = vsel %vm1545, 1, 0
        %v1562 = vsel %vm1546, 1, 0
        %v1563 = vsel %vm1547, 1, 0
        %v1564 = vsel %vm1548, 1, 0
        %v1565 = vsel %vm1549, 1, 0
        %v1566 = vsel %vm1550, 1, 0
        %v1567 = vsel %vm1551, 1, 0
        %v1568 = vsel %vm1552, 1, 0
        %vm1569 = vcmp.eq.s32.totalorder %v1553, 1
        %vm1570 = vcmp.eq.s32.totalorder %v1554, 1
        %vm1571 = vcmp.eq.s32.totalorder %v1555, 1
        %vm1572 = vcmp.eq.s32.totalorder %v1556, 1
        %vm1573 = vcmp.eq.s32.totalorder %v1557, 1
        %vm1574 = vcmp.eq.s32.totalorder %v1558, 1
        %vm1575 = vcmp.eq.s32.totalorder %v1559, 1
        %vm1576 = vcmp.eq.s32.totalorder %v1560, 1
        %vm1577 = vcmp.eq.s32.totalorder %v1561, 1
        %vm1578 = vcmp.eq.s32.totalorder %v1562, 1
        %vm1579 = vcmp.eq.s32.totalorder %v1563, 1
        %vm1580 = vcmp.eq.s32.totalorder %v1564, 1
        %vm1581 = vcmp.eq.s32.totalorder %v1565, 1
        %vm1582 = vcmp.eq.s32.totalorder %v1566, 1
        %vm1583 = vcmp.eq.s32.totalorder %v1567, 1
        %vm1584 = vcmp.eq.s32.totalorder %v1568, 1
        %v1585 = vlaneseq
        %v1586 = vshrl.u32 %v1585, 7
        %v1587 = vsub.s32 0, %v1586
        %v1588 = vrot.slane %v1336, %v1587
        %v1589 = vsel %vm1569, %v1588, %v1521
        %v1590 = vsel %vm1570, %v1588, %v1522
        %v1591 = vsel %vm1571, %v1588, %v1523
        %v1592 = vsel %vm1572, %v1588, %v1524
        %v1593 = vsel %vm1573, %v1588, %v1525
        %v1594 = vsel %vm1574, %v1588, %v1526
        %v1595 = vsel %vm1575, %v1588, %v1527
        %v1596 = vsel %vm1576, %v1588, %v1528
        %v1597 = vsel %vm1577, %v1588, %v1529
        %v1598 = vsel %vm1578, %v1588, %v1530
        %v1599 = vsel %vm1579, %v1588, %v1531
        %v1600 = vsel %vm1580, %v1588, %v1532
        %v1601 = vsel %vm1581, %v1588, %v1533
        %v1602 = vsel %vm1582, %v1588, %v1534
        %v1603 = vsel %vm1583, %v1588, %v1535
        %v1604 = vsel %vm1584, %v1588, %v1536
        %vm1605 = vcmp.eq.s32.totalorder %v1385, 3
        %vm1606 = vcmp.eq.s32.totalorder %v1386, 3
        %vm1607 = vcmp.eq.s32.totalorder %v1387, 3
        %vm1608 = vcmp.eq.s32.totalorder %v1388, 3
        %vm1609 = vcmp.eq.s32.totalorder %v1389, 3
        %vm1610 = vcmp.eq.s32.totalorder %v1390, 3
        %vm1611 = vcmp.eq.s32.totalorder %v1391, 3
        %vm1612 = vcmp.eq.s32.totalorder %v1392, 3
        %vm1613 = vcmp.eq.s32.totalorder %v1393, 3
        %vm1614 = vcmp.eq.s32.totalorder %v1394, 3
        %vm1615 = vcmp.eq.s32.totalorder %v1395, 3
        %vm1616 = vcmp.eq.s32.totalorder %v1396, 3
        %vm1617 = vcmp.eq.s32.totalorder %v1397, 3
        %vm1618 = vcmp.eq.s32.totalorder %v1398, 3
        %vm1619 = vcmp.eq.s32.totalorder %v1399, 3
        %vm1620 = vcmp.eq.s32.totalorder %v1400, 3
        %v1621 = vsel %vm1605, 1, 0
        %v1622 = vsel %vm1606, 1, 0
        %v1623 = vsel %vm1607, 1, 0
        %v1624 = vsel %vm1608, 1, 0
        %v1625 = vsel %vm1609, 1, 0
        %v1626 = vsel %vm1610, 1, 0
        %v1627 = vsel %vm1611, 1, 0
        %v1628 = vsel %vm1612, 1, 0
        %v1629 = vsel %vm1613, 1, 0
        %v1630 = vsel %vm1614, 1, 0
        %v1631 = vsel %vm1615, 1, 0
        %v1632 = vsel %vm1616, 1, 0
        %v1633 = vsel %vm1617, 1, 0
        %v1634 = vsel %vm1618, 1, 0
        %v1635 = vsel %vm1619, 1, 0
        %v1636 = vsel %vm1620, 1, 0
        %vm1637 = vcmp.eq.s32.totalorder %v1621, 1
        %vm1638 = vcmp.eq.s32.totalorder %v1622, 1
        %vm1639 = vcmp.eq.s32.totalorder %v1623, 1
        %vm1640 = vcmp.eq.s32.totalorder %v1624, 1
        %vm1641 = vcmp.eq.s32.totalorder %v1625, 1
        %vm1642 = vcmp.eq.s32.totalorder %v1626, 1
        %vm1643 = vcmp.eq.s32.totalorder %v1627, 1
        %vm1644 = vcmp.eq.s32.totalorder %v1628, 1
        %vm1645 = vcmp.eq.s32.totalorder %v1629, 1
        %vm1646 = vcmp.eq.s32.totalorder %v1630, 1
        %vm1647 = vcmp.eq.s32.totalorder %v1631, 1
        %vm1648 = vcmp.eq.s32.totalorder %v1632, 1
        %vm1649 = vcmp.eq.s32.totalorder %v1633, 1
        %vm1650 = vcmp.eq.s32.totalorder %v1634, 1
        %vm1651 = vcmp.eq.s32.totalorder %v1635, 1
        %vm1652 = vcmp.eq.s32.totalorder %v1636, 1
        %v1653 = vlaneseq
        %v1654 = vshrl.u32 %v1653, 7
        %v1655 = vsub.s32 0, %v1654
        %v1656 = vrot.slane %v1346, %v1655
        %v1657 = vsel %vm1637, %v1656, %v1589
        %v1658 = vsel %vm1638, %v1656, %v1590
        %v1659 = vsel %vm1639, %v1656, %v1591
        %v1660 = vsel %vm1640, %v1656, %v1592
        %v1661 = vsel %vm1641, %v1656, %v1593
        %v1662 = vsel %vm1642, %v1656, %v1594
        %v1663 = vsel %vm1643, %v1656, %v1595
        %v1664 = vsel %vm1644, %v1656, %v1596
        %v1665 = vsel %vm1645, %v1656, %v1597
        %v1666 = vsel %vm1646, %v1656, %v1598
        %v1667 = vsel %vm1647, %v1656, %v1599
        %v1668 = vsel %vm1648, %v1656, %v1600
        %v1669 = vsel %vm1649, %v1656, %v1601
        %v1670 = vsel %vm1650, %v1656, %v1602
        %v1671 = vsel %vm1651, %v1656, %v1603
        %v1672 = vsel %vm1652, %v1656, %v1604
        %vm1673 = vcmp.eq.s32.totalorder %v1385, 4
        %vm1674 = vcmp.eq.s32.totalorder %v1386, 4
        %vm1675 = vcmp.eq.s32.totalorder %v1387, 4
        %vm1676 = vcmp.eq.s32.totalorder %v1388, 4
        %vm1677 = vcmp.eq.s32.totalorder %v1389, 4
        %vm1678 = vcmp.eq.s32.totalorder %v1390, 4
        %vm1679 = vcmp.eq.s32.totalorder %v1391, 4
        %vm1680 = vcmp.eq.s32.totalorder %v1392, 4
        %vm1681 = vcmp.eq.s32.totalorder %v1393, 4
        %vm1682 = vcmp.eq.s32.totalorder %v1394, 4
        %vm1683 = vcmp.eq.s32.totalorder %v1395, 4
        %vm1684 = vcmp.eq.s32.totalorder %v1396, 4
        %vm1685 = vcmp.eq.s32.totalorder %v1397, 4
        %vm1686 = vcmp.eq.s32.totalorder %v1398, 4
        %vm1687 = vcmp.eq.s32.totalorder %v1399, 4
        %vm1688 = vcmp.eq.s32.totalorder %v1400, 4
        %v1689 = vsel %vm1673, 1, 0
        %v1690 = vsel %vm1674, 1, 0
        %v1691 = vsel %vm1675, 1, 0
        %v1692 = vsel %vm1676, 1, 0
        %v1693 = vsel %vm1677, 1, 0
        %v1694 = vsel %vm1678, 1, 0
        %v1695 = vsel %vm1679, 1, 0
        %v1696 = vsel %vm1680, 1, 0
        %v1697 = vsel %vm1681, 1, 0
        %v1698 = vsel %vm1682, 1, 0
        %v1699 = vsel %vm1683, 1, 0
        %v1700 = vsel %vm1684, 1, 0
        %v1701 = vsel %vm1685, 1, 0
        %v1702 = vsel %vm1686, 1, 0
        %v1703 = vsel %vm1687, 1, 0
        %v1704 = vsel %vm1688, 1, 0
        %vm1705 = vcmp.eq.s32.totalorder %v1689, 1
        %vm1706 = vcmp.eq.s32.totalorder %v1690, 1
        %vm1707 = vcmp.eq.s32.totalorder %v1691, 1
        %vm1708 = vcmp.eq.s32.totalorder %v1692, 1
        %vm1709 = vcmp.eq.s32.totalorder %v1693, 1
        %vm1710 = vcmp.eq.s32.totalorder %v1694, 1
        %vm1711 = vcmp.eq.s32.totalorder %v1695, 1
        %vm1712 = vcmp.eq.s32.totalorder %v1696, 1
        %vm1713 = vcmp.eq.s32.totalorder %v1697, 1
        %vm1714 = vcmp.eq.s32.totalorder %v1698, 1
        %vm1715 = vcmp.eq.s32.totalorder %v1699, 1
        %vm1716 = vcmp.eq.s32.totalorder %v1700, 1
        %vm1717 = vcmp.eq.s32.totalorder %v1701, 1
        %vm1718 = vcmp.eq.s32.totalorder %v1702, 1
        %vm1719 = vcmp.eq.s32.totalorder %v1703, 1
        %vm1720 = vcmp.eq.s32.totalorder %v1704, 1
        %v1721 = vlaneseq
        %v1722 = vshrl.u32 %v1721, 7
        %v1723 = vsub.s32 0, %v1722
        %v1724 = vrot.slane %v1354, %v1723
        %v1725 = vsel %vm1705, %v1724, %v1657
        %v1726 = vsel %vm1706, %v1724, %v1658
        %v1727 = vsel %vm1707, %v1724, %v1659
        %v1728 = vsel %vm1708, %v1724, %v1660
        %v1729 = vsel %vm1709, %v1724, %v1661
        %v1730 = vsel %vm1710, %v1724, %v1662
        %v1731 = vsel %vm1711, %v1724, %v1663
        %v1732 = vsel %vm1712, %v1724, %v1664
        %v1733 = vsel %vm1713, %v1724, %v1665
        %v1734 = vsel %vm1714, %v1724, %v1666
        %v1735 = vsel %vm1715, %v1724, %v1667
        %v1736 = vsel %vm1716, %v1724, %v1668
        %v1737 = vsel %vm1717, %v1724, %v1669
        %v1738 = vsel %vm1718, %v1724, %v1670
        %v1739 = vsel %vm1719, %v1724, %v1671
        %v1740 = vsel %vm1720, %v1724, %v1672
        %vm1741 = vcmp.eq.s32.totalorder %v1385, 5
        %vm1742 = vcmp.eq.s32.totalorder %v1386, 5
        %vm1743 = vcmp.eq.s32.totalorder %v1387, 5
        %vm1744 = vcmp.eq.s32.totalorder %v1388, 5
        %vm1745 = vcmp.eq.s32.totalorder %v1389, 5
        %vm1746 = vcmp.eq.s32.totalorder %v1390, 5
        %vm1747 = vcmp.eq.s32.totalorder %v1391, 5
        %vm1748 = vcmp.eq.s32.totalorder %v1392, 5
        %vm1749 = vcmp.eq.s32.totalorder %v1393, 5
        %vm1750 = vcmp.eq.s32.totalorder %v1394, 5
        %vm1751 = vcmp.eq.s32.totalorder %v1395, 5
        %vm1752 = vcmp.eq.s32.totalorder %v1396, 5
        %vm1753 = vcmp.eq.s32.totalorder %v1397, 5
        %vm1754 = vcmp.eq.s32.totalorder %v1398, 5
        %vm1755 = vcmp.eq.s32.totalorder %v1399, 5
        %vm1756 = vcmp.eq.s32.totalorder %v1400, 5
        %v1757 = vsel %vm1741, 1, 0
        %v1758 = vsel %vm1742, 1, 0
        %v1759 = vsel %vm1743, 1, 0
        %v1760 = vsel %vm1744, 1, 0
        %v1761 = vsel %vm1745, 1, 0
        %v1762 = vsel %vm1746, 1, 0
        %v1763 = vsel %vm1747, 1, 0
        %v1764 = vsel %vm1748, 1, 0
        %v1765 = vsel %vm1749, 1, 0
        %v1766 = vsel %vm1750, 1, 0
        %v1767 = vsel %vm1751, 1, 0
        %v1768 = vsel %vm1752, 1, 0
        %v1769 = vsel %vm1753, 1, 0
        %v1770 = vsel %vm1754, 1, 0
        %v1771 = vsel %vm1755, 1, 0
        %v1772 = vsel %vm1756, 1, 0
        %vm1773 = vcmp.eq.s32.totalorder %v1757, 1
        %vm1774 = vcmp.eq.s32.totalorder %v1758, 1
        %vm1775 = vcmp.eq.s32.totalorder %v1759, 1
        %vm1776 = vcmp.eq.s32.totalorder %v1760, 1
        %vm1777 = vcmp.eq.s32.totalorder %v1761, 1
        %vm1778 = vcmp.eq.s32.totalorder %v1762, 1
        %vm1779 = vcmp.eq.s32.totalorder %v1763, 1
        %vm1780 = vcmp.eq.s32.totalorder %v1764, 1
        %vm1781 = vcmp.eq.s32.totalorder %v1765, 1
        %vm1782 = vcmp.eq.s32.totalorder %v1766, 1
        %vm1783 = vcmp.eq.s32.totalorder %v1767, 1
        %vm1784 = vcmp.eq.s32.totalorder %v1768, 1
        %vm1785 = vcmp.eq.s32.totalorder %v1769, 1
        %vm1786 = vcmp.eq.s32.totalorder %v1770, 1
        %vm1787 = vcmp.eq.s32.totalorder %v1771, 1
        %vm1788 = vcmp.eq.s32.totalorder %v1772, 1
        %v1789 = vlaneseq
        %v1790 = vshrl.u32 %v1789, 7
        %v1791 = vsub.s32 0, %v1790
        %v1792 = vrot.slane %v1364, %v1791
        %v1793 = vsel %vm1773, %v1792, %v1725
        %v1794 = vsel %vm1774, %v1792, %v1726
        %v1795 = vsel %vm1775, %v1792, %v1727
        %v1796 = vsel %vm1776, %v1792, %v1728
        %v1797 = vsel %vm1777, %v1792, %v1729
        %v1798 = vsel %vm1778, %v1792, %v1730
        %v1799 = vsel %vm1779, %v1792, %v1731
        %v1800 = vsel %vm1780, %v1792, %v1732
        %v1801 = vsel %vm1781, %v1792, %v1733
        %v1802 = vsel %vm1782, %v1792, %v1734
        %v1803 = vsel %vm1783, %v1792, %v1735
        %v1804 = vsel %vm1784, %v1792, %v1736
        %v1805 = vsel %vm1785, %v1792, %v1737
        %v1806 = vsel %vm1786, %v1792, %v1738
        %v1807 = vsel %vm1787, %v1792, %v1739
        %v1808 = vsel %vm1788, %v1792, %v1740
        %vm1809 = vcmp.eq.s32.totalorder %v1385, 6
        %vm1810 = vcmp.eq.s32.totalorder %v1386, 6
        %vm1811 = vcmp.eq.s32.totalorder %v1387, 6
        %vm1812 = vcmp.eq.s32.totalorder %v1388, 6
        %vm1813 = vcmp.eq.s32.totalorder %v1389, 6
        %vm1814 = vcmp.eq.s32.totalorder %v1390, 6
        %vm1815 = vcmp.eq.s32.totalorder %v1391, 6
        %vm1816 = vcmp.eq.s32.totalorder %v1392, 6
        %vm1817 = vcmp.eq.s32.totalorder %v1393, 6
        %vm1818 = vcmp.eq.s32.totalorder %v1394, 6
        %vm1819 = vcmp.eq.s32.totalorder %v1395, 6
        %vm1820 = vcmp.eq.s32.totalorder %v1396, 6
        %vm1821 = vcmp.eq.s32.totalorder %v1397, 6
        %vm1822 = vcmp.eq.s32.totalorder %v1398, 6
        %vm1823 = vcmp.eq.s32.totalorder %v1399, 6
        %vm1824 = vcmp.eq.s32.totalorder %v1400, 6
        %v1825 = vsel %vm1809, 1, 0
        %v1826 = vsel %vm1810, 1, 0
        %v1827 = vsel %vm1811, 1, 0
        %v1828 = vsel %vm1812, 1, 0
        %v1829 = vsel %vm1813, 1, 0
        %v1830 = vsel %vm1814, 1, 0
        %v1831 = vsel %vm1815, 1, 0
        %v1832 = vsel %vm1816, 1, 0
        %v1833 = vsel %vm1817, 1, 0
        %v1834 = vsel %vm1818, 1, 0
        %v1835 = vsel %vm1819, 1, 0
        %v1836 = vsel %vm1820, 1, 0
        %v1837 = vsel %vm1821, 1, 0
        %v1838 = vsel %vm1822, 1, 0
        %v1839 = vsel %vm1823, 1, 0
        %v1840 = vsel %vm1824, 1, 0
        %vm1841 = vcmp.eq.s32.totalorder %v1825, 1
        %vm1842 = vcmp.eq.s32.totalorder %v1826, 1
        %vm1843 = vcmp.eq.s32.totalorder %v1827, 1
        %vm1844 = vcmp.eq.s32.totalorder %v1828, 1
        %vm1845 = vcmp.eq.s32.totalorder %v1829, 1
        %vm1846 = vcmp.eq.s32.totalorder %v1830, 1
        %vm1847 = vcmp.eq.s32.totalorder %v1831, 1
        %vm1848 = vcmp.eq.s32.totalorder %v1832, 1
        %vm1849 = vcmp.eq.s32.totalorder %v1833, 1
        %vm1850 = vcmp.eq.s32.totalorder %v1834, 1
        %vm1851 = vcmp.eq.s32.totalorder %v1835, 1
        %vm1852 = vcmp.eq.s32.totalorder %v1836, 1
        %vm1853 = vcmp.eq.s32.totalorder %v1837, 1
        %vm1854 = vcmp.eq.s32.totalorder %v1838, 1
        %vm1855 = vcmp.eq.s32.totalorder %v1839, 1
        %vm1856 = vcmp.eq.s32.totalorder %v1840, 1
        %v1857 = vlaneseq
        %v1858 = vshrl.u32 %v1857, 7
        %v1859 = vsub.s32 0, %v1858
        %v1860 = vrot.slane %v1373, %v1859
        %v1861 = vsel %vm1841, %v1860, %v1793
        %v1862 = vsel %vm1842, %v1860, %v1794
        %v1863 = vsel %vm1843, %v1860, %v1795
        %v1864 = vsel %vm1844, %v1860, %v1796
        %v1865 = vsel %vm1845, %v1860, %v1797
        %v1866 = vsel %vm1846, %v1860, %v1798
        %v1867 = vsel %vm1847, %v1860, %v1799
        %v1868 = vsel %vm1848, %v1860, %v1800
        %v1869 = vsel %vm1849, %v1860, %v1801
        %v1870 = vsel %vm1850, %v1860, %v1802
        %v1871 = vsel %vm1851, %v1860, %v1803
        %v1872 = vsel %vm1852, %v1860, %v1804
        %v1873 = vsel %vm1853, %v1860, %v1805
        %v1874 = vsel %vm1854, %v1860, %v1806
        %v1875 = vsel %vm1855, %v1860, %v1807
        %v1876 = vsel %vm1856, %v1860, %v1808
        %vm1877 = vcmp.eq.s32.totalorder %v1385, 7
        %vm1878 = vcmp.eq.s32.totalorder %v1386, 7
        %vm1879 = vcmp.eq.s32.totalorder %v1387, 7
        %vm1880 = vcmp.eq.s32.totalorder %v1388, 7
        %vm1881 = vcmp.eq.s32.totalorder %v1389, 7
        %vm1882 = vcmp.eq.s32.totalorder %v1390, 7
        %vm1883 = vcmp.eq.s32.totalorder %v1391, 7
        %vm1884 = vcmp.eq.s32.totalorder %v1392, 7
        %vm1885 = vcmp.eq.s32.totalorder %v1393, 7
        %vm1886 = vcmp.eq.s32.totalorder %v1394, 7
        %vm1887 = vcmp.eq.s32.totalorder %v1395, 7
        %vm1888 = vcmp.eq.s32.totalorder %v1396, 7
        %vm1889 = vcmp.eq.s32.totalorder %v1397, 7
        %vm1890 = vcmp.eq.s32.totalorder %v1398, 7
        %vm1891 = vcmp.eq.s32.totalorder %v1399, 7
        %vm1892 = vcmp.eq.s32.totalorder %v1400, 7
        %v1893 = vsel %vm1877, 1, 0
        %v1894 = vsel %vm1878, 1, 0
        %v1895 = vsel %vm1879, 1, 0
        %v1896 = vsel %vm1880, 1, 0
        %v1897 = vsel %vm1881, 1, 0
        %v1898 = vsel %vm1882, 1, 0
        %v1899 = vsel %vm1883, 1, 0
        %v1900 = vsel %vm1884, 1, 0
        %v1901 = vsel %vm1885, 1, 0
        %v1902 = vsel %vm1886, 1, 0
        %v1903 = vsel %vm1887, 1, 0
        %v1904 = vsel %vm1888, 1, 0
        %v1905 = vsel %vm1889, 1, 0
        %v1906 = vsel %vm1890, 1, 0
        %v1907 = vsel %vm1891, 1, 0
        %v1908 = vsel %vm1892, 1, 0
        %vm1909 = vcmp.eq.s32.totalorder %v1893, 1
        %vm1910 = vcmp.eq.s32.totalorder %v1894, 1
        %vm1911 = vcmp.eq.s32.totalorder %v1895, 1
        %vm1912 = vcmp.eq.s32.totalorder %v1896, 1
        %vm1913 = vcmp.eq.s32.totalorder %v1897, 1
        %vm1914 = vcmp.eq.s32.totalorder %v1898, 1
        %vm1915 = vcmp.eq.s32.totalorder %v1899, 1
        %vm1916 = vcmp.eq.s32.totalorder %v1900, 1
        %vm1917 = vcmp.eq.s32.totalorder %v1901, 1
        %vm1918 = vcmp.eq.s32.totalorder %v1902, 1
        %vm1919 = vcmp.eq.s32.totalorder %v1903, 1
        %vm1920 = vcmp.eq.s32.totalorder %v1904, 1
        %vm1921 = vcmp.eq.s32.totalorder %v1905, 1
        %vm1922 = vcmp.eq.s32.totalorder %v1906, 1
        %vm1923 = vcmp.eq.s32.totalorder %v1907, 1
        %vm1924 = vcmp.eq.s32.totalorder %v1908, 1
        %v1925 = vlaneseq
        %v1926 = vshrl.u32 %v1925, 7
        %v1927 = vsub.s32 0, %v1926
        %v1928 = vrot.slane %v1378, %v1927
        %v1929 = vsel %vm1909, %v1928, %v1861
        %v1930 = vsel %vm1910, %v1928, %v1862
        %v1931 = vsel %vm1911, %v1928, %v1863
        %v1932 = vsel %vm1912, %v1928, %v1864
        %v1933 = vsel %vm1913, %v1928, %v1865
        %v1934 = vsel %vm1914, %v1928, %v1866
        %v1935 = vsel %vm1915, %v1928, %v1867
        %v1936 = vsel %vm1916, %v1928, %v1868
        %v1937 = vsel %vm1917, %v1928, %v1869
        %v1938 = vsel %vm1918, %v1928, %v1870
        %v1939 = vsel %vm1919, %v1928, %v1871
        %v1940 = vsel %vm1920, %v1928, %v1872
        %v1941 = vsel %vm1921, %v1928, %v1873
        %v1942 = vsel %vm1922, %v1928, %v1874
        %v1943 = vsel %vm1923, %v1928, %v1875
        %v1944 = vsel %vm1924, %v1928, %v1876
        %vm1945 = vcmp.eq.s32.totalorder %v1385, 8
        %vm1946 = vcmp.eq.s32.totalorder %v1386, 8
        %vm1947 = vcmp.eq.s32.totalorder %v1387, 8
        %vm1948 = vcmp.eq.s32.totalorder %v1388, 8
        %vm1949 = vcmp.eq.s32.totalorder %v1389, 8
        %vm1950 = vcmp.eq.s32.totalorder %v1390, 8
        %vm1951 = vcmp.eq.s32.totalorder %v1391, 8
        %vm1952 = vcmp.eq.s32.totalorder %v1392, 8
        %vm1953 = vcmp.eq.s32.totalorder %v1393, 8
        %vm1954 = vcmp.eq.s32.totalorder %v1394, 8
        %vm1955 = vcmp.eq.s32.totalorder %v1395, 8
        %vm1956 = vcmp.eq.s32.totalorder %v1396, 8
        %vm1957 = vcmp.eq.s32.totalorder %v1397, 8
        %vm1958 = vcmp.eq.s32.totalorder %v1398, 8
        %vm1959 = vcmp.eq.s32.totalorder %v1399, 8
        %vm1960 = vcmp.eq.s32.totalorder %v1400, 8
        %v1961 = vsel %vm1945, 1, 0
        %v1962 = vsel %vm1946, 1, 0
        %v1963 = vsel %vm1947, 1, 0
        %v1964 = vsel %vm1948, 1, 0
        %v1965 = vsel %vm1949, 1, 0
        %v1966 = vsel %vm1950, 1, 0
        %v1967 = vsel %vm1951, 1, 0
        %v1968 = vsel %vm1952, 1, 0
        %v1969 = vsel %vm1953, 1, 0
        %v1970 = vsel %vm1954, 1, 0
        %v1971 = vsel %vm1955, 1, 0
        %v1972 = vsel %vm1956, 1, 0
        %v1973 = vsel %vm1957, 1, 0
        %v1974 = vsel %vm1958, 1, 0
        %v1975 = vsel %vm1959, 1, 0
        %v1976 = vsel %vm1960, 1, 0
        %vm1977 = vcmp.eq.s32.totalorder %v1961, 1
        %vm1978 = vcmp.eq.s32.totalorder %v1962, 1
        %vm1979 = vcmp.eq.s32.totalorder %v1963, 1
        %vm1980 = vcmp.eq.s32.totalorder %v1964, 1
        %vm1981 = vcmp.eq.s32.totalorder %v1965, 1
        %vm1982 = vcmp.eq.s32.totalorder %v1966, 1
        %vm1983 = vcmp.eq.s32.totalorder %v1967, 1
        %vm1984 = vcmp.eq.s32.totalorder %v1968, 1
        %vm1985 = vcmp.eq.s32.totalorder %v1969, 1
        %vm1986 = vcmp.eq.s32.totalorder %v1970, 1
        %vm1987 = vcmp.eq.s32.totalorder %v1971, 1
        %vm1988 = vcmp.eq.s32.totalorder %v1972, 1
        %vm1989 = vcmp.eq.s32.totalorder %v1973, 1
        %vm1990 = vcmp.eq.s32.totalorder %v1974, 1
        %vm1991 = vcmp.eq.s32.totalorder %v1975, 1
        %vm1992 = vcmp.eq.s32.totalorder %v1976, 1
        %v1993 = vlaneseq
        %v1994 = vshrl.u32 %v1993, 7
        %v1995 = vsub.s32 0, %v1994
        %v1996 = vrot.slane %v1383, %v1995
        %v1997 = vsel %vm1977, %v1996, %v1929
        %v1998 = vsel %vm1978, %v1996, %v1930
        %v1999 = vsel %vm1979, %v1996, %v1931
        %v2000 = vsel %vm1980, %v1996, %v1932
        %v2001 = vsel %vm1981, %v1996, %v1933
        %v2002 = vsel %vm1982, %v1996, %v1934
        %v2003 = vsel %vm1983, %v1996, %v1935
        %v2004 = vsel %vm1984, %v1996, %v1936
        %v2005 = vsel %vm1985, %v1996, %v1937
        %v2006 = vsel %vm1986, %v1996, %v1938
        %v2007 = vsel %vm1987, %v1996, %v1939
        %v2008 = vsel %vm1988, %v1996, %v1940
        %v2009 = vsel %vm1989, %v1996, %v1941
        %v2010 = vsel %vm1990, %v1996, %v1942
        %v2011 = vsel %vm1991, %v1996, %v1943
        %v2012 = vsel %vm1992, %v1996, %v1944
        %2013 = vxpose.xlu0.b32.start [1/16] %v1997, 128
        %2014 = vxpose.xlu0.b32.cont [2/16] %v1998, 128
        %2015 = vxpose.xlu0.b32.cont [3/16] %v1999, 128
        %2016 = vxpose.xlu0.b32.cont [4/16] %v2000, 128
        %2017 = vxpose.xlu0.b32.cont [5/16] %v2001, 128
        %2018 = vxpose.xlu0.b32.cont [6/16] %v2002, 128
        %2019 = vxpose.xlu0.b32.cont [7/16] %v2003, 128
        %2020 = vxpose.xlu0.b32.cont [8/16] %v2004, 128
        %2021 = vxpose.xlu0.b32.cont [9/16] %v2005, 128
        %2022 = vxpose.xlu0.b32.cont [10/16] %v2006, 128
        %2023 = vxpose.xlu0.b32.cont [11/16] %v2007, 128
        %2024 = vxpose.xlu0.b32.cont [12/16] %v2008, 128
        %2025 = vxpose.xlu0.b32.cont [13/16] %v2009, 128
        %2026 = vxpose.xlu0.b32.cont [14/16] %v2010, 128
        %2027 = vxpose.xlu0.b32.cont [15/16] %v2011, 128
        %2028 = vxpose.xlu0.b32.end [16/16] %v2012, 128
        %v2029 = vpop.trf.xlu0
        %v2030 = vpop.trf.xlu0
        %v2031 = vpop.trf.xlu0
        %v2032 = vpop.trf.xlu0
        %v2033 = vpop.trf.xlu0
        %v2034 = vpop.trf.xlu0
        %v2035 = vpop.trf.xlu0
        %v2036 = vpop.trf.xlu0
        %v2037 = vpop.trf.xlu0
        %v2038 = vpop.trf.xlu0
        %v2039 = vpop.trf.xlu0
        %v2040 = vpop.trf.xlu0
        %v2041 = vpop.trf.xlu0
        %v2042 = vpop.trf.xlu0
        %v2043 = vpop.trf.xlu0
        %v2044 = vpop.trf.xlu0
        %2046 = vset.pattern.permute.xlu0 0
        %2047 = vperm.xlu0 %2046, %v2029
        %v2048 = vpop.permute.xlu0 %2047
        %2051 = vset.pattern.permute.xlu0 0
        %2052 = vperm.xlu0 %2051, %v2030
        %v2053 = vpop.permute.xlu0 %2052
        %2056 = vset.pattern.permute.xlu0 0
        %2057 = vperm.xlu0 %2056, %v2031
        %v2058 = vpop.permute.xlu0 %2057
        %2061 = vset.pattern.permute.xlu0 0
        %2062 = vperm.xlu0 %2061, %v2032
        %v2063 = vpop.permute.xlu0 %2062
        %2066 = vset.pattern.permute.xlu0 0
        %2067 = vperm.xlu0 %2066, %v2033
        %v2068 = vpop.permute.xlu0 %2067
        %2071 = vset.pattern.permute.xlu0 0
        %2072 = vperm.xlu0 %2071, %v2034
        %v2073 = vpop.permute.xlu0 %2072
        %2076 = vset.pattern.permute.xlu0 0
        %2077 = vperm.xlu0 %2076, %v2035
        %v2078 = vpop.permute.xlu0 %2077
        %2081 = vset.pattern.permute.xlu0 0
        %2082 = vperm.xlu0 %2081, %v2036
        %v2083 = vpop.permute.xlu0 %2082
        %2086 = vset.pattern.permute.xlu0 0
        %2087 = vperm.xlu0 %2086, %v2037
        %v2088 = vpop.permute.xlu0 %2087
        %2091 = vset.pattern.permute.xlu0 0
        %2092 = vperm.xlu0 %2091, %v2038
        %v2093 = vpop.permute.xlu0 %2092
        %2096 = vset.pattern.permute.xlu0 0
        %2097 = vperm.xlu0 %2096, %v2039
        %v2098 = vpop.permute.xlu0 %2097
        %2101 = vset.pattern.permute.xlu0 0
        %2102 = vperm.xlu0 %2101, %v2040
        %v2103 = vpop.permute.xlu0 %2102
        %2106 = vset.pattern.permute.xlu0 0
        %2107 = vperm.xlu0 %2106, %v2041
        %v2108 = vpop.permute.xlu0 %2107
        %2111 = vset.pattern.permute.xlu0 0
        %2112 = vperm.xlu0 %2111, %v2042
        %v2113 = vpop.permute.xlu0 %2112
        %2116 = vset.pattern.permute.xlu0 0
        %2117 = vperm.xlu0 %2116, %v2043
        %v2118 = vpop.permute.xlu0 %2117
        %2121 = vset.pattern.permute.xlu0 0
        %2122 = vperm.xlu0 %2121, %v2044
        %v2123 = vpop.permute.xlu0 %2122
        %2125 = vset.pattern.permute.xlu0 1
        %2126 = vperm.xlu0 %2125, %v2029
        %v2127 = vpop.permute.xlu0 %2126
        %2129 = vset.pattern.permute.xlu0 1
        %2130 = vperm.xlu0 %2129, %v2030
        %v2131 = vpop.permute.xlu0 %2130
        %2133 = vset.pattern.permute.xlu0 1
        %2134 = vperm.xlu0 %2133, %v2031
        %v2135 = vpop.permute.xlu0 %2134
        %2137 = vset.pattern.permute.xlu0 1
        %2138 = vperm.xlu0 %2137, %v2032
        %v2139 = vpop.permute.xlu0 %2138
        %2141 = vset.pattern.permute.xlu0 1
        %2142 = vperm.xlu0 %2141, %v2033
        %v2143 = vpop.permute.xlu0 %2142
        %2145 = vset.pattern.permute.xlu0 1
        %2146 = vperm.xlu0 %2145, %v2034
        %v2147 = vpop.permute.xlu0 %2146
        %2149 = vset.pattern.permute.xlu0 1
        %2150 = vperm.xlu0 %2149, %v2035
        %v2151 = vpop.permute.xlu0 %2150
        %2153 = vset.pattern.permute.xlu0 1
        %2154 = vperm.xlu0 %2153, %v2036
        %v2155 = vpop.permute.xlu0 %2154
        %2157 = vset.pattern.permute.xlu0 1
        %2158 = vperm.xlu0 %2157, %v2037
        %v2159 = vpop.permute.xlu0 %2158
        %2161 = vset.pattern.permute.xlu0 1
        %2162 = vperm.xlu0 %2161, %v2038
        %v2163 = vpop.permute.xlu0 %2162
        %2165 = vset.pattern.permute.xlu0 1
        %2166 = vperm.xlu0 %2165, %v2039
        %v2167 = vpop.permute.xlu0 %2166
        %2169 = vset.pattern.permute.xlu0 1
        %2170 = vperm.xlu0 %2169, %v2040
        %v2171 = vpop.permute.xlu0 %2170
        %2173 = vset.pattern.permute.xlu0 1
        %2174 = vperm.xlu0 %2173, %v2041
        %v2175 = vpop.permute.xlu0 %2174
        %2177 = vset.pattern.permute.xlu0 1
        %2178 = vperm.xlu0 %2177, %v2042
        %v2179 = vpop.permute.xlu0 %2178
        %2181 = vset.pattern.permute.xlu0 1
        %2182 = vperm.xlu0 %2181, %v2043
        %v2183 = vpop.permute.xlu0 %2182
        %2185 = vset.pattern.permute.xlu0 1
        %2186 = vperm.xlu0 %2185, %v2044
        %v2187 = vpop.permute.xlu0 %2186
        %2189 = vset.pattern.permute.xlu0 2
        %2190 = vperm.xlu0 %2189, %v2029
        %v2191 = vpop.permute.xlu0 %2190
        %2193 = vset.pattern.permute.xlu0 2
        %2194 = vperm.xlu0 %2193, %v2030
        %v2195 = vpop.permute.xlu0 %2194
        %2197 = vset.pattern.permute.xlu0 2
        %2198 = vperm.xlu0 %2197, %v2031
        %v2199 = vpop.permute.xlu0 %2198
        %2201 = vset.pattern.permute.xlu0 2
        %2202 = vperm.xlu0 %2201, %v2032
        %v2203 = vpop.permute.xlu0 %2202
        %2205 = vset.pattern.permute.xlu0 2
        %2206 = vperm.xlu0 %2205, %v2033
        %v2207 = vpop.permute.xlu0 %2206
        %2209 = vset.pattern.permute.xlu0 2
        %2210 = vperm.xlu0 %2209, %v2034
        %v2211 = vpop.permute.xlu0 %2210
        %2213 = vset.pattern.permute.xlu0 2
        %2214 = vperm.xlu0 %2213, %v2035
        %v2215 = vpop.permute.xlu0 %2214
        %2217 = vset.pattern.permute.xlu0 2
        %2218 = vperm.xlu0 %2217, %v2036
        %v2219 = vpop.permute.xlu0 %2218
        %2221 = vset.pattern.permute.xlu0 2
        %2222 = vperm.xlu0 %2221, %v2037
        %v2223 = vpop.permute.xlu0 %2222
        %2225 = vset.pattern.permute.xlu0 2
        %2226 = vperm.xlu0 %2225, %v2038
        %v2227 = vpop.permute.xlu0 %2226
        %2229 = vset.pattern.permute.xlu0 2
        %2230 = vperm.xlu0 %2229, %v2039
        %v2231 = vpop.permute.xlu0 %2230
        %2233 = vset.pattern.permute.xlu0 2
        %2234 = vperm.xlu0 %2233, %v2040
        %v2235 = vpop.permute.xlu0 %2234
        %2237 = vset.pattern.permute.xlu0 2
        %2238 = vperm.xlu0 %2237, %v2041
        %v2239 = vpop.permute.xlu0 %2238
        %2241 = vset.pattern.permute.xlu0 2
        %2242 = vperm.xlu0 %2241, %v2042
        %v2243 = vpop.permute.xlu0 %2242
        %2245 = vset.pattern.permute.xlu0 2
        %2246 = vperm.xlu0 %2245, %v2043
        %v2247 = vpop.permute.xlu0 %2246
        %2249 = vset.pattern.permute.xlu0 2
        %2250 = vperm.xlu0 %2249, %v2044
        %v2251 = vpop.permute.xlu0 %2250
        %2253 = vset.pattern.permute.xlu0 3
        %2254 = vperm.xlu0 %2253, %v2029
        %v2255 = vpop.permute.xlu0 %2254
        %2257 = vset.pattern.permute.xlu0 3
        %2258 = vperm.xlu0 %2257, %v2030
        %v2259 = vpop.permute.xlu0 %2258
        %2261 = vset.pattern.permute.xlu0 3
        %2262 = vperm.xlu0 %2261, %v2031
        %v2263 = vpop.permute.xlu0 %2262
        %2265 = vset.pattern.permute.xlu0 3
        %2266 = vperm.xlu0 %2265, %v2032
        %v2267 = vpop.permute.xlu0 %2266
        %2269 = vset.pattern.permute.xlu0 3
        %2270 = vperm.xlu0 %2269, %v2033
        %v2271 = vpop.permute.xlu0 %2270
        %2273 = vset.pattern.permute.xlu0 3
        %2274 = vperm.xlu0 %2273, %v2034
        %v2275 = vpop.permute.xlu0 %2274
        %2277 = vset.pattern.permute.xlu0 3
        %2278 = vperm.xlu0 %2277, %v2035
        %v2279 = vpop.permute.xlu0 %2278
        %2281 = vset.pattern.permute.xlu0 3
        %2282 = vperm.xlu0 %2281, %v2036
        %v2283 = vpop.permute.xlu0 %2282
        %2285 = vset.pattern.permute.xlu0 3
        %2286 = vperm.xlu0 %2285, %v2037
        %v2287 = vpop.permute.xlu0 %2286
        %2289 = vset.pattern.permute.xlu0 3
        %2290 = vperm.xlu0 %2289, %v2038
        %v2291 = vpop.permute.xlu0 %2290
        %2293 = vset.pattern.permute.xlu0 3
        %2294 = vperm.xlu0 %2293, %v2039
        %v2295 = vpop.permute.xlu0 %2294
        %2297 = vset.pattern.permute.xlu0 3
        %2298 = vperm.xlu0 %2297, %v2040
        %v2299 = vpop.permute.xlu0 %2298
        %2301 = vset.pattern.permute.xlu0 3
        %2302 = vperm.xlu0 %2301, %v2041
        %v2303 = vpop.permute.xlu0 %2302
        %2305 = vset.pattern.permute.xlu0 3
        %2306 = vperm.xlu0 %2305, %v2042
        %v2307 = vpop.permute.xlu0 %2306
        %2309 = vset.pattern.permute.xlu0 3
        %2310 = vperm.xlu0 %2309, %v2043
        %v2311 = vpop.permute.xlu0 %2310
        %2313 = vset.pattern.permute.xlu0 3
        %2314 = vperm.xlu0 %2313, %v2044
        %v2315 = vpop.permute.xlu0 %2314
        %2317 = vset.pattern.permute.xlu0 4
        %2318 = vperm.xlu0 %2317, %v2029
        %v2319 = vpop.permute.xlu0 %2318
        %2321 = vset.pattern.permute.xlu0 4
        %2322 = vperm.xlu0 %2321, %v2030
        %v2323 = vpop.permute.xlu0 %2322
        %2325 = vset.pattern.permute.xlu0 4
        %2326 = vperm.xlu0 %2325, %v2031
        %v2327 = vpop.permute.xlu0 %2326
        %2329 = vset.pattern.permute.xlu0 4
        %2330 = vperm.xlu0 %2329, %v2032
        %v2331 = vpop.permute.xlu0 %2330
        %2333 = vset.pattern.permute.xlu0 4
        %2334 = vperm.xlu0 %2333, %v2033
        %v2335 = vpop.permute.xlu0 %2334
        %2337 = vset.pattern.permute.xlu0 4
        %2338 = vperm.xlu0 %2337, %v2034
        %v2339 = vpop.permute.xlu0 %2338
        %2341 = vset.pattern.permute.xlu0 4
        %2342 = vperm.xlu0 %2341, %v2035
        %v2343 = vpop.permute.xlu0 %2342
        %2345 = vset.pattern.permute.xlu0 4
        %2346 = vperm.xlu0 %2345, %v2036
        %v2347 = vpop.permute.xlu0 %2346
        %2349 = vset.pattern.permute.xlu0 4
        %2350 = vperm.xlu0 %2349, %v2037
        %v2351 = vpop.permute.xlu0 %2350
        %2353 = vset.pattern.permute.xlu0 4
        %2354 = vperm.xlu0 %2353, %v2038
        %v2355 = vpop.permute.xlu0 %2354
        %2357 = vset.pattern.permute.xlu0 4
        %2358 = vperm.xlu0 %2357, %v2039
        %v2359 = vpop.permute.xlu0 %2358
        %2361 = vset.pattern.permute.xlu0 4
        %2362 = vperm.xlu0 %2361, %v2040
        %v2363 = vpop.permute.xlu0 %2362
        %2365 = vset.pattern.permute.xlu0 4
        %2366 = vperm.xlu0 %2365, %v2041
        %v2367 = vpop.permute.xlu0 %2366
        %2369 = vset.pattern.permute.xlu0 4
        %2370 = vperm.xlu0 %2369, %v2042
        %v2371 = vpop.permute.xlu0 %2370
        %2373 = vset.pattern.permute.xlu0 4
        %2374 = vperm.xlu0 %2373, %v2043
        %v2375 = vpop.permute.xlu0 %2374
        %2377 = vset.pattern.permute.xlu0 4
        %2378 = vperm.xlu0 %2377, %v2044
        %v2379 = vpop.permute.xlu0 %2378
        %2381 = vset.pattern.permute.xlu0 5
        %2382 = vperm.xlu0 %2381, %v2029
        %v2383 = vpop.permute.xlu0 %2382
        %2385 = vset.pattern.permute.xlu0 5
        %2386 = vperm.xlu0 %2385, %v2030
        %v2387 = vpop.permute.xlu0 %2386
        %2389 = vset.pattern.permute.xlu0 5
        %2390 = vperm.xlu0 %2389, %v2031
        %v2391 = vpop.permute.xlu0 %2390
        %2393 = vset.pattern.permute.xlu0 5
        %2394 = vperm.xlu0 %2393, %v2032
        %v2395 = vpop.permute.xlu0 %2394
        %2397 = vset.pattern.permute.xlu0 5
        %2398 = vperm.xlu0 %2397, %v2033
        %v2399 = vpop.permute.xlu0 %2398
        %2401 = vset.pattern.permute.xlu0 5
        %2402 = vperm.xlu0 %2401, %v2034
        %v2403 = vpop.permute.xlu0 %2402
        %2405 = vset.pattern.permute.xlu0 5
        %2406 = vperm.xlu0 %2405, %v2035
        %v2407 = vpop.permute.xlu0 %2406
        %2409 = vset.pattern.permute.xlu0 5
        %2410 = vperm.xlu0 %2409, %v2036
        %v2411 = vpop.permute.xlu0 %2410
        %2413 = vset.pattern.permute.xlu0 5
        %2414 = vperm.xlu0 %2413, %v2037
        %v2415 = vpop.permute.xlu0 %2414
        %2417 = vset.pattern.permute.xlu0 5
        %2418 = vperm.xlu0 %2417, %v2038
        %v2419 = vpop.permute.xlu0 %2418
        %2421 = vset.pattern.permute.xlu0 5
        %2422 = vperm.xlu0 %2421, %v2039
        %v2423 = vpop.permute.xlu0 %2422
        %2425 = vset.pattern.permute.xlu0 5
        %2426 = vperm.xlu0 %2425, %v2040
        %v2427 = vpop.permute.xlu0 %2426
        %2429 = vset.pattern.permute.xlu0 5
        %2430 = vperm.xlu0 %2429, %v2041
        %v2431 = vpop.permute.xlu0 %2430
        %2433 = vset.pattern.permute.xlu0 5
        %2434 = vperm.xlu0 %2433, %v2042
        %v2435 = vpop.permute.xlu0 %2434
        %2437 = vset.pattern.permute.xlu0 5
        %2438 = vperm.xlu0 %2437, %v2043
        %v2439 = vpop.permute.xlu0 %2438
        %2441 = vset.pattern.permute.xlu0 5
        %2442 = vperm.xlu0 %2441, %v2044
        %v2443 = vpop.permute.xlu0 %2442
        %2445 = vset.pattern.permute.xlu0 6
        %2446 = vperm.xlu0 %2445, %v2029
        %v2447 = vpop.permute.xlu0 %2446
        %2449 = vset.pattern.permute.xlu0 6
        %2450 = vperm.xlu0 %2449, %v2030
        %v2451 = vpop.permute.xlu0 %2450
        %2453 = vset.pattern.permute.xlu0 6
        %2454 = vperm.xlu0 %2453, %v2031
        %v2455 = vpop.permute.xlu0 %2454
        %2457 = vset.pattern.permute.xlu0 6
        %2458 = vperm.xlu0 %2457, %v2032
        %v2459 = vpop.permute.xlu0 %2458
        %2461 = vset.pattern.permute.xlu0 6
        %2462 = vperm.xlu0 %2461, %v2033
        %v2463 = vpop.permute.xlu0 %2462
        %2465 = vset.pattern.permute.xlu0 6
        %2466 = vperm.xlu0 %2465, %v2034
        %v2467 = vpop.permute.xlu0 %2466
        %2469 = vset.pattern.permute.xlu0 6
        %2470 = vperm.xlu0 %2469, %v2035
        %v2471 = vpop.permute.xlu0 %2470
        %2473 = vset.pattern.permute.xlu0 6
        %2474 = vperm.xlu0 %2473, %v2036
        %v2475 = vpop.permute.xlu0 %2474
        %2477 = vset.pattern.permute.xlu0 6
        %2478 = vperm.xlu0 %2477, %v2037
        %v2479 = vpop.permute.xlu0 %2478
        %2481 = vset.pattern.permute.xlu0 6
        %2482 = vperm.xlu0 %2481, %v2038
        %v2483 = vpop.permute.xlu0 %2482
        %2485 = vset.pattern.permute.xlu0 6
        %2486 = vperm.xlu0 %2485, %v2039
        %v2487 = vpop.permute.xlu0 %2486
        %2489 = vset.pattern.permute.xlu0 6
        %2490 = vperm.xlu0 %2489, %v2040
        %v2491 = vpop.permute.xlu0 %2490
        %2493 = vset.pattern.permute.xlu0 6
        %2494 = vperm.xlu0 %2493, %v2041
        %v2495 = vpop.permute.xlu0 %2494
        %2497 = vset.pattern.permute.xlu0 6
        %2498 = vperm.xlu0 %2497, %v2042
        %v2499 = vpop.permute.xlu0 %2498
        %2501 = vset.pattern.permute.xlu0 6
        %2502 = vperm.xlu0 %2501, %v2043
        %v2503 = vpop.permute.xlu0 %2502
        %2505 = vset.pattern.permute.xlu0 6
        %2506 = vperm.xlu0 %2505, %v2044
        %v2507 = vpop.permute.xlu0 %2506
        %2509 = vset.pattern.permute.xlu0 7
        %2510 = vperm.xlu0 %2509, %v2029
        %v2511 = vpop.permute.xlu0 %2510
        %2513 = vset.pattern.permute.xlu0 7
        %2514 = vperm.xlu0 %2513, %v2030
        %v2515 = vpop.permute.xlu0 %2514
        %2517 = vset.pattern.permute.xlu0 7
        %2518 = vperm.xlu0 %2517, %v2031
        %v2519 = vpop.permute.xlu0 %2518
        %2521 = vset.pattern.permute.xlu0 7
        %2522 = vperm.xlu0 %2521, %v2032
        %v2523 = vpop.permute.xlu0 %2522
        %2525 = vset.pattern.permute.xlu0 7
        %2526 = vperm.xlu0 %2525, %v2033
        %v2527 = vpop.permute.xlu0 %2526
        %2529 = vset.pattern.permute.xlu0 7
        %2530 = vperm.xlu0 %2529, %v2034
        %v2531 = vpop.permute.xlu0 %2530
        %2533 = vset.pattern.permute.xlu0 7
        %2534 = vperm.xlu0 %2533, %v2035
        %v2535 = vpop.permute.xlu0 %2534
        %2537 = vset.pattern.permute.xlu0 7
        %2538 = vperm.xlu0 %2537, %v2036
        %v2539 = vpop.permute.xlu0 %2538
        %2541 = vset.pattern.permute.xlu0 7
        %2542 = vperm.xlu0 %2541, %v2037
        %v2543 = vpop.permute.xlu0 %2542
        %2545 = vset.pattern.permute.xlu0 7
        %2546 = vperm.xlu0 %2545, %v2038
        %v2547 = vpop.permute.xlu0 %2546
        %2549 = vset.pattern.permute.xlu0 7
        %2550 = vperm.xlu0 %2549, %v2039
        %v2551 = vpop.permute.xlu0 %2550
        %2553 = vset.pattern.permute.xlu0 7
        %2554 = vperm.xlu0 %2553, %v2040
        %v2555 = vpop.permute.xlu0 %2554
        %2557 = vset.pattern.permute.xlu0 7
        %2558 = vperm.xlu0 %2557, %v2041
        %v2559 = vpop.permute.xlu0 %2558
        %2561 = vset.pattern.permute.xlu0 7
        %2562 = vperm.xlu0 %2561, %v2042
        %v2563 = vpop.permute.xlu0 %2562
        %2565 = vset.pattern.permute.xlu0 7
        %2566 = vperm.xlu0 %2565, %v2043
        %v2567 = vpop.permute.xlu0 %2566
        %2569 = vset.pattern.permute.xlu0 7
        %2570 = vperm.xlu0 %2569, %v2044
        %v2571 = vpop.permute.xlu0 %2570
        %2573 = vset.pattern.permute.xlu0 8
        %2574 = vperm.xlu0 %2573, %v2029
        %v2575 = vpop.permute.xlu0 %2574
        %2577 = vset.pattern.permute.xlu0 8
        %2578 = vperm.xlu0 %2577, %v2030
        %v2579 = vpop.permute.xlu0 %2578
        %2581 = vset.pattern.permute.xlu0 8
        %2582 = vperm.xlu0 %2581, %v2031
        %v2583 = vpop.permute.xlu0 %2582
        %2585 = vset.pattern.permute.xlu0 8
        %2586 = vperm.xlu0 %2585, %v2032
        %v2587 = vpop.permute.xlu0 %2586
        %2589 = vset.pattern.permute.xlu0 8
        %2590 = vperm.xlu0 %2589, %v2033
        %v2591 = vpop.permute.xlu0 %2590
        %2593 = vset.pattern.permute.xlu0 8
        %2594 = vperm.xlu0 %2593, %v2034
        %v2595 = vpop.permute.xlu0 %2594
        %2597 = vset.pattern.permute.xlu0 8
        %2598 = vperm.xlu0 %2597, %v2035
        %v2599 = vpop.permute.xlu0 %2598
        %2601 = vset.pattern.permute.xlu0 8
        %2602 = vperm.xlu0 %2601, %v2036
        %v2603 = vpop.permute.xlu0 %2602
        %2605 = vset.pattern.permute.xlu0 8
        %2606 = vperm.xlu0 %2605, %v2037
        %v2607 = vpop.permute.xlu0 %2606
        %2609 = vset.pattern.permute.xlu0 8
        %2610 = vperm.xlu0 %2609, %v2038
        %v2611 = vpop.permute.xlu0 %2610
        %2613 = vset.pattern.permute.xlu0 8
        %2614 = vperm.xlu0 %2613, %v2039
        %v2615 = vpop.permute.xlu0 %2614
        %2617 = vset.pattern.permute.xlu0 8
        %2618 = vperm.xlu0 %2617, %v2040
        %v2619 = vpop.permute.xlu0 %2618
        %2621 = vset.pattern.permute.xlu0 8
        %2622 = vperm.xlu0 %2621, %v2041
        %v2623 = vpop.permute.xlu0 %2622
        %2625 = vset.pattern.permute.xlu0 8
        %2626 = vperm.xlu0 %2625, %v2042
        %v2627 = vpop.permute.xlu0 %2626
        %2629 = vset.pattern.permute.xlu0 8
        %2630 = vperm.xlu0 %2629, %v2043
        %v2631 = vpop.permute.xlu0 %2630
        %2633 = vset.pattern.permute.xlu0 8
        %2634 = vperm.xlu0 %2633, %v2044
        %v2635 = vpop.permute.xlu0 %2634
        %v2637 = vld [vmem:[%s1] sm:$0x1]
        %v2638 = vmul.f32 %v2048, %v182
        %v2639 = vmul.f32 %v2053, %v183
        %v2640 = vmul.f32 %v2058, %v184
        %v2641 = vmul.f32 %v2063, %v185
        %v2642 = vmul.f32 %v2068, %v186
        %v2643 = vmul.f32 %v2073, %v187
        %v2644 = vmul.f32 %v2078, %v188
        %v2645 = vmul.f32 %v2083, %v189
        %v2646 = vmul.f32 %v2088, %v190
        %v2647 = vmul.f32 %v2093, %v191
        %v2648 = vmul.f32 %v2098, %v192
        %v2649 = vmul.f32 %v2103, %v193
        %v2650 = vmul.f32 %v2108, %v194
        %v2651 = vmul.f32 %v2113, %v195
        %v2652 = vmul.f32 %v2118, %v196
        %v2653 = vmul.f32 %v2123, %v197
        %v2654 = vmul.f32 %v2127, %v198
        %v2655 = vmul.f32 %v2131, %v199
        %v2656 = vmul.f32 %v2135, %v200
        %v2657 = vmul.f32 %v2139, %v201
        %v2658 = vmul.f32 %v2143, %v202
        %v2659 = vmul.f32 %v2147, %v203
        %v2660 = vmul.f32 %v2151, %v204
        %v2661 = vmul.f32 %v2155, %v205
        %v2662 = vmul.f32 %v2159, %v206
        %v2663 = vmul.f32 %v2163, %v207
        %v2664 = vmul.f32 %v2167, %v208
        %v2665 = vmul.f32 %v2171, %v209
        %v2666 = vmul.f32 %v2175, %v210
        %v2667 = vmul.f32 %v2179, %v211
        %v2668 = vmul.f32 %v2183, %v212
        %v2669 = vmul.f32 %v2187, %v213
        %v2670 = vadd.f32 %v2638, %v2654
        %v2671 = vadd.f32 %v2639, %v2655
        %v2672 = vadd.f32 %v2640, %v2656
        %v2673 = vadd.f32 %v2641, %v2657
        %v2674 = vadd.f32 %v2642, %v2658
        %v2675 = vadd.f32 %v2643, %v2659
        %v2676 = vadd.f32 %v2644, %v2660
        %v2677 = vadd.f32 %v2645, %v2661
        %v2678 = vadd.f32 %v2646, %v2662
        %v2679 = vadd.f32 %v2647, %v2663
        %v2680 = vadd.f32 %v2648, %v2664
        %v2681 = vadd.f32 %v2649, %v2665
        %v2682 = vadd.f32 %v2650, %v2666
        %v2683 = vadd.f32 %v2651, %v2667
        %v2684 = vadd.f32 %v2652, %v2668
        %v2685 = vadd.f32 %v2653, %v2669
        %v2686 = vmul.f32 %v2191, %v214
        %v2687 = vmul.f32 %v2195, %v215
        %v2688 = vmul.f32 %v2199, %v216
        %v2689 = vmul.f32 %v2203, %v217
        %v2690 = vmul.f32 %v2207, %v218
        %v2691 = vmul.f32 %v2211, %v219
        %v2692 = vmul.f32 %v2215, %v220
        %v2693 = vmul.f32 %v2219, %v221
        %v2694 = vmul.f32 %v2223, %v222
        %v2695 = vmul.f32 %v2227, %v223
        %v2696 = vmul.f32 %v2231, %v224
        %v2697 = vmul.f32 %v2235, %v225
        %v2698 = vmul.f32 %v2239, %v226
        %v2699 = vmul.f32 %v2243, %v227
        %v2700 = vmul.f32 %v2247, %v228
        %v2701 = vmul.f32 %v2251, %v229
        %v2702 = vadd.f32 %v2670, %v2686
        %v2703 = vadd.f32 %v2671, %v2687
        %v2704 = vadd.f32 %v2672, %v2688
        %v2705 = vadd.f32 %v2673, %v2689
        %v2706 = vadd.f32 %v2674, %v2690
        %v2707 = vadd.f32 %v2675, %v2691
        %v2708 = vadd.f32 %v2676, %v2692
        %v2709 = vadd.f32 %v2677, %v2693
        %v2710 = vadd.f32 %v2678, %v2694
        %v2711 = vadd.f32 %v2679, %v2695
        %v2712 = vadd.f32 %v2680, %v2696
        %v2713 = vadd.f32 %v2681, %v2697
        %v2714 = vadd.f32 %v2682, %v2698
        %v2715 = vadd.f32 %v2683, %v2699
        %v2716 = vadd.f32 %v2684, %v2700
        %v2717 = vadd.f32 %v2685, %v2701
        %v2718 = vsub.f32 %v2702, %v2447
        %v2719 = vsub.f32 %v2703, %v2451
        %v2720 = vsub.f32 %v2704, %v2455
        %v2721 = vsub.f32 %v2705, %v2459
        %v2722 = vsub.f32 %v2706, %v2463
        %v2723 = vsub.f32 %v2707, %v2467
        %v2724 = vsub.f32 %v2708, %v2471
        %v2725 = vsub.f32 %v2709, %v2475
        %v2726 = vsub.f32 %v2710, %v2479
        %v2727 = vsub.f32 %v2711, %v2483
        %v2728 = vsub.f32 %v2712, %v2487
        %v2729 = vsub.f32 %v2713, %v2491
        %v2730 = vsub.f32 %v2714, %v2495
        %v2731 = vsub.f32 %v2715, %v2499
        %v2732 = vsub.f32 %v2716, %v2503
        %v2733 = vsub.f32 %v2717, %v2507
        %v2735 = vlaneseq
        %v2736 = vshrl.u32 %v2735, 7
        %v2737 = vsub.s32 0, %v2736
        %v2738 = vrot.slane %v2637, %v2737
        %v2740 = vmul.f32 %v2718, %v2738
        %v2741 = vmul.f32 %v2719, %v2738
        %v2742 = vmul.f32 %v2720, %v2738
        %v2743 = vmul.f32 %v2721, %v2738
        %v2744 = vmul.f32 %v2722, %v2738
        %v2745 = vmul.f32 %v2723, %v2738
        %v2746 = vmul.f32 %v2724, %v2738
        %v2747 = vmul.f32 %v2725, %v2738
        %v2748 = vmul.f32 %v2726, %v2738
        %v2749 = vmul.f32 %v2727, %v2738
        %v2750 = vmul.f32 %v2728, %v2738
        %v2751 = vmul.f32 %v2729, %v2738
        %v2752 = vmul.f32 %v2730, %v2738
        %v2753 = vmul.f32 %v2731, %v2738
        %v2754 = vmul.f32 %v2732, %v2738
        %v2755 = vmul.f32 %v2733, %v2738
        %v2756 = vmul.f32 %v2127, %v182
        %v2757 = vmul.f32 %v2131, %v183
        %v2758 = vmul.f32 %v2135, %v184
        %v2759 = vmul.f32 %v2139, %v185
        %v2760 = vmul.f32 %v2143, %v186
        %v2761 = vmul.f32 %v2147, %v187
        %v2762 = vmul.f32 %v2151, %v188
        %v2763 = vmul.f32 %v2155, %v189
        %v2764 = vmul.f32 %v2159, %v190
        %v2765 = vmul.f32 %v2163, %v191
        %v2766 = vmul.f32 %v2167, %v192
        %v2767 = vmul.f32 %v2171, %v193
        %v2768 = vmul.f32 %v2175, %v194
        %v2769 = vmul.f32 %v2179, %v195
        %v2770 = vmul.f32 %v2183, %v196
        %v2771 = vmul.f32 %v2187, %v197
        %v2772 = vmul.f32 %v2255, %v198
        %v2773 = vmul.f32 %v2259, %v199
        %v2774 = vmul.f32 %v2263, %v200
        %v2775 = vmul.f32 %v2267, %v201
        %v2776 = vmul.f32 %v2271, %v202
        %v2777 = vmul.f32 %v2275, %v203
        %v2778 = vmul.f32 %v2279, %v204
        %v2779 = vmul.f32 %v2283, %v205
        %v2780 = vmul.f32 %v2287, %v206
        %v2781 = vmul.f32 %v2291, %v207
        %v2782 = vmul.f32 %v2295, %v208
        %v2783 = vmul.f32 %v2299, %v209
        %v2784 = vmul.f32 %v2303, %v210
        %v2785 = vmul.f32 %v2307, %v211
        %v2786 = vmul.f32 %v2311, %v212
        %v2787 = vmul.f32 %v2315, %v213
        %v2788 = vadd.f32 %v2756, %v2772
        %v2789 = vadd.f32 %v2757, %v2773
        %v2790 = vadd.f32 %v2758, %v2774
        %v2791 = vadd.f32 %v2759, %v2775
        %v2792 = vadd.f32 %v2760, %v2776
        %v2793 = vadd.f32 %v2761, %v2777
        %v2794 = vadd.f32 %v2762, %v2778
        %v2795 = vadd.f32 %v2763, %v2779
        %v2796 = vadd.f32 %v2764, %v2780
        %v2797 = vadd.f32 %v2765, %v2781
        %v2798 = vadd.f32 %v2766, %v2782
        %v2799 = vadd.f32 %v2767, %v2783
        %v2800 = vadd.f32 %v2768, %v2784
        %v2801 = vadd.f32 %v2769, %v2785
        %v2802 = vadd.f32 %v2770, %v2786
        %v2803 = vadd.f32 %v2771, %v2787
        %v2804 = vmul.f32 %v2319, %v214
        %v2805 = vmul.f32 %v2323, %v215
        %v2806 = vmul.f32 %v2327, %v216
        %v2807 = vmul.f32 %v2331, %v217
        %v2808 = vmul.f32 %v2335, %v218
        %v2809 = vmul.f32 %v2339, %v219
        %v2810 = vmul.f32 %v2343, %v220
        %v2811 = vmul.f32 %v2347, %v221
        %v2812 = vmul.f32 %v2351, %v222
        %v2813 = vmul.f32 %v2355, %v223
        %v2814 = vmul.f32 %v2359, %v224
        %v2815 = vmul.f32 %v2363, %v225
        %v2816 = vmul.f32 %v2367, %v226
        %v2817 = vmul.f32 %v2371, %v227
        %v2818 = vmul.f32 %v2375, %v228
        %v2819 = vmul.f32 %v2379, %v229
        %v2820 = vadd.f32 %v2788, %v2804
        %v2821 = vadd.f32 %v2789, %v2805
        %v2822 = vadd.f32 %v2790, %v2806
        %v2823 = vadd.f32 %v2791, %v2807
        %v2824 = vadd.f32 %v2792, %v2808
        %v2825 = vadd.f32 %v2793, %v2809
        %v2826 = vadd.f32 %v2794, %v2810
        %v2827 = vadd.f32 %v2795, %v2811
        %v2828 = vadd.f32 %v2796, %v2812
        %v2829 = vadd.f32 %v2797, %v2813
        %v2830 = vadd.f32 %v2798, %v2814
        %v2831 = vadd.f32 %v2799, %v2815
        %v2832 = vadd.f32 %v2800, %v2816
        %v2833 = vadd.f32 %v2801, %v2817
        %v2834 = vadd.f32 %v2802, %v2818
        %v2835 = vadd.f32 %v2803, %v2819
        %v2836 = vsub.f32 %v2820, %v2511
        %v2837 = vsub.f32 %v2821, %v2515
        %v2838 = vsub.f32 %v2822, %v2519
        %v2839 = vsub.f32 %v2823, %v2523
        %v2840 = vsub.f32 %v2824, %v2527
        %v2841 = vsub.f32 %v2825, %v2531
        %v2842 = vsub.f32 %v2826, %v2535
        %v2843 = vsub.f32 %v2827, %v2539
        %v2844 = vsub.f32 %v2828, %v2543
        %v2845 = vsub.f32 %v2829, %v2547
        %v2846 = vsub.f32 %v2830, %v2551
        %v2847 = vsub.f32 %v2831, %v2555
        %v2848 = vsub.f32 %v2832, %v2559
        %v2849 = vsub.f32 %v2833, %v2563
        %v2850 = vsub.f32 %v2834, %v2567
        %v2851 = vsub.f32 %v2835, %v2571
        %v2852 = vmul.f32 %v2836, %v2738
        %v2853 = vmul.f32 %v2837, %v2738
        %v2854 = vmul.f32 %v2838, %v2738
        %v2855 = vmul.f32 %v2839, %v2738
        %v2856 = vmul.f32 %v2840, %v2738
        %v2857 = vmul.f32 %v2841, %v2738
        %v2858 = vmul.f32 %v2842, %v2738
        %v2859 = vmul.f32 %v2843, %v2738
        %v2860 = vmul.f32 %v2844, %v2738
        %v2861 = vmul.f32 %v2845, %v2738
        %v2862 = vmul.f32 %v2846, %v2738
        %v2863 = vmul.f32 %v2847, %v2738
        %v2864 = vmul.f32 %v2848, %v2738
        %v2865 = vmul.f32 %v2849, %v2738
        %v2866 = vmul.f32 %v2850, %v2738
        %v2867 = vmul.f32 %v2851, %v2738
        %v2868 = vmul.f32 %v2191, %v182
        %v2869 = vmul.f32 %v2195, %v183
        %v2870 = vmul.f32 %v2199, %v184
        %v2871 = vmul.f32 %v2203, %v185
        %v2872 = vmul.f32 %v2207, %v186
        %v2873 = vmul.f32 %v2211, %v187
        %v2874 = vmul.f32 %v2215, %v188
        %v2875 = vmul.f32 %v2219, %v189
        %v2876 = vmul.f32 %v2223, %v190
        %v2877 = vmul.f32 %v2227, %v191
        %v2878 = vmul.f32 %v2231, %v192
        %v2879 = vmul.f32 %v2235, %v193
        %v2880 = vmul.f32 %v2239, %v194
        %v2881 = vmul.f32 %v2243, %v195
        %v2882 = vmul.f32 %v2247, %v196
        %v2883 = vmul.f32 %v2251, %v197
        %v2884 = vmul.f32 %v2319, %v198
        %v2885 = vmul.f32 %v2323, %v199
        %v2886 = vmul.f32 %v2327, %v200
        %v2887 = vmul.f32 %v2331, %v201
        %v2888 = vmul.f32 %v2335, %v202
        %v2889 = vmul.f32 %v2339, %v203
        %v2890 = vmul.f32 %v2343, %v204
        %v2891 = vmul.f32 %v2347, %v205
        %v2892 = vmul.f32 %v2351, %v206
        %v2893 = vmul.f32 %v2355, %v207
        %v2894 = vmul.f32 %v2359, %v208
        %v2895 = vmul.f32 %v2363, %v209
        %v2896 = vmul.f32 %v2367, %v210
        %v2897 = vmul.f32 %v2371, %v211
        %v2898 = vmul.f32 %v2375, %v212
        %v2899 = vmul.f32 %v2379, %v213
        %v2900 = vadd.f32 %v2868, %v2884
        %v2901 = vadd.f32 %v2869, %v2885
        %v2902 = vadd.f32 %v2870, %v2886
        %v2903 = vadd.f32 %v2871, %v2887
        %v2904 = vadd.f32 %v2872, %v2888
        %v2905 = vadd.f32 %v2873, %v2889
        %v2906 = vadd.f32 %v2874, %v2890
        %v2907 = vadd.f32 %v2875, %v2891
        %v2908 = vadd.f32 %v2876, %v2892
        %v2909 = vadd.f32 %v2877, %v2893
        %v2910 = vadd.f32 %v2878, %v2894
        %v2911 = vadd.f32 %v2879, %v2895
        %v2912 = vadd.f32 %v2880, %v2896
        %v2913 = vadd.f32 %v2881, %v2897
        %v2914 = vadd.f32 %v2882, %v2898
        %v2915 = vadd.f32 %v2883, %v2899
        %v2916 = vmul.f32 %v2383, %v214
        %v2917 = vmul.f32 %v2387, %v215
        %v2918 = vmul.f32 %v2391, %v216
        %v2919 = vmul.f32 %v2395, %v217
        %v2920 = vmul.f32 %v2399, %v218
        %v2921 = vmul.f32 %v2403, %v219
        %v2922 = vmul.f32 %v2407, %v220
        %v2923 = vmul.f32 %v2411, %v221
        %v2924 = vmul.f32 %v2415, %v222
        %v2925 = vmul.f32 %v2419, %v223
        %v2926 = vmul.f32 %v2423, %v224
        %v2927 = vmul.f32 %v2427, %v225
        %v2928 = vmul.f32 %v2431, %v226
        %v2929 = vmul.f32 %v2435, %v227
        %v2930 = vmul.f32 %v2439, %v228
        %v2931 = vmul.f32 %v2443, %v229
        %v2932 = vadd.f32 %v2900, %v2916
        %v2933 = vadd.f32 %v2901, %v2917
        %v2934 = vadd.f32 %v2902, %v2918
        %v2935 = vadd.f32 %v2903, %v2919
        %v2936 = vadd.f32 %v2904, %v2920
        %v2937 = vadd.f32 %v2905, %v2921
        %v2938 = vadd.f32 %v2906, %v2922
        %v2939 = vadd.f32 %v2907, %v2923
        %v2940 = vadd.f32 %v2908, %v2924
        %v2941 = vadd.f32 %v2909, %v2925
        %v2942 = vadd.f32 %v2910, %v2926
        %v2943 = vadd.f32 %v2911, %v2927
        %v2944 = vadd.f32 %v2912, %v2928
        %v2945 = vadd.f32 %v2913, %v2929
        %v2946 = vadd.f32 %v2914, %v2930
        %v2947 = vadd.f32 %v2915, %v2931
        %v2948 = vsub.f32 %v2932, %v2575
        %v2949 = vsub.f32 %v2933, %v2579
        %v2950 = vsub.f32 %v2934, %v2583
        %v2951 = vsub.f32 %v2935, %v2587
        %v2952 = vsub.f32 %v2936, %v2591
        %v2953 = vsub.f32 %v2937, %v2595
        %v2954 = vsub.f32 %v2938, %v2599
        %v2955 = vsub.f32 %v2939, %v2603
        %v2956 = vsub.f32 %v2940, %v2607
        %v2957 = vsub.f32 %v2941, %v2611
        %v2958 = vsub.f32 %v2942, %v2615
        %v2959 = vsub.f32 %v2943, %v2619
        %v2960 = vsub.f32 %v2944, %v2623
        %v2961 = vsub.f32 %v2945, %v2627
        %v2962 = vsub.f32 %v2946, %v2631
        %v2963 = vsub.f32 %v2947, %v2635
        %v2964 = vmul.f32 %v2948, %v2738
        %v2965 = vmul.f32 %v2949, %v2738
        %v2966 = vmul.f32 %v2950, %v2738
        %v2967 = vmul.f32 %v2951, %v2738
        %v2968 = vmul.f32 %v2952, %v2738
        %v2969 = vmul.f32 %v2953, %v2738
        %v2970 = vmul.f32 %v2954, %v2738
        %v2971 = vmul.f32 %v2955, %v2738
        %v2972 = vmul.f32 %v2956, %v2738
        %v2973 = vmul.f32 %v2957, %v2738
        %v2974 = vmul.f32 %v2958, %v2738
        %v2975 = vmul.f32 %v2959, %v2738
        %v2976 = vmul.f32 %v2960, %v2738
        %v2977 = vmul.f32 %v2961, %v2738
        %v2978 = vmul.f32 %v2962, %v2738
        %v2979 = vmul.f32 %v2963, %v2738
        %2980 = vst [vmem:[%s169] sm:$0xff] %v2740
        %2981 = vst [vmem:[%s169 + $0x18] sm:$0xff] %v2741
        %2982 = vst [vmem:[%s169 + $0x30] sm:$0xff] %v2742
        %2983 = vst [vmem:[%s169 + $0x48] sm:$0xff] %v2743
        %2984 = vst [vmem:[%s169 + $0x60] sm:$0xff] %v2744
        %2985 = vst [vmem:[%s169 + $0x78] sm:$0xff] %v2745
        %2986 = vst [vmem:[%s169 + $0x90] sm:$0xff] %v2746
        %2987 = vst [vmem:[%s169 + $0xa8] sm:$0xff] %v2747
        %2988 = vst [vmem:[%s169 + $0xc0] sm:$0xff] %v2748
        %2989 = vst [vmem:[%s169 + $0xd8] sm:$0xff] %v2749
        %2990 = vst [vmem:[%s169 + $0xf0] sm:$0xff] %v2750
        %2991 = vst [vmem:[%s169 + $0x108] sm:$0xff] %v2751
        %2992 = vst [vmem:[%s169 + $0x120] sm:$0xff] %v2752
        %2993 = vst [vmem:[%s169 + $0x138] sm:$0xff] %v2753
        %2994 = vst [vmem:[%s169 + $0x150] sm:$0xff] %v2754
        %2995 = vst [vmem:[%s169 + $0x168] sm:$0xff] %v2755
        %2996 = vst [vmem:[%s169 + $0x8] sm:$0xff] %v2852
        %2997 = vst [vmem:[%s169 + $0x20] sm:$0xff] %v2853
        %2998 = vst [vmem:[%s169 + $0x38] sm:$0xff] %v2854
        %2999 = vst [vmem:[%s169 + $0x50] sm:$0xff] %v2855
        %3000 = vst [vmem:[%s169 + $0x68] sm:$0xff] %v2856
        %3001 = vst [vmem:[%s169 + $0x80] sm:$0xff] %v2857
        %3002 = vst [vmem:[%s169 + $0x98] sm:$0xff] %v2858
        %3003 = vst [vmem:[%s169 + $0xb0] sm:$0xff] %v2859
        %3004 = vst [vmem:[%s169 + $0xc8] sm:$0xff] %v2860
        %3005 = vst [vmem:[%s169 + $0xe0] sm:$0xff] %v2861
        %3006 = vst [vmem:[%s169 + $0xf8] sm:$0xff] %v2862
        %3007 = vst [vmem:[%s169 + $0x110] sm:$0xff] %v2863
        %3008 = vst [vmem:[%s169 + $0x128] sm:$0xff] %v2864
        %3009 = vst [vmem:[%s169 + $0x140] sm:$0xff] %v2865
        %3010 = vst [vmem:[%s169 + $0x158] sm:$0xff] %v2866
        %3011 = vst [vmem:[%s169 + $0x170] sm:$0xff] %v2867
        %3012 = vst [vmem:[%s169 + $0x10] sm:$0xff] %v2964
        %3013 = vst [vmem:[%s169 + $0x28] sm:$0xff] %v2965
        %3014 = vst [vmem:[%s169 + $0x40] sm:$0xff] %v2966
        %3015 = vst [vmem:[%s169 + $0x58] sm:$0xff] %v2967
        %3016 = vst [vmem:[%s169 + $0x70] sm:$0xff] %v2968
        %3017 = vst [vmem:[%s169 + $0x88] sm:$0xff] %v2969
        %3018 = vst [vmem:[%s169 + $0xa0] sm:$0xff] %v2970
        %3019 = vst [vmem:[%s169 + $0xb8] sm:$0xff] %v2971
        %3020 = vst [vmem:[%s169 + $0xd0] sm:$0xff] %v2972
        %3021 = vst [vmem:[%s169 + $0xe8] sm:$0xff] %v2973
        %3022 = vst [vmem:[%s169 + $0x100] sm:$0xff] %v2974
        %3023 = vst [vmem:[%s169 + $0x118] sm:$0xff] %v2975
        %3024 = vst [vmem:[%s169 + $0x130] sm:$0xff] %v2976
        %3025 = vst [vmem:[%s169 + $0x148] sm:$0xff] %v2977
        %3026 = vst [vmem:[%s169 + $0x160] sm:$0xff] %v2978
        %3027 = vst [vmem:[%s169 + $0x178] sm:$0xff] %v2979
        %s3028 = sand.u32 %s74, 1
        %s3029 = scalar_lea.sflag [#allocation4], %s3028
        %s3030 = sand.u32 %s74, 1
        %s3031 = smul.addr %s3030, 384
        %s3032 = scalar_lea.vmem [#allocation5], %s3031
        // Predicated region
        $region33: #{tpu_custom_call.1} parent=27 // pred_check
          %p3033 = pneg %p84
        $region34: #{tpu_custom_call.1} parent=27 // pred_check_branch
          %3035 = sbr.rel (%p3033) target = $region36
        $region35: #{tpu_custom_call.1} parent=27 // pred_region
          %s3036 = smul.u32 16, %s19
          %s3037 = ssub.s32 38, %s3036
          %p3038 = scmp.lt.s32.totalorder %s3037, 16
          %s3039 = scalar_select %p3038, %s3037, 16
          %s3040 = smul.u32 128, %s3039
          %s3041 = smul.u32 %s3040, 3
          %s3043 = ssub.s32 6144, %s3041
          %3044 = vsyncadd %s3029, %s3043
          %p3045 = scmp.ne.s32.totalorder 0, %s3041
          %s3046 = smul.addr %s3036, 3
          %s3047 = smul.addr %s3046, 128
          %s3048 = scalar_lea.hbm %s2, %s3047
          %s3049 = smul.u32 24, %s3039
          %s3050 = sshll.u32 %s3032, 4
          %s3051 = int_to_ptr.vmem [resolvable:$true] %s3050
          %s3052 = sshll.u32 %s3049, 4
          %3056 = dma.vmem_to_hbm [thread:$0]  (%p3045), %s3051, %s3052, %s3048, %s3029, 384, 384, 24
        $region36: #{tpu_custom_call.1} parent=27 // pred_fallthru
          _
      $region28: #{tpu_custom_call.1} parent=5 // pred_fallthru
        _
      %p3057 = scmp.le.s32.totalorder 2, %s14
      // Predicated region
      $region37: #{tpu_custom_call.1} parent=5 // pred_check
        %p3058 = pneg %p3057
      $region38: #{tpu_custom_call.1} parent=5 // pred_check_branch
        %3060 = sbr.rel (%p3058) target = $region40
      $region39: #{tpu_custom_call.1} parent=5 // pred_region
        %s3061 = ssub.s32 %s14, 2
        // Predicated region
        $region41: #{tpu_custom_call.1} parent=39 // pred_check
          %p3062 = pneg %p90
        $region42: #{tpu_custom_call.1} parent=39 // pred_check_branch
          %3064 = sbr.rel (%p3062) target = $region44
        $region43: #{tpu_custom_call.1} parent=39 // pred_region
          %s3065 = sand.u32 %s75, 1
          %s3066 = scalar_lea.sflag [#allocation4], %s3065
          %s3067 = sand.u32 %s75, 1
          %s3068 = smul.addr %s3067, 384
          %s3069 = scalar_lea.vmem [#allocation5], %s3068
          %3070 = dma.done %s3066, 6144
        $region44: #{tpu_custom_call.1} parent=39 // pred_fallthru
          _
      $region40: #{tpu_custom_call.1} parent=5 // pred_fallthru
        _
    $region6: #{tpu_custom_call.1} parent=1 // loop_footer
      %s18 = sadd.s32 1, %s14
    $region7: #{tpu_custom_call.1} parent=1 // loop_footer_branch
      %13 = sbr.rel target = $region3
    $region8: #{tpu_custom_call.1} parent=1 // loop_exit
      _
    %3071 = vsyncpa [#allocation3], 1
    %s3072 = scalar_lea.sflag [#allocation3], 1
    %3073 = vsyncpa %s3072, 1
    %3074 = vsyncpa [#allocation4], 1
    %s3075 = scalar_lea.sflag [#allocation4], 1
    %3076 = vsyncpa %s3075, 1

</llo_original>
